<compile_context>
chip_gen: v7x
topology: tpu7x:2x2x1
jax: 0.10.0
libtpu: 0.0.40
codegen_flags: <defaults>
</compile_context>

<pallas_src>
import jax
import jax.numpy as jnp
import numpy as np
from jax.experimental import pallas as pl
from jax.experimental.pallas import tpu as pltpu


def _round_up(x, m):
    return (x + m - 1) // m * m


# ----------------------------------------------------------------------------
# Pallas kernel: fused bidirectional LSTM over the neighbor axis + mean over time.
#
# Layouts (everything "nodes on lanes"):
#   mailbox m_ref : (T, D, BN)   bf16, time-major / feature-major
#   gate rows  G = 8H = 4*D, ordered [ i_f | i_b | f_f | f_b | g_f | g_b | o_f | o_b ]
#   state h/c/acc : (2H, BN) f32, rows [ fwd H | bwd H ]
# ----------------------------------------------------------------------------
def _bilstm_mean_kernel(m_ref, w_fwd_ref, w_bwd_ref, w_hh_ref, b_ref, o_ref):
    T, D, BN = m_ref.shape
    G = w_fwd_ref.shape[0]          # 8H
    H2 = G // 4                     # 2H (== D)

    w_fwd = w_fwd_ref[...]          # (G, D)  bf16, bwd gate rows zeroed
    w_bwd = w_bwd_ref[...]          # (G, D)  bf16, fwd gate rows zeroed
    w_hh = w_hh_ref[...]            # (G, 2H) bf16, block-diagonal per direction
    b = b_ref[...]                  # (G, 1)  f32, b_ih + b_hh, both directions

    def step(t, carry):
        h, c, acc = carry
        x_f = m_ref[t]              # (D, BN) forward direction input
        x_b = m_ref[T - 1 - t]      # (D, BN) backward direction input (time-reversed)
        gates = (jnp.dot(w_fwd, x_f, preferred_element_type=jnp.float32)
                 + jnp.dot(w_bwd, x_b, preferred_element_type=jnp.float32)
                 + jnp.dot(w_hh, h.astype(w_hh.dtype),
                           preferred_element_type=jnp.float32)
                 + b)               # (G, BN) f32
        # sublane-aligned gate slices (multiples of 2H), all fully lane-dense
        i_g = jax.nn.sigmoid(gates[0:H2])
        f_g = jax.nn.sigmoid(gates[H2:2 * H2])
        g_g = jnp.tanh(gates[2 * H2:3 * H2])
        o_g = jax.nn.sigmoid(gates[3 * H2:4 * H2])
        c = f_g * c + i_g * g_g
        h = o_g * jnp.tanh(c)
        return h, c, acc + h

    zeros = jnp.zeros((H2, BN), jnp.float32)
    _, _, acc = jax.lax.fori_loop(0, T, step, (zeros, zeros, zeros), unroll=True)
    # mean over time of concat([h_fwd, h_bwd]) == per-direction means, already packed
    o_ref[...] = (acc * (1.0 / T)).astype(o_ref.dtype)


def bilstm_mean(m_tdn, packed_params, *, block_n=512):
    """m_tdn: (T, D, N) time-major / feature-major bf16 mailbox. Returns (N, D) f32."""
    T, D, N = m_tdn.shape
    H = D // 2
    G = 8 * H
    w_fwd, w_bwd, w_hh, b = packed_params

    # Node tile: multiple of 128 (lane constraint); ensure >=2 grid tiles when the
    # problem is big enough so v7x megacore can shard the "parallel" axis.
    n128 = _round_up(N, 128)
    bn = min(_round_up(block_n, 128), n128)
    if n128 >= 256:
        bn = min(bn, _round_up((N + 1) // 2, 128))
    n_pad = _round_up(N, bn)
    if n_pad != N:
        m_tdn = jnp.pad(m_tdn, ((0, 0), (0, 0), (0, n_pad - N)))

    # explicit scoped-VMEM budget (double-buffered operands + in-loop f32 temporaries);
    # kept well under v7x's 64 MiB physical / 32 MiB scoped default.
    est = (2 * (T * D * bn * 2)                                  # mailbox tile, bf16
           + 2 * (2 * G * D * 2 + G * (2 * H) * 2 + G * 128 * 4)  # weights + padded bias
           + 2 * (D * bn * 4)                                    # output tile, f32
           + 12 * G * bn * 4)                                    # gate/state temporaries
    vmem_limit = int(min(max(4 * est, 16 << 20), 32 << 20))

    out = pl.pallas_call(
        _bilstm_mean_kernel,
        out_shape=jax.ShapeDtypeStruct((D, n_pad), jnp.float32),
        grid_spec=pltpu.PrefetchScalarGridSpec(
            num_scalar_prefetch=0,
            grid=(n_pad // bn,),
            in_specs=[
                pl.BlockSpec((T, D, bn), lambda i: (0, 0, i)),   # mailbox tile
                pl.BlockSpec((G, D), lambda i: (0, 0)),          # fwd input projection
                pl.BlockSpec((G, D), lambda i: (0, 0)),          # bwd input projection
                pl.BlockSpec((G, 2 * H), lambda i: (0, 0)),      # block-diag recurrence
                pl.BlockSpec((G, 1), lambda i: (0, 0)),          # combined biases
            ],
            out_specs=pl.BlockSpec((D, bn), lambda i: (0, i)),   # lane-dense output
        ),
        compiler_params=pltpu.CompilerParams(
            dimension_semantics=("parallel",),
            vmem_limit_bytes=vmem_limit),
    )(m_tdn, w_fwd, w_bwd, w_hh, b)
    return out[:, :N].T


# ----------------------------------------------------------------------------
# Parameters: torch-layout init (nn.LSTM(dim, dim//2, 1, bidirectional=True)),
# then re-packed into the kernel's fused, direction-masked layout.
# ----------------------------------------------------------------------------
def init_torch_lstm_params(key, dim):
    H = dim // 2
    k = 1.0 / np.sqrt(H)
    keys = jax.random.split(key, 8)

    def u(kk, shape):
        return jax.random.uniform(kk, shape, jnp.float32, -k, k)

    # torch layouts: weight_ih (4H, D), weight_hh (4H, H), biases (4H,); gate order i,f,g,o
    return (u(keys[0], (4 * H, dim)), u(keys[1], (4 * H, H)),
            u(keys[2], (4 * H,)), u(keys[3], (4 * H,)),
            u(keys[4], (4 * H, dim)), u(keys[5], (4 * H, H)),
            u(keys[6], (4 * H,)), u(keys[7], (4 * H,)))


def pack_bilstm_params(tp):
    """torch (ih_f, hh_f, bih_f, bhh_f, ih_b, hh_b, bih_b, bhh_b) -> kernel layout."""
    w_ih_f, w_hh_f, b_ih_f, b_hh_f, w_ih_b, w_hh_b, b_ih_b, b_hh_b = tp
    H = w_hh_f.shape[1]

    def stack_rows(a_f, a_b):
        # (4H, C) fwd + (4H, C) bwd -> (8H, C), rows [i_f,i_b,f_f,f_b,g_f,g_b,o_f,o_b]
        rows = []
        for g in range(4):
            rows.append(a_f[g * H:(g + 1) * H])
            rows.append(a_b[g * H:(g + 1) * H])
        return jnp.concatenate(rows, axis=0)

    w_fwd = stack_rows(w_ih_f, jnp.zeros_like(w_ih_b))          # (G, D), bwd rows zero
    w_bwd = stack_rows(jnp.zeros_like(w_ih_f), w_ih_b)          # (G, D), fwd rows zero
    whh_f_full = jnp.concatenate([w_hh_f, jnp.zeros_like(w_hh_f)], axis=1)   # (4H, 2H)
    whh_b_full = jnp.concatenate([jnp.zeros_like(w_hh_b), w_hh_b], axis=1)   # (4H, 2H)
    w_hh = stack_rows(whh_f_full, whh_b_full)                   # (G, 2H) block-diagonal
    bias = stack_rows((b_ih_f + b_hh_f)[:, None],
                      (b_ih_b + b_hh_b)[:, None])               # (G, 1)

    return (w_fwd.astype(jnp.bfloat16), w_bwd.astype(jnp.bfloat16),
            w_hh.astype(jnp.bfloat16), bias.astype(jnp.float32))


# ----------------------------------------------------------------------------
# aggregate_het_neigh equivalent
# ----------------------------------------------------------------------------
class AggregateHetNeighPallas:
    """One BiLSTM aggregator per source node type (== nn.ModuleDict of lstm_aggr)."""

    def __init__(self, ntypes, dim, key, *, block_n=512):
        self.ntypes = list(ntypes)
        self.dim = dim
        self.block_n = block_n
        self.torch_params = {}
        self.packed = {}
        for n in self.ntypes:
            key, sub = jax.random.split(key)
            tp = init_torch_lstm_params(sub, dim)
            self.torch_params[n] = tp
            self.packed[n] = pack_bilstm_params(tp)

    def __call__(self, canonical_etypes, nbr_idx, inputs):
        """
        canonical_etypes: list of (stype, etype, dtype)
        nbr_idx: dict (stype,etype,dtype) -> (N_dst[dtype], K) int32 indices into src nodes
        inputs:  dict ntype -> (N[ntype], dim) float32 features
        returns: dict dtype -> list of (N_dst[dtype], dim) aggregated features
        """
        outputs = {n: [] for n in self.ntypes}
        inputs_bf16_t = {k: v.astype(jnp.bfloat16).T for k, v in inputs.items()}  # (D, N)
        for (stype, etype, dtype) in canonical_etypes:
            if (stype, etype, dtype) not in nbr_idx:       # relation with no edges
                continue
            if stype not in inputs or dtype not in inputs:
                continue
            idx = nbr_idx[(stype, etype, dtype)]           # (N_dst, K)
            # time-major / feature-major mailbox gather -> (K, D, N_dst) bf16 (glue)
            # TODO(synk): at production scale do this gather inside the kernel via
            # scalar-prefetched nbr_idx + pl.ANY features to skip the HBM round trip.
            m = jnp.transpose(inputs_bf16_t[stype][:, idx], (2, 0, 1))
            outputs[dtype].append(
                bilstm_mean(m, self.packed[stype], block_n=self.block_n))
        return outputs


# ----------------------------------------------------------------------------
# Pure-JAX f32 reference (torch-layout params) for correctness checking
# ----------------------------------------------------------------------------
def ref_bilstm_mean(m_ntd, tp):
    w_ih_f, w_hh_f, b_ih_f, b_hh_f, w_ih_b, w_hh_b, b_ih_b, b_hh_b = tp
    N, T, D = m_ntd.shape
    H = D // 2

    def run(seq, w_ih, w_hh, b):
        wih, whh = w_ih.T, w_hh.T

        def step(carry, x):
            h, c = carry
            gates = x @ wih + h @ whh + b
            i_g = jax.nn.sigmoid(gates[:, 0:H])
            f_g = jax.nn.sigmoid(gates[:, H:2 * H])
            g_g = jnp.tanh(gates[:, 2 * H:3 * H])
            o_g = jax.nn.sigmoid(gates[:, 3 * H:4 * H])
            c = f_g * c + i_g * g_g
            h = o_g * jnp.tanh(c)
            return (h, c), h

        init = (jnp.zeros((N, H), jnp.float32), jnp.zeros((N, H), jnp.float32))
        _, hs = jax.lax.scan(step, init, jnp.swapaxes(seq, 0, 1))
        return jnp.swapaxes(hs, 0, 1)                      # (N, T, H)

    hs_f = run(m_ntd, w_ih_f, w_hh_f, b_ih_f + b_hh_f)
    hs_b = run(m_ntd[:, ::-1, :], w_ih_b, w_hh_b, b_ih_b + b_hh_b)[:, ::-1, :]
    return jnp.concatenate([hs_f, hs_b], axis=-1).mean(axis=1)


# ----------------------------------------------------------------------------
if __name__ == "__main__":
    key = jax.random.PRNGKey(0)

    dim = 32          # feature dim (LSTM hidden = 16 per direction)
    K = 8             # sampled neighbors per destination node (sequence length)
    ntypes = ["author", "paper"]
    n_nodes = {"author": 16, "paper": 24}
    canonical_etypes = [("author", "ap", "paper"),
                        ("paper", "pa", "author"),
                        ("paper", "pp", "paper")]

    # deterministic node features per type
    feats = {}
    for n in ntypes:
        key, sub = jax.random.split(key)
        feats[n] = jax.random.normal(sub, (n_nodes[n], dim), jnp.float32)

    # deterministic fixed-size sampled neighborhoods per relation
    nbr_idx = {}
    for (s, e, d) in canonical_etypes:
        key, sub = jax.random.split(key)
        nbr_idx[(s, e, d)] = jax.random.randint(
            sub, (n_nodes[d], K), 0, n_nodes[s], jnp.int32)

    key, sub = jax.random.split(key)
    model = AggregateHetNeighPallas(ntypes, dim, sub, block_n=512)

    outputs = model(canonical_etypes, nbr_idx, feats)
    outputs = jax.block_until_ready(outputs)

    # verify against pure-JAX f32 BiLSTM reference, matching relations by index
    # (tolerance reflects bf16 mailbox / weights on the MXU; f32 elementwise math)
    pos = {n: 0 for n in ntypes}
    for (s, e, d) in canonical_etypes:
        if (s, e, d) not in nbr_idx or s not in feats or d not in feats:
            continue
        got = np.asarray(outputs[d][pos[d]])
        pos[d] += 1
        m_f32 = feats[s][nbr_idx[(s, e, d)]]               # (N_dst, K, D) node-major f32
        ref = np.asarray(ref_bilstm_mean(m_f32, model.torch_params[s]))
        np.testing.assert_allclose(got, ref, rtol=3e-2, atol=3e-2,
                                   err_msg=f"mismatch for relation {(s, e, d)}")

    print("KERNEL_OK")
</pallas_src>

<mosaic_0001>
module attributes {stable_mosaic.version = 11 : i64} {
  func.func @_bilstm_mean_kernel(%arg0: i32, %arg1: memref<8x32x128xbf16, #tpu.memory_space<vmem>>, %arg2: memref<128x32xbf16, #tpu.memory_space<vmem>>, %arg3: memref<128x32xbf16, #tpu.memory_space<vmem>>, %arg4: memref<128x32xbf16, #tpu.memory_space<vmem>>, %arg5: memref<128x1xf32, #tpu.memory_space<vmem>>, %arg6: memref<32x128xf32, #tpu.memory_space<vmem>>) attributes {dimension_semantics = [#tpu.dimension_semantics<parallel>], iteration_bounds = array<i64: 1>, scalar_prefetch = 0 : i64, scratch_operands = 0 : i64, tpu.core_type = #tpu.core_type<tc>, window_params = [{transform_indices = @transform_0, window_bounds = array<i64: 8, 32, 128>}, {pipeline_mode = #tpu.pipeline_mode<synchronous>, transform_indices = @transform_1, window_bounds = array<i64: 128, 32>}, {pipeline_mode = #tpu.pipeline_mode<synchronous>, transform_indices = @transform_2, window_bounds = array<i64: 128, 32>}, {pipeline_mode = #tpu.pipeline_mode<synchronous>, transform_indices = @transform_3, window_bounds = array<i64: 128, 32>}, {pipeline_mode = #tpu.pipeline_mode<synchronous>, transform_indices = @transform_4, window_bounds = array<i64: 128, 1>}, {transform_indices = @transform_5, window_bounds = array<i64: 32, 128>}]} {
    %c0 = arith.constant 0 : index
    %c0_0 = arith.constant 0 : index
    %0 = vector.load %arg2[%c0, %c0_0] : memref<128x32xbf16, #tpu.memory_space<vmem>>, vector<128x32xbf16>
    %c0_1 = arith.constant 0 : index
    %c0_2 = arith.constant 0 : index
    %1 = vector.load %arg3[%c0_1, %c0_2] : memref<128x32xbf16, #tpu.memory_space<vmem>>, vector<128x32xbf16>
    %c0_3 = arith.constant 0 : index
    %c0_4 = arith.constant 0 : index
    %2 = vector.load %arg4[%c0_3, %c0_4] : memref<128x32xbf16, #tpu.memory_space<vmem>>, vector<128x32xbf16>
    %c0_5 = arith.constant 0 : index
    %c0_6 = arith.constant 0 : index
    %3 = vector.load %arg5[%c0_5, %c0_6] : memref<128x1xf32, #tpu.memory_space<vmem>>, vector<128x1xf32>
    %cst = arith.constant 0.000000e+00 : f32
    %4 = vector.broadcast %cst : f32 to vector<32x128xf32>
    %c0_i32 = arith.constant 0 : i32
    %5 = arith.index_cast %c0_i32 : i32 to index
    %c0_7 = arith.constant 0 : index
    %c0_8 = arith.constant 0 : index
    %6 = vector.load %arg1[%5, %c0_7, %c0_8] : memref<8x32x128xbf16, #tpu.memory_space<vmem>>, vector<1x32x128xbf16>
    %7 = vector.shape_cast %6 : vector<1x32x128xbf16> to vector<32x128xbf16>
    %c7_i32 = arith.constant 7 : i32
    %8 = arith.subi %c7_i32, %c0_i32 : i32
    %9 = arith.index_cast %8 : i32 to index
    %c0_9 = arith.constant 0 : index
    %c0_10 = arith.constant 0 : index
    %10 = vector.load %arg1[%9, %c0_9, %c0_10] : memref<8x32x128xbf16, #tpu.memory_space<vmem>>, vector<1x32x128xbf16>
    %11 = vector.shape_cast %10 : vector<1x32x128xbf16> to vector<32x128xbf16>
    %cst_11 = arith.constant dense<0.000000e+00> : vector<128x128xf32>
    %12 = tpu.matmul %0, %7, %cst_11 {dimension_numbers = #tpu.dot_dimension_numbers<[1], [0], [0], [1], [0, 0, 1, 1], [], []>} : vector<128x32xbf16>, vector<32x128xbf16>, vector<128x128xf32> -> vector<128x128xf32>
    %cst_12 = arith.constant dense<0.000000e+00> : vector<128x128xf32>
    %13 = tpu.matmul %1, %11, %cst_12 {dimension_numbers = #tpu.dot_dimension_numbers<[1], [0], [0], [1], [0, 0, 1, 1], [], []>} : vector<128x32xbf16>, vector<32x128xbf16>, vector<128x128xf32> -> vector<128x128xf32>
    %14 = arith.addf %12, %13 : vector<128x128xf32>
    %15 = arith.truncf %4 : vector<32x128xf32> to vector<32x128xbf16>
    %cst_13 = arith.constant dense<0.000000e+00> : vector<128x128xf32>
    %16 = tpu.matmul %2, %15, %cst_13 {dimension_numbers = #tpu.dot_dimension_numbers<[1], [0], [0], [1], [0, 0, 1, 1], [], []>} : vector<128x32xbf16>, vector<32x128xbf16>, vector<128x128xf32> -> vector<128x128xf32>
    %17 = arith.addf %14, %16 : vector<128x128xf32>
    %18 = vector.broadcast %3 : vector<128x1xf32> to vector<128x128xf32>
    %19 = arith.addf %17, %18 : vector<128x128xf32>
    %20 = vector.extract_strided_slice %19 {offsets = [0, 0], sizes = [32, 128], strides = [1, 1]} : vector<128x128xf32> to vector<32x128xf32>
    %21 = arith.negf %20 : vector<32x128xf32>
    %22 = math.exp %21 : vector<32x128xf32>
    %cst_14 = arith.constant 1.000000e+00 : f32
    %23 = vector.broadcast %cst_14 : f32 to vector<32x128xf32>
    %24 = arith.addf %23, %22 : vector<32x128xf32>
    %25 = arith.divf %23, %24 : vector<32x128xf32>
    %26 = vector.extract_strided_slice %19 {offsets = [32, 0], sizes = [32, 128], strides = [1, 1]} : vector<128x128xf32> to vector<32x128xf32>
    %27 = arith.negf %26 : vector<32x128xf32>
    %28 = math.exp %27 : vector<32x128xf32>
    %cst_15 = arith.constant 1.000000e+00 : f32
    %29 = vector.broadcast %cst_15 : f32 to vector<32x128xf32>
    %30 = arith.addf %29, %28 : vector<32x128xf32>
    %31 = arith.divf %29, %30 : vector<32x128xf32>
    %32 = vector.extract_strided_slice %19 {offsets = [64, 0], sizes = [32, 128], strides = [1, 1]} : vector<128x128xf32> to vector<32x128xf32>
    %33 = math.tanh %32 : vector<32x128xf32>
    %34 = vector.extract_strided_slice %19 {offsets = [96, 0], sizes = [32, 128], strides = [1, 1]} : vector<128x128xf32> to vector<32x128xf32>
    %35 = arith.negf %34 : vector<32x128xf32>
    %36 = math.exp %35 : vector<32x128xf32>
    %cst_16 = arith.constant 1.000000e+00 : f32
    %37 = vector.broadcast %cst_16 : f32 to vector<32x128xf32>
    %38 = arith.addf %37, %36 : vector<32x128xf32>
    %39 = arith.divf %37, %38 : vector<32x128xf32>
    %40 = arith.mulf %31, %4 : vector<32x128xf32>
    %41 = arith.mulf %25, %33 : vector<32x128xf32>
    %42 = arith.addf %40, %41 : vector<32x128xf32>
    %43 = math.tanh %42 : vector<32x128xf32>
    %44 = arith.mulf %39, %43 : vector<32x128xf32>
    %45 = arith.addf %4, %44 : vector<32x128xf32>
    %c1_i32 = arith.constant 1 : i32
    %46 = arith.index_cast %c1_i32 : i32 to index
    %c0_17 = arith.constant 0 : index
    %c0_18 = arith.constant 0 : index
    %47 = vector.load %arg1[%46, %c0_17, %c0_18] : memref<8x32x128xbf16, #tpu.memory_space<vmem>>, vector<1x32x128xbf16>
    %48 = vector.shape_cast %47 : vector<1x32x128xbf16> to vector<32x128xbf16>
    %c7_i32_19 = arith.constant 7 : i32
    %49 = arith.subi %c7_i32_19, %c1_i32 : i32
    %50 = arith.index_cast %49 : i32 to index
    %c0_20 = arith.constant 0 : index
    %c0_21 = arith.constant 0 : index
    %51 = vector.load %arg1[%50, %c0_20, %c0_21] : memref<8x32x128xbf16, #tpu.memory_space<vmem>>, vector<1x32x128xbf16>
    %52 = vector.shape_cast %51 : vector<1x32x128xbf16> to vector<32x128xbf16>
    %cst_22 = arith.constant dense<0.000000e+00> : vector<128x128xf32>
    %53 = tpu.matmul %0, %48, %cst_22 {dimension_numbers = #tpu.dot_dimension_numbers<[1], [0], [0], [1], [0, 0, 1, 1], [], []>} : vector<128x32xbf16>, vector<32x128xbf16>, vector<128x128xf32> -> vector<128x128xf32>
    %cst_23 = arith.constant dense<0.000000e+00> : vector<128x128xf32>
    %54 = tpu.matmul %1, %52, %cst_23 {dimension_numbers = #tpu.dot_dimension_numbers<[1], [0], [0], [1], [0, 0, 1, 1], [], []>} : vector<128x32xbf16>, vector<32x128xbf16>, vector<128x128xf32> -> vector<128x128xf32>
    %55 = arith.addf %53, %54 : vector<128x128xf32>
    %56 = arith.truncf %44 : vector<32x128xf32> to vector<32x128xbf16>
    %cst_24 = arith.constant dense<0.000000e+00> : vector<128x128xf32>
    %57 = tpu.matmul %2, %56, %cst_24 {dimension_numbers = #tpu.dot_dimension_numbers<[1], [0], [0], [1], [0, 0, 1, 1], [], []>} : vector<128x32xbf16>, vector<32x128xbf16>, vector<128x128xf32> -> vector<128x128xf32>
    %58 = arith.addf %55, %57 : vector<128x128xf32>
    %59 = vector.broadcast %3 : vector<128x1xf32> to vector<128x128xf32>
    %60 = arith.addf %58, %59 : vector<128x128xf32>
    %61 = vector.extract_strided_slice %60 {offsets = [0, 0], sizes = [32, 128], strides = [1, 1]} : vector<128x128xf32> to vector<32x128xf32>
    %62 = arith.negf %61 : vector<32x128xf32>
    %63 = math.exp %62 : vector<32x128xf32>
    %cst_25 = arith.constant 1.000000e+00 : f32
    %64 = vector.broadcast %cst_25 : f32 to vector<32x128xf32>
    %65 = arith.addf %64, %63 : vector<32x128xf32>
    %66 = arith.divf %64, %65 : vector<32x128xf32>
    %67 = vector.extract_strided_slice %60 {offsets = [32, 0], sizes = [32, 128], strides = [1, 1]} : vector<128x128xf32> to vector<32x128xf32>
    %68 = arith.negf %67 : vector<32x128xf32>
    %69 = math.exp %68 : vector<32x128xf32>
    %cst_26 = arith.constant 1.000000e+00 : f32
    %70 = vector.broadcast %cst_26 : f32 to vector<32x128xf32>
    %71 = arith.addf %70, %69 : vector<32x128xf32>
    %72 = arith.divf %70, %71 : vector<32x128xf32>
    %73 = vector.extract_strided_slice %60 {offsets = [64, 0], sizes = [32, 128], strides = [1, 1]} : vector<128x128xf32> to vector<32x128xf32>
    %74 = math.tanh %73 : vector<32x128xf32>
    %75 = vector.extract_strided_slice %60 {offsets = [96, 0], sizes = [32, 128], strides = [1, 1]} : vector<128x128xf32> to vector<32x128xf32>
    %76 = arith.negf %75 : vector<32x128xf32>
    %77 = math.exp %76 : vector<32x128xf32>
    %cst_27 = arith.constant 1.000000e+00 : f32
    %78 = vector.broadcast %cst_27 : f32 to vector<32x128xf32>
    %79 = arith.addf %78, %77 : vector<32x128xf32>
    %80 = arith.divf %78, %79 : vector<32x128xf32>
    %81 = arith.mulf %72, %42 : vector<32x128xf32>
    %82 = arith.mulf %66, %74 : vector<32x128xf32>
    %83 = arith.addf %81, %82 : vector<32x128xf32>
    %84 = math.tanh %83 : vector<32x128xf32>
    %85 = arith.mulf %80, %84 : vector<32x128xf32>
    %86 = arith.addf %45, %85 : vector<32x128xf32>
    %c2_i32 = arith.constant 2 : i32
    %87 = arith.index_cast %c2_i32 : i32 to index
    %c0_28 = arith.constant 0 : index
    %c0_29 = arith.constant 0 : index
    %88 = vector.load %arg1[%87, %c0_28, %c0_29] : memref<8x32x128xbf16, #tpu.memory_space<vmem>>, vector<1x32x128xbf16>
    %89 = vector.shape_cast %88 : vector<1x32x128xbf16> to vector<32x128xbf16>
    %c7_i32_30 = arith.constant 7 : i32
    %90 = arith.subi %c7_i32_30, %c2_i32 : i32
    %91 = arith.index_cast %90 : i32 to index
    %c0_31 = arith.constant 0 : index
    %c0_32 = arith.constant 0 : index
    %92 = vector.load %arg1[%91, %c0_31, %c0_32] : memref<8x32x128xbf16, #tpu.memory_space<vmem>>, vector<1x32x128xbf16>
    %93 = vector.shape_cast %92 : vector<1x32x128xbf16> to vector<32x128xbf16>
    %cst_33 = arith.constant dense<0.000000e+00> : vector<128x128xf32>
    %94 = tpu.matmul %0, %89, %cst_33 {dimension_numbers = #tpu.dot_dimension_numbers<[1], [0], [0], [1], [0, 0, 1, 1], [], []>} : vector<128x32xbf16>, vector<32x128xbf16>, vector<128x128xf32> -> vector<128x128xf32>
    %cst_34 = arith.constant dense<0.000000e+00> : vector<128x128xf32>
    %95 = tpu.matmul %1, %93, %cst_34 {dimension_numbers = #tpu.dot_dimension_numbers<[1], [0], [0], [1], [0, 0, 1, 1], [], []>} : vector<128x32xbf16>, vector<32x128xbf16>, vector<128x128xf32> -> vector<128x128xf32>
    %96 = arith.addf %94, %95 : vector<128x128xf32>
    %97 = arith.truncf %85 : vector<32x128xf32> to vector<32x128xbf16>
    %cst_35 = arith.constant dense<0.000000e+00> : vector<128x128xf32>
    %98 = tpu.matmul %2, %97, %cst_35 {dimension_numbers = #tpu.dot_dimension_numbers<[1], [0], [0], [1], [0, 0, 1, 1], [], []>} : vector<128x32xbf16>, vector<32x128xbf16>, vector<128x128xf32> -> vector<128x128xf32>
    %99 = arith.addf %96, %98 : vector<128x128xf32>
    %100 = vector.broadcast %3 : vector<128x1xf32> to vector<128x128xf32>
    %101 = arith.addf %99, %100 : vector<128x128xf32>
    %102 = vector.extract_strided_slice %101 {offsets = [0, 0], sizes = [32, 128], strides = [1, 1]} : vector<128x128xf32> to vector<32x128xf32>
    %103 = arith.negf %102 : vector<32x128xf32>
    %104 = math.exp %103 : vector<32x128xf32>
    %cst_36 = arith.constant 1.000000e+00 : f32
    %105 = vector.broadcast %cst_36 : f32 to vector<32x128xf32>
    %106 = arith.addf %105, %104 : vector<32x128xf32>
    %107 = arith.divf %105, %106 : vector<32x128xf32>
    %108 = vector.extract_strided_slice %101 {offsets = [32, 0], sizes = [32, 128], strides = [1, 1]} : vector<128x128xf32> to vector<32x128xf32>
    %109 = arith.negf %108 : vector<32x128xf32>
    %110 = math.exp %109 : vector<32x128xf32>
    %cst_37 = arith.constant 1.000000e+00 : f32
    %111 = vector.broadcast %cst_37 : f32 to vector<32x128xf32>
    %112 = arith.addf %111, %110 : vector<32x128xf32>
    %113 = arith.divf %111, %112 : vector<32x128xf32>
    %114 = vector.extract_strided_slice %101 {offsets = [64, 0], sizes = [32, 128], strides = [1, 1]} : vector<128x128xf32> to vector<32x128xf32>
    %115 = math.tanh %114 : vector<32x128xf32>
    %116 = vector.extract_strided_slice %101 {offsets = [96, 0], sizes = [32, 128], strides = [1, 1]} : vector<128x128xf32> to vector<32x128xf32>
    %117 = arith.negf %116 : vector<32x128xf32>
    %118 = math.exp %117 : vector<32x128xf32>
    %cst_38 = arith.constant 1.000000e+00 : f32
    %119 = vector.broadcast %cst_38 : f32 to vector<32x128xf32>
    %120 = arith.addf %119, %118 : vector<32x128xf32>
    %121 = arith.divf %119, %120 : vector<32x128xf32>
    %122 = arith.mulf %113, %83 : vector<32x128xf32>
    %123 = arith.mulf %107, %115 : vector<32x128xf32>
    %124 = arith.addf %122, %123 : vector<32x128xf32>
    %125 = math.tanh %124 : vector<32x128xf32>
    %126 = arith.mulf %121, %125 : vector<32x128xf32>
    %127 = arith.addf %86, %126 : vector<32x128xf32>
    %c3_i32 = arith.constant 3 : i32
    %128 = arith.index_cast %c3_i32 : i32 to index
    %c0_39 = arith.constant 0 : index
    %c0_40 = arith.constant 0 : index
    %129 = vector.load %arg1[%128, %c0_39, %c0_40] : memref<8x32x128xbf16, #tpu.memory_space<vmem>>, vector<1x32x128xbf16>
    %130 = vector.shape_cast %129 : vector<1x32x128xbf16> to vector<32x128xbf16>
    %c7_i32_41 = arith.constant 7 : i32
    %131 = arith.subi %c7_i32_41, %c3_i32 : i32
    %132 = arith.index_cast %131 : i32 to index
    %c0_42 = arith.constant 0 : index
    %c0_43 = arith.constant 0 : index
    %133 = vector.load %arg1[%132, %c0_42, %c0_43] : memref<8x32x128xbf16, #tpu.memory_space<vmem>>, vector<1x32x128xbf16>
    %134 = vector.shape_cast %133 : vector<1x32x128xbf16> to vector<32x128xbf16>
    %cst_44 = arith.constant dense<0.000000e+00> : vector<128x128xf32>
    %135 = tpu.matmul %0, %130, %cst_44 {dimension_numbers = #tpu.dot_dimension_numbers<[1], [0], [0], [1], [0, 0, 1, 1], [], []>} : vector<128x32xbf16>, vector<32x128xbf16>, vector<128x128xf32> -> vector<128x128xf32>
    %cst_45 = arith.constant dense<0.000000e+00> : vector<128x128xf32>
    %136 = tpu.matmul %1, %134, %cst_45 {dimension_numbers = #tpu.dot_dimension_numbers<[1], [0], [0], [1], [0, 0, 1, 1], [], []>} : vector<128x32xbf16>, vector<32x128xbf16>, vector<128x128xf32> -> vector<128x128xf32>
    %137 = arith.addf %135, %136 : vector<128x128xf32>
    %138 = arith.truncf %126 : vector<32x128xf32> to vector<32x128xbf16>
    %cst_46 = arith.constant dense<0.000000e+00> : vector<128x128xf32>
    %139 = tpu.matmul %2, %138, %cst_46 {dimension_numbers = #tpu.dot_dimension_numbers<[1], [0], [0], [1], [0, 0, 1, 1], [], []>} : vector<128x32xbf16>, vector<32x128xbf16>, vector<128x128xf32> -> vector<128x128xf32>
    %140 = arith.addf %137, %139 : vector<128x128xf32>
    %141 = vector.broadcast %3 : vector<128x1xf32> to vector<128x128xf32>
    %142 = arith.addf %140, %141 : vector<128x128xf32>
    %143 = vector.extract_strided_slice %142 {offsets = [0, 0], sizes = [32, 128], strides = [1, 1]} : vector<128x128xf32> to vector<32x128xf32>
    %144 = arith.negf %143 : vector<32x128xf32>
    %145 = math.exp %144 : vector<32x128xf32>
    %cst_47 = arith.constant 1.000000e+00 : f32
    %146 = vector.broadcast %cst_47 : f32 to vector<32x128xf32>
    %147 = arith.addf %146, %145 : vector<32x128xf32>
    %148 = arith.divf %146, %147 : vector<32x128xf32>
    %149 = vector.extract_strided_slice %142 {offsets = [32, 0], sizes = [32, 128], strides = [1, 1]} : vector<128x128xf32> to vector<32x128xf32>
    %150 = arith.negf %149 : vector<32x128xf32>
    %151 = math.exp %150 : vector<32x128xf32>
    %cst_48 = arith.constant 1.000000e+00 : f32
    %152 = vector.broadcast %cst_48 : f32 to vector<32x128xf32>
    %153 = arith.addf %152, %151 : vector<32x128xf32>
    %154 = arith.divf %152, %153 : vector<32x128xf32>
    %155 = vector.extract_strided_slice %142 {offsets = [64, 0], sizes = [32, 128], strides = [1, 1]} : vector<128x128xf32> to vector<32x128xf32>
    %156 = math.tanh %155 : vector<32x128xf32>
    %157 = vector.extract_strided_slice %142 {offsets = [96, 0], sizes = [32, 128], strides = [1, 1]} : vector<128x128xf32> to vector<32x128xf32>
    %158 = arith.negf %157 : vector<32x128xf32>
    %159 = math.exp %158 : vector<32x128xf32>
    %cst_49 = arith.constant 1.000000e+00 : f32
    %160 = vector.broadcast %cst_49 : f32 to vector<32x128xf32>
    %161 = arith.addf %160, %159 : vector<32x128xf32>
    %162 = arith.divf %160, %161 : vector<32x128xf32>
    %163 = arith.mulf %154, %124 : vector<32x128xf32>
    %164 = arith.mulf %148, %156 : vector<32x128xf32>
    %165 = arith.addf %163, %164 : vector<32x128xf32>
    %166 = math.tanh %165 : vector<32x128xf32>
    %167 = arith.mulf %162, %166 : vector<32x128xf32>
    %168 = arith.addf %127, %167 : vector<32x128xf32>
    %c4_i32 = arith.constant 4 : i32
    %169 = arith.index_cast %c4_i32 : i32 to index
    %c0_50 = arith.constant 0 : index
    %c0_51 = arith.constant 0 : index
    %170 = vector.load %arg1[%169, %c0_50, %c0_51] : memref<8x32x128xbf16, #tpu.memory_space<vmem>>, vector<1x32x128xbf16>
    %171 = vector.shape_cast %170 : vector<1x32x128xbf16> to vector<32x128xbf16>
    %c7_i32_52 = arith.constant 7 : i32
    %172 = arith.subi %c7_i32_52, %c4_i32 : i32
    %173 = arith.index_cast %172 : i32 to index
    %c0_53 = arith.constant 0 : index
    %c0_54 = arith.constant 0 : index
    %174 = vector.load %arg1[%173, %c0_53, %c0_54] : memref<8x32x128xbf16, #tpu.memory_space<vmem>>, vector<1x32x128xbf16>
    %175 = vector.shape_cast %174 : vector<1x32x128xbf16> to vector<32x128xbf16>
    %cst_55 = arith.constant dense<0.000000e+00> : vector<128x128xf32>
    %176 = tpu.matmul %0, %171, %cst_55 {dimension_numbers = #tpu.dot_dimension_numbers<[1], [0], [0], [1], [0, 0, 1, 1], [], []>} : vector<128x32xbf16>, vector<32x128xbf16>, vector<128x128xf32> -> vector<128x128xf32>
    %cst_56 = arith.constant dense<0.000000e+00> : vector<128x128xf32>
    %177 = tpu.matmul %1, %175, %cst_56 {dimension_numbers = #tpu.dot_dimension_numbers<[1], [0], [0], [1], [0, 0, 1, 1], [], []>} : vector<128x32xbf16>, vector<32x128xbf16>, vector<128x128xf32> -> vector<128x128xf32>
    %178 = arith.addf %176, %177 : vector<128x128xf32>
    %179 = arith.truncf %167 : vector<32x128xf32> to vector<32x128xbf16>
    %cst_57 = arith.constant dense<0.000000e+00> : vector<128x128xf32>
    %180 = tpu.matmul %2, %179, %cst_57 {dimension_numbers = #tpu.dot_dimension_numbers<[1], [0], [0], [1], [0, 0, 1, 1], [], []>} : vector<128x32xbf16>, vector<32x128xbf16>, vector<128x128xf32> -> vector<128x128xf32>
    %181 = arith.addf %178, %180 : vector<128x128xf32>
    %182 = vector.broadcast %3 : vector<128x1xf32> to vector<128x128xf32>
    %183 = arith.addf %181, %182 : vector<128x128xf32>
    %184 = vector.extract_strided_slice %183 {offsets = [0, 0], sizes = [32, 128], strides = [1, 1]} : vector<128x128xf32> to vector<32x128xf32>
    %185 = arith.negf %184 : vector<32x128xf32>
    %186 = math.exp %185 : vector<32x128xf32>
    %cst_58 = arith.constant 1.000000e+00 : f32
    %187 = vector.broadcast %cst_58 : f32 to vector<32x128xf32>
    %188 = arith.addf %187, %186 : vector<32x128xf32>
    %189 = arith.divf %187, %188 : vector<32x128xf32>
    %190 = vector.extract_strided_slice %183 {offsets = [32, 0], sizes = [32, 128], strides = [1, 1]} : vector<128x128xf32> to vector<32x128xf32>
    %191 = arith.negf %190 : vector<32x128xf32>
    %192 = math.exp %191 : vector<32x128xf32>
    %cst_59 = arith.constant 1.000000e+00 : f32
    %193 = vector.broadcast %cst_59 : f32 to vector<32x128xf32>
    %194 = arith.addf %193, %192 : vector<32x128xf32>
    %195 = arith.divf %193, %194 : vector<32x128xf32>
    %196 = vector.extract_strided_slice %183 {offsets = [64, 0], sizes = [32, 128], strides = [1, 1]} : vector<128x128xf32> to vector<32x128xf32>
    %197 = math.tanh %196 : vector<32x128xf32>
    %198 = vector.extract_strided_slice %183 {offsets = [96, 0], sizes = [32, 128], strides = [1, 1]} : vector<128x128xf32> to vector<32x128xf32>
    %199 = arith.negf %198 : vector<32x128xf32>
    %200 = math.exp %199 : vector<32x128xf32>
    %cst_60 = arith.constant 1.000000e+00 : f32
    %201 = vector.broadcast %cst_60 : f32 to vector<32x128xf32>
    %202 = arith.addf %201, %200 : vector<32x128xf32>
    %203 = arith.divf %201, %202 : vector<32x128xf32>
    %204 = arith.mulf %195, %165 : vector<32x128xf32>
    %205 = arith.mulf %189, %197 : vector<32x128xf32>
    %206 = arith.addf %204, %205 : vector<32x128xf32>
    %207 = math.tanh %206 : vector<32x128xf32>
    %208 = arith.mulf %203, %207 : vector<32x128xf32>
    %209 = arith.addf %168, %208 : vector<32x128xf32>
    %c5_i32 = arith.constant 5 : i32
    %210 = arith.index_cast %c5_i32 : i32 to index
    %c0_61 = arith.constant 0 : index
    %c0_62 = arith.constant 0 : index
    %211 = vector.load %arg1[%210, %c0_61, %c0_62] : memref<8x32x128xbf16, #tpu.memory_space<vmem>>, vector<1x32x128xbf16>
    %212 = vector.shape_cast %211 : vector<1x32x128xbf16> to vector<32x128xbf16>
    %c7_i32_63 = arith.constant 7 : i32
    %213 = arith.subi %c7_i32_63, %c5_i32 : i32
    %214 = arith.index_cast %213 : i32 to index
    %c0_64 = arith.constant 0 : index
    %c0_65 = arith.constant 0 : index
    %215 = vector.load %arg1[%214, %c0_64, %c0_65] : memref<8x32x128xbf16, #tpu.memory_space<vmem>>, vector<1x32x128xbf16>
    %216 = vector.shape_cast %215 : vector<1x32x128xbf16> to vector<32x128xbf16>
    %cst_66 = arith.constant dense<0.000000e+00> : vector<128x128xf32>
    %217 = tpu.matmul %0, %212, %cst_66 {dimension_numbers = #tpu.dot_dimension_numbers<[1], [0], [0], [1], [0, 0, 1, 1], [], []>} : vector<128x32xbf16>, vector<32x128xbf16>, vector<128x128xf32> -> vector<128x128xf32>
    %cst_67 = arith.constant dense<0.000000e+00> : vector<128x128xf32>
    %218 = tpu.matmul %1, %216, %cst_67 {dimension_numbers = #tpu.dot_dimension_numbers<[1], [0], [0], [1], [0, 0, 1, 1], [], []>} : vector<128x32xbf16>, vector<32x128xbf16>, vector<128x128xf32> -> vector<128x128xf32>
    %219 = arith.addf %217, %218 : vector<128x128xf32>
    %220 = arith.truncf %208 : vector<32x128xf32> to vector<32x128xbf16>
    %cst_68 = arith.constant dense<0.000000e+00> : vector<128x128xf32>
    %221 = tpu.matmul %2, %220, %cst_68 {dimension_numbers = #tpu.dot_dimension_numbers<[1], [0], [0], [1], [0, 0, 1, 1], [], []>} : vector<128x32xbf16>, vector<32x128xbf16>, vector<128x128xf32> -> vector<128x128xf32>
    %222 = arith.addf %219, %221 : vector<128x128xf32>
    %223 = vector.broadcast %3 : vector<128x1xf32> to vector<128x128xf32>
    %224 = arith.addf %222, %223 : vector<128x128xf32>
    %225 = vector.extract_strided_slice %224 {offsets = [0, 0], sizes = [32, 128], strides = [1, 1]} : vector<128x128xf32> to vector<32x128xf32>
    %226 = arith.negf %225 : vector<32x128xf32>
    %227 = math.exp %226 : vector<32x128xf32>
    %cst_69 = arith.constant 1.000000e+00 : f32
    %228 = vector.broadcast %cst_69 : f32 to vector<32x128xf32>
    %229 = arith.addf %228, %227 : vector<32x128xf32>
    %230 = arith.divf %228, %229 : vector<32x128xf32>
    %231 = vector.extract_strided_slice %224 {offsets = [32, 0], sizes = [32, 128], strides = [1, 1]} : vector<128x128xf32> to vector<32x128xf32>
    %232 = arith.negf %231 : vector<32x128xf32>
    %233 = math.exp %232 : vector<32x128xf32>
    %cst_70 = arith.constant 1.000000e+00 : f32
    %234 = vector.broadcast %cst_70 : f32 to vector<32x128xf32>
    %235 = arith.addf %234, %233 : vector<32x128xf32>
    %236 = arith.divf %234, %235 : vector<32x128xf32>
    %237 = vector.extract_strided_slice %224 {offsets = [64, 0], sizes = [32, 128], strides = [1, 1]} : vector<128x128xf32> to vector<32x128xf32>
    %238 = math.tanh %237 : vector<32x128xf32>
    %239 = vector.extract_strided_slice %224 {offsets = [96, 0], sizes = [32, 128], strides = [1, 1]} : vector<128x128xf32> to vector<32x128xf32>
    %240 = arith.negf %239 : vector<32x128xf32>
    %241 = math.exp %240 : vector<32x128xf32>
    %cst_71 = arith.constant 1.000000e+00 : f32
    %242 = vector.broadcast %cst_71 : f32 to vector<32x128xf32>
    %243 = arith.addf %242, %241 : vector<32x128xf32>
    %244 = arith.divf %242, %243 : vector<32x128xf32>
    %245 = arith.mulf %236, %206 : vector<32x128xf32>
    %246 = arith.mulf %230, %238 : vector<32x128xf32>
    %247 = arith.addf %245, %246 : vector<32x128xf32>
    %248 = math.tanh %247 : vector<32x128xf32>
    %249 = arith.mulf %244, %248 : vector<32x128xf32>
    %250 = arith.addf %209, %249 : vector<32x128xf32>
    %c6_i32 = arith.constant 6 : i32
    %251 = arith.index_cast %c6_i32 : i32 to index
    %c0_72 = arith.constant 0 : index
    %c0_73 = arith.constant 0 : index
    %252 = vector.load %arg1[%251, %c0_72, %c0_73] : memref<8x32x128xbf16, #tpu.memory_space<vmem>>, vector<1x32x128xbf16>
    %253 = vector.shape_cast %252 : vector<1x32x128xbf16> to vector<32x128xbf16>
    %c7_i32_74 = arith.constant 7 : i32
    %254 = arith.subi %c7_i32_74, %c6_i32 : i32
    %255 = arith.index_cast %254 : i32 to index
    %c0_75 = arith.constant 0 : index
    %c0_76 = arith.constant 0 : index
    %256 = vector.load %arg1[%255, %c0_75, %c0_76] : memref<8x32x128xbf16, #tpu.memory_space<vmem>>, vector<1x32x128xbf16>
    %257 = vector.shape_cast %256 : vector<1x32x128xbf16> to vector<32x128xbf16>
    %cst_77 = arith.constant dense<0.000000e+00> : vector<128x128xf32>
    %258 = tpu.matmul %0, %253, %cst_77 {dimension_numbers = #tpu.dot_dimension_numbers<[1], [0], [0], [1], [0, 0, 1, 1], [], []>} : vector<128x32xbf16>, vector<32x128xbf16>, vector<128x128xf32> -> vector<128x128xf32>
    %cst_78 = arith.constant dense<0.000000e+00> : vector<128x128xf32>
    %259 = tpu.matmul %1, %257, %cst_78 {dimension_numbers = #tpu.dot_dimension_numbers<[1], [0], [0], [1], [0, 0, 1, 1], [], []>} : vector<128x32xbf16>, vector<32x128xbf16>, vector<128x128xf32> -> vector<128x128xf32>
    %260 = arith.addf %258, %259 : vector<128x128xf32>
    %261 = arith.truncf %249 : vector<32x128xf32> to vector<32x128xbf16>
    %cst_79 = arith.constant dense<0.000000e+00> : vector<128x128xf32>
    %262 = tpu.matmul %2, %261, %cst_79 {dimension_numbers = #tpu.dot_dimension_numbers<[1], [0], [0], [1], [0, 0, 1, 1], [], []>} : vector<128x32xbf16>, vector<32x128xbf16>, vector<128x128xf32> -> vector<128x128xf32>
    %263 = arith.addf %260, %262 : vector<128x128xf32>
    %264 = vector.broadcast %3 : vector<128x1xf32> to vector<128x128xf32>
    %265 = arith.addf %263, %264 : vector<128x128xf32>
    %266 = vector.extract_strided_slice %265 {offsets = [0, 0], sizes = [32, 128], strides = [1, 1]} : vector<128x128xf32> to vector<32x128xf32>
    %267 = arith.negf %266 : vector<32x128xf32>
    %268 = math.exp %267 : vector<32x128xf32>
    %cst_80 = arith.constant 1.000000e+00 : f32
    %269 = vector.broadcast %cst_80 : f32 to vector<32x128xf32>
    %270 = arith.addf %269, %268 : vector<32x128xf32>
    %271 = arith.divf %269, %270 : vector<32x128xf32>
    %272 = vector.extract_strided_slice %265 {offsets = [32, 0], sizes = [32, 128], strides = [1, 1]} : vector<128x128xf32> to vector<32x128xf32>
    %273 = arith.negf %272 : vector<32x128xf32>
    %274 = math.exp %273 : vector<32x128xf32>
    %cst_81 = arith.constant 1.000000e+00 : f32
    %275 = vector.broadcast %cst_81 : f32 to vector<32x128xf32>
    %276 = arith.addf %275, %274 : vector<32x128xf32>
    %277 = arith.divf %275, %276 : vector<32x128xf32>
    %278 = vector.extract_strided_slice %265 {offsets = [64, 0], sizes = [32, 128], strides = [1, 1]} : vector<128x128xf32> to vector<32x128xf32>
    %279 = math.tanh %278 : vector<32x128xf32>
    %280 = vector.extract_strided_slice %265 {offsets = [96, 0], sizes = [32, 128], strides = [1, 1]} : vector<128x128xf32> to vector<32x128xf32>
    %281 = arith.negf %280 : vector<32x128xf32>
    %282 = math.exp %281 : vector<32x128xf32>
    %cst_82 = arith.constant 1.000000e+00 : f32
    %283 = vector.broadcast %cst_82 : f32 to vector<32x128xf32>
    %284 = arith.addf %283, %282 : vector<32x128xf32>
    %285 = arith.divf %283, %284 : vector<32x128xf32>
    %286 = arith.mulf %277, %247 : vector<32x128xf32>
    %287 = arith.mulf %271, %279 : vector<32x128xf32>
    %288 = arith.addf %286, %287 : vector<32x128xf32>
    %289 = math.tanh %288 : vector<32x128xf32>
    %290 = arith.mulf %285, %289 : vector<32x128xf32>
    %291 = arith.addf %250, %290 : vector<32x128xf32>
    %c7_i32_83 = arith.constant 7 : i32
    %292 = arith.index_cast %c7_i32_83 : i32 to index
    %c0_84 = arith.constant 0 : index
    %c0_85 = arith.constant 0 : index
    %293 = vector.load %arg1[%292, %c0_84, %c0_85] : memref<8x32x128xbf16, #tpu.memory_space<vmem>>, vector<1x32x128xbf16>
    %294 = vector.shape_cast %293 : vector<1x32x128xbf16> to vector<32x128xbf16>
    %c7_i32_86 = arith.constant 7 : i32
    %295 = arith.subi %c7_i32_86, %c7_i32_83 : i32
    %296 = arith.index_cast %295 : i32 to index
    %c0_87 = arith.constant 0 : index
    %c0_88 = arith.constant 0 : index
    %297 = vector.load %arg1[%296, %c0_87, %c0_88] : memref<8x32x128xbf16, #tpu.memory_space<vmem>>, vector<1x32x128xbf16>
    %298 = vector.shape_cast %297 : vector<1x32x128xbf16> to vector<32x128xbf16>
    %cst_89 = arith.constant dense<0.000000e+00> : vector<128x128xf32>
    %299 = tpu.matmul %0, %294, %cst_89 {dimension_numbers = #tpu.dot_dimension_numbers<[1], [0], [0], [1], [0, 0, 1, 1], [], []>} : vector<128x32xbf16>, vector<32x128xbf16>, vector<128x128xf32> -> vector<128x128xf32>
    %cst_90 = arith.constant dense<0.000000e+00> : vector<128x128xf32>
    %300 = tpu.matmul %1, %298, %cst_90 {dimension_numbers = #tpu.dot_dimension_numbers<[1], [0], [0], [1], [0, 0, 1, 1], [], []>} : vector<128x32xbf16>, vector<32x128xbf16>, vector<128x128xf32> -> vector<128x128xf32>
    %301 = arith.addf %299, %300 : vector<128x128xf32>
    %302 = arith.truncf %290 : vector<32x128xf32> to vector<32x128xbf16>
    %cst_91 = arith.constant dense<0.000000e+00> : vector<128x128xf32>
    %303 = tpu.matmul %2, %302, %cst_91 {dimension_numbers = #tpu.dot_dimension_numbers<[1], [0], [0], [1], [0, 0, 1, 1], [], []>} : vector<128x32xbf16>, vector<32x128xbf16>, vector<128x128xf32> -> vector<128x128xf32>
    %304 = arith.addf %301, %303 : vector<128x128xf32>
    %305 = vector.broadcast %3 : vector<128x1xf32> to vector<128x128xf32>
    %306 = arith.addf %304, %305 : vector<128x128xf32>
    %307 = vector.extract_strided_slice %306 {offsets = [0, 0], sizes = [32, 128], strides = [1, 1]} : vector<128x128xf32> to vector<32x128xf32>
    %308 = arith.negf %307 : vector<32x128xf32>
    %309 = math.exp %308 : vector<32x128xf32>
    %cst_92 = arith.constant 1.000000e+00 : f32
    %310 = vector.broadcast %cst_92 : f32 to vector<32x128xf32>
    %311 = arith.addf %310, %309 : vector<32x128xf32>
    %312 = arith.divf %310, %311 : vector<32x128xf32>
    %313 = vector.extract_strided_slice %306 {offsets = [32, 0], sizes = [32, 128], strides = [1, 1]} : vector<128x128xf32> to vector<32x128xf32>
    %314 = arith.negf %313 : vector<32x128xf32>
    %315 = math.exp %314 : vector<32x128xf32>
    %cst_93 = arith.constant 1.000000e+00 : f32
    %316 = vector.broadcast %cst_93 : f32 to vector<32x128xf32>
    %317 = arith.addf %316, %315 : vector<32x128xf32>
    %318 = arith.divf %316, %317 : vector<32x128xf32>
    %319 = vector.extract_strided_slice %306 {offsets = [64, 0], sizes = [32, 128], strides = [1, 1]} : vector<128x128xf32> to vector<32x128xf32>
    %320 = math.tanh %319 : vector<32x128xf32>
    %321 = vector.extract_strided_slice %306 {offsets = [96, 0], sizes = [32, 128], strides = [1, 1]} : vector<128x128xf32> to vector<32x128xf32>
    %322 = arith.negf %321 : vector<32x128xf32>
    %323 = math.exp %322 : vector<32x128xf32>
    %cst_94 = arith.constant 1.000000e+00 : f32
    %324 = vector.broadcast %cst_94 : f32 to vector<32x128xf32>
    %325 = arith.addf %324, %323 : vector<32x128xf32>
    %326 = arith.divf %324, %325 : vector<32x128xf32>
    %327 = arith.mulf %318, %288 : vector<32x128xf32>
    %328 = arith.mulf %312, %320 : vector<32x128xf32>
    %329 = arith.addf %327, %328 : vector<32x128xf32>
    %330 = math.tanh %329 : vector<32x128xf32>
    %331 = arith.mulf %326, %330 : vector<32x128xf32>
    %332 = arith.addf %291, %331 : vector<32x128xf32>
    %c8_i32 = arith.constant 8 : i32
    %cst_95 = arith.constant 1.250000e-01 : f32
    %333 = vector.broadcast %cst_95 : f32 to vector<32x128xf32>
    %334 = arith.mulf %332, %333 : vector<32x128xf32>
    %c0_96 = arith.constant 0 : index
    %c0_97 = arith.constant 0 : index
    %335 = vector.load %arg6[%c0_96, %c0_97] : memref<32x128xf32, #tpu.memory_space<vmem>>, vector<32x128xf32>
    tpu.vector_store %arg6[%c0_96, %c0_97], %334 {strides = array<i32>} : memref<32x128xf32, #tpu.memory_space<vmem>>, vector<32x128xf32>,
    return
  }
  func.func @transform_0(%arg0: i32) -> (i32, i32, i32) {
    %c0_i32 = arith.constant 0 : i32
    %c0_i32_0 = arith.constant 0 : i32
    %c0_i32_1 = arith.constant 0 : i32
    return %c0_i32, %c0_i32_0, %arg0 : i32, i32, i32
  }
  func.func @transform_1(%arg0: i32) -> (i32, i32) {
    %c0_i32 = arith.constant 0 : i32
    %c0_i32_0 = arith.constant 0 : i32
    %c0_i32_1 = arith.constant 0 : i32
    return %c0_i32, %c0_i32_0 : i32, i32
  }
  func.func @transform_2(%arg0: i32) -> (i32, i32) {
    %c0_i32 = arith.constant 0 : i32
    %c0_i32_0 = arith.constant 0 : i32
    %c0_i32_1 = arith.constant 0 : i32
    return %c0_i32, %c0_i32_0 : i32, i32
  }
  func.func @transform_3(%arg0: i32) -> (i32, i32) {
    %c0_i32 = arith.constant 0 : i32
    %c0_i32_0 = arith.constant 0 : i32
    %c0_i32_1 = arith.constant 0 : i32
    return %c0_i32, %c0_i32_0 : i32, i32
  }
  func.func @transform_4(%arg0: i32) -> (i32, i32) {
    %c0_i32 = arith.constant 0 : i32
    %c0_i32_0 = arith.constant 0 : i32
    %c0_i32_1 = arith.constant 0 : i32
    return %c0_i32, %c0_i32_0 : i32, i32
  }
  func.func @transform_5(%arg0: i32) -> (i32, i32) {
    %c0_i32 = arith.constant 0 : i32
    %c0_i32_0 = arith.constant 0 : i32
    return %c0_i32, %arg0 : i32, i32
  }
}

</mosaic_0001>

<llo_original>
// kernel: tpu_custom_call.1
$region0: #{tpu_custom_call.1}
  #allocation0 [shape = 'u32[]', space=smem, size = 0x4, offset = 0x4, fixed_abs, tag = 'smem constant byte address 0x4 - core index']
  #allocation1 [shape = 'u32[144,128]{1,0:T(1,128)}', space=vmem, size = 0x12000, scoped, tag = 'internal scratch']
  %s0 = inlined_call_operand.vmem [shape: bf16[8,32,128], index: 0, kind: input, shape index: {}]
  %s1 = inlined_call_operand.vmem [shape: bf16[128,32], index: 1, kind: input, shape index: {}]
  %s2 = inlined_call_operand.vmem [shape: bf16[128,32], index: 2, kind: input, shape index: {}]
  %s3 = inlined_call_operand.vmem [shape: bf16[128,32], index: 3, kind: input, shape index: {}]
  %s4 = inlined_call_operand.vmem [shape: f32[128,1], index: 4, kind: input, shape index: {}]
  %s5 = inlined_call_operand.hbm [shape: f32[32,128], index: 5, kind: output, shape index: {}]
  %s6 = sld [smem:[#allocation0]]
  $region30: #{tpu_custom_call.1} parent=0
    _
  %s8 = ssub.s32 1, %s6
  %s9 = scalar_select 0, %s8, %s6
  $region1: #{tpu_custom_call.1} parent=0
    #allocation2 [shape = 'u8[16384]{0}', space=vmem, size = 0x4000, scoped, tag = 'output window, operand 0, single buffered']
    #allocation3 [shape = 's32[1]{0}', space=sflag, size = 0x4, scoped, tag = 'scoped memory for tpu_custom_call.1']
    %10 = vsyncpa [#allocation3], 0
    // Predicated region
    $region2: #{tpu_custom_call.1} parent=1 // pred_check
      _
    $region3: #{tpu_custom_call.1} parent=1 // pred_check_branch
      %12 = sbr.rel (0) target = $region5
    $region4: #{tpu_custom_call.1} parent=1 // pred_region
      _
    $region5: #{tpu_custom_call.1} parent=1 // pred_fallthru
      _
    // Predicated region
    $region6: #{tpu_custom_call.1} parent=1 // pred_check
      _
    $region7: #{tpu_custom_call.1} parent=1 // pred_check_branch
      %14 = sbr.rel (0) target = $region9
    $region8: #{tpu_custom_call.1} parent=1 // pred_region
      _
    $region9: #{tpu_custom_call.1} parent=1 // pred_fallthru
      _
    // Predicated region
    $region10: #{tpu_custom_call.1} parent=1 // pred_check
      _
    $region11: #{tpu_custom_call.1} parent=1 // pred_check_branch
      %16 = sbr.rel (0) target = $region13
    $region12: #{tpu_custom_call.1} parent=1 // pred_region
      _
    $region13: #{tpu_custom_call.1} parent=1 // pred_fallthru
      _
    // Predicated region
    $region14: #{tpu_custom_call.1} parent=1 // pred_check
      _
    $region15: #{tpu_custom_call.1} parent=1 // pred_check_branch
      %18 = sbr.rel (0) target = $region17
    $region16: #{tpu_custom_call.1} parent=1 // pred_region
      _
    $region17: #{tpu_custom_call.1} parent=1 // pred_fallthru
      _
    // Predicated region
    $region18: #{tpu_custom_call.1} parent=1 // pred_check
      _
    $region19: #{tpu_custom_call.1} parent=1 // pred_check_branch
      %20 = sbr.rel (0) target = $region21
    $region20: #{tpu_custom_call.1} parent=1 // pred_region
      _
    $region21: #{tpu_custom_call.1} parent=1 // pred_fallthru
      _
    %v22 = vld [vmem:[%s1] sm:$0xf]
    %v23 = vld [vmem:[%s1 + $0x4] sm:$0xf]
    %v24 = vld [vmem:[%s1 + $0x8] sm:$0xf]
    %v25 = vld [vmem:[%s1 + $0xc] sm:$0xf]
    %v26 = vld [vmem:[%s1 + $0x10] sm:$0xf]
    %v27 = vld [vmem:[%s1 + $0x14] sm:$0xf]
    %v28 = vld [vmem:[%s1 + $0x18] sm:$0xf]
    %v29 = vld [vmem:[%s1 + $0x1c] sm:$0xf]
    %v30 = vld [vmem:[%s1 + $0x20] sm:$0xf]
    %v31 = vld [vmem:[%s1 + $0x24] sm:$0xf]
    %v32 = vld [vmem:[%s1 + $0x28] sm:$0xf]
    %v33 = vld [vmem:[%s1 + $0x2c] sm:$0xf]
    %v34 = vld [vmem:[%s1 + $0x30] sm:$0xf]
    %v35 = vld [vmem:[%s1 + $0x34] sm:$0xf]
    %v36 = vld [vmem:[%s1 + $0x38] sm:$0xf]
    %v37 = vld [vmem:[%s1 + $0x3c] sm:$0xf]
    %v38 = vld [vmem:[%s2] sm:$0xf]
    %v39 = vld [vmem:[%s2 + $0x4] sm:$0xf]
    %v40 = vld [vmem:[%s2 + $0x8] sm:$0xf]
    %v41 = vld [vmem:[%s2 + $0xc] sm:$0xf]
    %v42 = vld [vmem:[%s2 + $0x10] sm:$0xf]
    %v43 = vld [vmem:[%s2 + $0x14] sm:$0xf]
    %v44 = vld [vmem:[%s2 + $0x18] sm:$0xf]
    %v45 = vld [vmem:[%s2 + $0x1c] sm:$0xf]
    %v46 = vld [vmem:[%s2 + $0x20] sm:$0xf]
    %v47 = vld [vmem:[%s2 + $0x24] sm:$0xf]
    %v48 = vld [vmem:[%s2 + $0x28] sm:$0xf]
    %v49 = vld [vmem:[%s2 + $0x2c] sm:$0xf]
    %v50 = vld [vmem:[%s2 + $0x30] sm:$0xf]
    %v51 = vld [vmem:[%s2 + $0x34] sm:$0xf]
    %v52 = vld [vmem:[%s2 + $0x38] sm:$0xf]
    %v53 = vld [vmem:[%s2 + $0x3c] sm:$0xf]
    %v54 = vld [vmem:[%s3] sm:$0xf]
    %v55 = vld [vmem:[%s3 + $0x4] sm:$0xf]
    %v56 = vld [vmem:[%s3 + $0x8] sm:$0xf]
    %v57 = vld [vmem:[%s3 + $0xc] sm:$0xf]
    %v58 = vld [vmem:[%s3 + $0x10] sm:$0xf]
    %v59 = vld [vmem:[%s3 + $0x14] sm:$0xf]
    %v60 = vld [vmem:[%s3 + $0x18] sm:$0xf]
    %v61 = vld [vmem:[%s3 + $0x1c] sm:$0xf]
    %v62 = vld [vmem:[%s3 + $0x20] sm:$0xf]
    %v63 = vld [vmem:[%s3 + $0x24] sm:$0xf]
    %v64 = vld [vmem:[%s3 + $0x28] sm:$0xf]
    %v65 = vld [vmem:[%s3 + $0x2c] sm:$0xf]
    %v66 = vld [vmem:[%s3 + $0x30] sm:$0xf]
    %v67 = vld [vmem:[%s3 + $0x34] sm:$0xf]
    %v68 = vld [vmem:[%s3 + $0x38] sm:$0xf]
    %v69 = vld [vmem:[%s3 + $0x3c] sm:$0xf]
    %v70 = vld [vmem:[%s4] sm:$0xff]
    %v71 = vld [vmem:[%s4 + $0x8] sm:$0xff]
    %v72 = vld [vmem:[%s4 + $0x10] sm:$0xff]
    %v73 = vld [vmem:[%s4 + $0x18] sm:$0xff]
    %v74 = vld [vmem:[%s4 + $0x20] sm:$0xff]
    %v75 = vld [vmem:[%s4 + $0x28] sm:$0xff]
    %v76 = vld [vmem:[%s4 + $0x30] sm:$0xff]
    %v77 = vld [vmem:[%s4 + $0x38] sm:$0xff]
    %v78 = vld [vmem:[%s4 + $0x40] sm:$0xff]
    %v79 = vld [vmem:[%s4 + $0x48] sm:$0xff]
    %v80 = vld [vmem:[%s4 + $0x50] sm:$0xff]
    %v81 = vld [vmem:[%s4 + $0x58] sm:$0xff]
    %v82 = vld [vmem:[%s4 + $0x60] sm:$0xff]
    %v83 = vld [vmem:[%s4 + $0x68] sm:$0xff]
    %v84 = vld [vmem:[%s4 + $0x70] sm:$0xff]
    %v85 = vld [vmem:[%s4 + $0x78] sm:$0xff]
    %v86 = vld [vmem:[%s0] sm:$0xf]
    %v87 = vld [vmem:[%s0 + $0x4] sm:$0xf]
    %v88 = vld [vmem:[%s0 + $0x8] sm:$0xf]
    %v89 = vld [vmem:[%s0 + $0xc] sm:$0xf]
    %s90 = scalar_lea.vmem %s0, 112
    %v91 = vld [vmem:[%s90] sm:$0xf]
    %v92 = vld [vmem:[%s90 + $0x4] sm:$0xf]
    %v93 = vld [vmem:[%s90 + $0x8] sm:$0xf]
    %v94 = vld [vmem:[%s90 + $0xc] sm:$0xf]
    %v111 = vunpack.c.l.b16 %v38
    %v112 = vunpack.c.l.b16 %v39
    %v113 = vunpack.c.l.b16 %v40
    %v114 = vunpack.c.l.b16 %v41
    %v115 = vunpack.c.l.b16 %v42
    %v116 = vunpack.c.l.b16 %v43
    %v117 = vunpack.c.l.b16 %v44
    %v118 = vunpack.c.l.b16 %v45
    %v119 = vunpack.c.l.b16 %v46
    %v120 = vunpack.c.l.b16 %v47
    %v121 = vunpack.c.l.b16 %v48
    %v122 = vunpack.c.l.b16 %v49
    %v123 = vunpack.c.l.b16 %v50
    %v124 = vunpack.c.l.b16 %v51
    %v125 = vunpack.c.l.b16 %v52
    %v126 = vunpack.c.l.b16 %v53
    %v127 = vpack.c.b16 %v112, %v111
    %v128 = vpack.c.b16 %v114, %v113
    %v129 = vpack.c.b16 %v116, %v115
    %v130 = vpack.c.b16 %v118, %v117
    %v131 = vpack.c.b16 %v120, %v119
    %v132 = vpack.c.b16 %v122, %v121
    %v133 = vpack.c.b16 %v124, %v123
    %v134 = vpack.c.b16 %v126, %v125
    %v139 = vunpack.c.l.b16 %v91
    %v140 = vunpack.c.l.b16 %v92
    %v141 = vunpack.c.l.b16 %v93
    %v142 = vunpack.c.l.b16 %v94
    %v143 = vpack.c.b16 %v140, %v139
    %v144 = vpack.c.b16 %v142, %v141
    %vm147 = vcmask 261120
    %v149 = vsel %vm147, %v127, 0
    %v152 = vsel %vm147, %v128, 0
    %v155 = vsel %vm147, %v129, 0
    %v158 = vsel %vm147, %v130, 0
    %v161 = vsel %vm147, %v131, 0
    %v164 = vsel %vm147, %v132, 0
    %v167 = vsel %vm147, %v133, 0
    %v170 = vsel %vm147, %v134, 0
    %172 = vmatprep.subr.bf16.mxu0 0
    %173 = vmatpush1.bf16.msra.mxu0 %v143
    %174 = vmatprep.subr.bf16.mxu0 0
    %175 = vmatpush1.bf16.msra.mxu0 %v144
    %176 = vmatprep.subr.bf16.mxu0 0
    %177 = vmatpush1.bf16.msra.mxu0 0
    %178 = vmatprep.subr.bf16.mxu0 0
    %179 = vmatpush1.bf16.msra.mxu0 0
    %180 = vmatprep.subr.bf16.mxu0 0
    %181 = vmatpush1.bf16.msra.mxu0 0
    %182 = vmatprep.subr.bf16.mxu0 0
    %183 = vmatpush1.bf16.msra.mxu0 0
    %184 = vmatprep.subr.bf16.mxu0 0
    %185 = vmatpush1.bf16.msra.mxu0 0
    %186 = vmatprep.subr.bf16.mxu0 0
    %187 = vmatpush1.bf16.msra.mxu0 0
    %188 = vmatprep.subr.bf16.mxu0 0
    %189 = vmatpush1.bf16.msra.mxu0 0
    %190 = vmatprep.subr.bf16.mxu0 0
    %191 = vmatpush1.bf16.msra.mxu0 0
    %192 = vmatprep.subr.bf16.mxu0 0
    %193 = vmatpush1.bf16.msra.mxu0 0
    %194 = vmatprep.subr.bf16.mxu0 0
    %195 = vmatpush1.bf16.msra.mxu0 0
    %196 = vmatprep.subr.bf16.mxu0 0
    %197 = vmatpush1.bf16.msra.mxu0 0
    %198 = vmatprep.subr.bf16.mxu0 0
    %199 = vmatpush1.bf16.msra.mxu0 0
    %200 = vmatprep.subr.bf16.mxu0 0
    %201 = vmatpush1.bf16.msra.mxu0 0
    %202 = vmatprep.subr.bf16.mxu0 0
    %203 = vmatpush1.bf16.msra.mxu0 0
    %204 = vmatprep.mubr.bf16.mxu0 0
    %205 = vmatmul.mubr.bf16.gmra.mrb[0].mxu0 %v149
    %v206 = vpop.f32.mrb[0].mxu0
    %v207 = vadd.f32 0.0, %v206
    %v208 = vpop.f32.mrb[0].mxu0
    %v209 = vpop.f32.mrb[0].mxu0
    %v210 = vadd.f32 0.0, %v209
    %v211 = vpop.f32.mrb[0].mxu0
    %212 = vmatprep.mubr.bf16.mxu0 0
    %213 = vmatmul.mubr.bf16.gmra.mrb[0].mxu0 %v152
    %v214 = vpop.f32.mrb[0].mxu0
    %v215 = vadd.f32 0.0, %v214
    %v216 = vpop.f32.mrb[0].mxu0
    %v217 = vpop.f32.mrb[0].mxu0
    %v218 = vadd.f32 0.0, %v217
    %v219 = vpop.f32.mrb[0].mxu0
    %220 = vmatprep.mubr.bf16.mxu0 0
    %221 = vmatmul.mubr.bf16.gmra.mrb[0].mxu0 %v155
    %v222 = vpop.f32.mrb[0].mxu0
    %v223 = vadd.f32 0.0, %v222
    %v224 = vpop.f32.mrb[0].mxu0
    %v225 = vpop.f32.mrb[0].mxu0
    %v226 = vadd.f32 0.0, %v225
    %v227 = vpop.f32.mrb[0].mxu0
    %228 = vmatprep.mubr.bf16.mxu0 0
    %229 = vmatmul.mubr.bf16.gmra.mrb[0].mxu0 %v158
    %v230 = vpop.f32.mrb[0].mxu0
    %v231 = vadd.f32 0.0, %v230
    %v232 = vpop.f32.mrb[0].mxu0
    %v233 = vpop.f32.mrb[0].mxu0
    %v234 = vadd.f32 0.0, %v233
    %v235 = vpop.f32.mrb[0].mxu0
    %236 = vmatprep.mubr.bf16.mxu0 0
    %237 = vmatmul.mubr.bf16.gmra.mrb[0].mxu0 %v161
    %v238 = vpop.f32.mrb[0].mxu0
    %v239 = vadd.f32 0.0, %v238
    %v240 = vpop.f32.mrb[0].mxu0
    %v241 = vpop.f32.mrb[0].mxu0
    %v242 = vadd.f32 0.0, %v241
    %v243 = vpop.f32.mrb[0].mxu0
    %244 = vmatprep.mubr.bf16.mxu0 0
    %245 = vmatmul.mubr.bf16.gmra.mrb[0].mxu0 %v164
    %v246 = vpop.f32.mrb[0].mxu0
    %v247 = vadd.f32 0.0, %v246
    %v248 = vpop.f32.mrb[0].mxu0
    %v249 = vpop.f32.mrb[0].mxu0
    %v250 = vadd.f32 0.0, %v249
    %v251 = vpop.f32.mrb[0].mxu0
    %252 = vmatprep.mubr.bf16.mxu0 0
    %253 = vmatmul.mubr.bf16.gmra.mrb[0].mxu0 %v167
    %v254 = vpop.f32.mrb[0].mxu0
    %v255 = vadd.f32 0.0, %v254
    %v256 = vpop.f32.mrb[0].mxu0
    %v257 = vpop.f32.mrb[0].mxu0
    %v258 = vadd.f32 0.0, %v257
    %v259 = vpop.f32.mrb[0].mxu0
    %260 = vmatprep.mubr.bf16.mxu0 0
    %261 = vmatmul.mubr.bf16.gmra.mrb[0].mxu0 %v170
    %v262 = vpop.f32.mrb[0].mxu0
    %v263 = vadd.f32 0.0, %v262
    %v264 = vpop.f32.mrb[0].mxu0
    %v265 = vpop.f32.mrb[0].mxu0
    %v266 = vadd.f32 0.0, %v265
    %v267 = vpop.f32.mrb[0].mxu0
    %268 = vdwg.mxu0
    %v285 = vunpack.c.l.b16 %v22
    %v286 = vunpack.c.l.b16 %v23
    %v287 = vunpack.c.l.b16 %v24
    %v288 = vunpack.c.l.b16 %v25
    %v289 = vunpack.c.l.b16 %v26
    %v290 = vunpack.c.l.b16 %v27
    %v291 = vunpack.c.l.b16 %v28
    %v292 = vunpack.c.l.b16 %v29
    %v293 = vunpack.c.l.b16 %v30
    %v294 = vunpack.c.l.b16 %v31
    %v295 = vunpack.c.l.b16 %v32
    %v296 = vunpack.c.l.b16 %v33
    %v297 = vunpack.c.l.b16 %v34
    %v298 = vunpack.c.l.b16 %v35
    %v299 = vunpack.c.l.b16 %v36
    %v300 = vunpack.c.l.b16 %v37
    %v301 = vpack.c.b16 %v286, %v285
    %v302 = vpack.c.b16 %v288, %v287
    %v303 = vpack.c.b16 %v290, %v289
    %v304 = vpack.c.b16 %v292, %v291
    %v305 = vpack.c.b16 %v294, %v293
    %v306 = vpack.c.b16 %v296, %v295
    %v307 = vpack.c.b16 %v298, %v297
    %v308 = vpack.c.b16 %v300, %v299
    %v313 = vunpack.c.l.b16 %v86
    %v314 = vunpack.c.l.b16 %v87
    %v315 = vunpack.c.l.b16 %v88
    %v316 = vunpack.c.l.b16 %v89
    %v317 = vpack.c.b16 %v314, %v313
    %v318 = vpack.c.b16 %v316, %v315
    %v322 = vsel %vm147, %v301, 0
    %v325 = vsel %vm147, %v302, 0
    %v328 = vsel %vm147, %v303, 0
    %v331 = vsel %vm147, %v304, 0
    %v334 = vsel %vm147, %v305, 0
    %v337 = vsel %vm147, %v306, 0
    %v340 = vsel %vm147, %v307, 0
    %v343 = vsel %vm147, %v308, 0
    %345 = vmatprep.subr.bf16.mxu0 0
    %346 = vmatpush1.bf16.msra.mxu0 %v317
    %347 = vmatprep.subr.bf16.mxu0 0
    %348 = vmatpush1.bf16.msra.mxu0 %v318
    %349 = vmatprep.subr.bf16.mxu0 0
    %350 = vmatpush1.bf16.msra.mxu0 0
    %351 = vmatprep.subr.bf16.mxu0 0
    %352 = vmatpush1.bf16.msra.mxu0 0
    %353 = vmatprep.subr.bf16.mxu0 0
    %354 = vmatpush1.bf16.msra.mxu0 0
    %355 = vmatprep.subr.bf16.mxu0 0
    %356 = vmatpush1.bf16.msra.mxu0 0
    %357 = vmatprep.subr.bf16.mxu0 0
    %358 = vmatpush1.bf16.msra.mxu0 0
    %359 = vmatprep.subr.bf16.mxu0 0
    %360 = vmatpush1.bf16.msra.mxu0 0
    %361 = vmatprep.subr.bf16.mxu0 0
    %362 = vmatpush1.bf16.msra.mxu0 0
    %363 = vmatprep.subr.bf16.mxu0 0
    %364 = vmatpush1.bf16.msra.mxu0 0
    %365 = vmatprep.subr.bf16.mxu0 0
    %366 = vmatpush1.bf16.msra.mxu0 0
    %367 = vmatprep.subr.bf16.mxu0 0
    %368 = vmatpush1.bf16.msra.mxu0 0
    %369 = vmatprep.subr.bf16.mxu0 0
    %370 = vmatpush1.bf16.msra.mxu0 0
    %371 = vmatprep.subr.bf16.mxu0 0
    %372 = vmatpush1.bf16.msra.mxu0 0
    %373 = vmatprep.subr.bf16.mxu0 0
    %374 = vmatpush1.bf16.msra.mxu0 0
    %375 = vmatprep.subr.bf16.mxu0 0
    %376 = vmatpush1.bf16.msra.mxu0 0
    %377 = vmatprep.mubr.bf16.mxu0 0
    %378 = vmatmul.mubr.bf16.gmra.mrb[0].mxu0 %v322
    %v379 = vpop.f32.mrb[0].mxu0
    %v380 = vadd.f32 %v207, %v379
    %v381 = vpop.f32.mrb[0].mxu0
    %v382 = vpop.f32.mrb[0].mxu0
    %v383 = vadd.f32 %v210, %v382
    %v384 = vpop.f32.mrb[0].mxu0
    %385 = vmatprep.mubr.bf16.mxu0 0
    %386 = vmatmul.mubr.bf16.gmra.mrb[0].mxu0 %v325
    %v387 = vpop.f32.mrb[0].mxu0
    %v388 = vadd.f32 %v215, %v387
    %v389 = vpop.f32.mrb[0].mxu0
    %v390 = vpop.f32.mrb[0].mxu0
    %v391 = vadd.f32 %v218, %v390
    %v392 = vpop.f32.mrb[0].mxu0
    %393 = vmatprep.mubr.bf16.mxu0 0
    %394 = vmatmul.mubr.bf16.gmra.mrb[0].mxu0 %v328
    %v395 = vpop.f32.mrb[0].mxu0
    %v396 = vadd.f32 %v223, %v395
    %v397 = vpop.f32.mrb[0].mxu0
    %v398 = vpop.f32.mrb[0].mxu0
    %v399 = vadd.f32 %v226, %v398
    %v400 = vpop.f32.mrb[0].mxu0
    %401 = vmatprep.mubr.bf16.mxu0 0
    %402 = vmatmul.mubr.bf16.gmra.mrb[0].mxu0 %v331
    %v403 = vpop.f32.mrb[0].mxu0
    %v404 = vadd.f32 %v231, %v403
    %v405 = vpop.f32.mrb[0].mxu0
    %v406 = vpop.f32.mrb[0].mxu0
    %v407 = vadd.f32 %v234, %v406
    %v408 = vpop.f32.mrb[0].mxu0
    %409 = vmatprep.mubr.bf16.mxu0 0
    %410 = vmatmul.mubr.bf16.gmra.mrb[0].mxu0 %v334
    %v411 = vpop.f32.mrb[0].mxu0
    %v412 = vadd.f32 %v239, %v411
    %v413 = vpop.f32.mrb[0].mxu0
    %v414 = vpop.f32.mrb[0].mxu0
    %v415 = vadd.f32 %v242, %v414
    %v416 = vpop.f32.mrb[0].mxu0
    %417 = vmatprep.mubr.bf16.mxu0 0
    %418 = vmatmul.mubr.bf16.gmra.mrb[0].mxu0 %v337
    %v419 = vpop.f32.mrb[0].mxu0
    %v420 = vadd.f32 %v247, %v419
    %v421 = vpop.f32.mrb[0].mxu0
    %v422 = vpop.f32.mrb[0].mxu0
    %v423 = vadd.f32 %v250, %v422
    %v424 = vpop.f32.mrb[0].mxu0
    %425 = vmatprep.mubr.bf16.mxu0 0
    %426 = vmatmul.mubr.bf16.gmra.mrb[0].mxu0 %v340
    %v427 = vpop.f32.mrb[0].mxu0
    %v428 = vadd.f32 %v255, %v427
    %v429 = vpop.f32.mrb[0].mxu0
    %v430 = vpop.f32.mrb[0].mxu0
    %v431 = vadd.f32 %v258, %v430
    %v432 = vpop.f32.mrb[0].mxu0
    %433 = vmatprep.mubr.bf16.mxu0 0
    %434 = vmatmul.mubr.bf16.gmra.mrb[0].mxu0 %v343
    %v435 = vpop.f32.mrb[0].mxu0
    %v436 = vadd.f32 %v263, %v435
    %v437 = vpop.f32.mrb[0].mxu0
    %v438 = vpop.f32.mrb[0].mxu0
    %v439 = vadd.f32 %v266, %v438
    %v440 = vpop.f32.mrb[0].mxu0
    %441 = vdwg.mxu0
    %v458 = vunpack.c.l.b16 %v54
    %v459 = vunpack.c.l.b16 %v55
    %v460 = vunpack.c.l.b16 %v56
    %v461 = vunpack.c.l.b16 %v57
    %v462 = vunpack.c.l.b16 %v58
    %v463 = vunpack.c.l.b16 %v59
    %v464 = vunpack.c.l.b16 %v60
    %v465 = vunpack.c.l.b16 %v61
    %v466 = vunpack.c.l.b16 %v62
    %v467 = vunpack.c.l.b16 %v63
    %v468 = vunpack.c.l.b16 %v64
    %v469 = vunpack.c.l.b16 %v65
    %v470 = vunpack.c.l.b16 %v66
    %v471 = vunpack.c.l.b16 %v67
    %v472 = vunpack.c.l.b16 %v68
    %v473 = vunpack.c.l.b16 %v69
    %v474 = vpack.c.b16 %v459, %v458
    %v475 = vpack.c.b16 %v461, %v460
    %v476 = vpack.c.b16 %v463, %v462
    %v477 = vpack.c.b16 %v465, %v464
    %v478 = vpack.c.b16 %v467, %v466
    %v479 = vpack.c.b16 %v469, %v468
    %v480 = vpack.c.b16 %v471, %v470
    %v481 = vpack.c.b16 %v473, %v472
    %v483 = vsel %vm147, %v474, 0
    %v486 = vsel %vm147, %v475, 0
    %v489 = vsel %vm147, %v476, 0
    %v492 = vsel %vm147, %v477, 0
    %v495 = vsel %vm147, %v478, 0
    %v498 = vsel %vm147, %v479, 0
    %v501 = vsel %vm147, %v480, 0
    %v504 = vsel %vm147, %v481, 0
    %506 = vmatprep.subr.bf16.mxu0 0
    %507 = vmatpush1.bf16.msra.mxu0 0
    %508 = vmatprep.subr.bf16.mxu0 0
    %509 = vmatpush1.bf16.msra.mxu0 0
    %510 = vmatprep.subr.bf16.mxu0 0
    %511 = vmatpush1.bf16.msra.mxu0 0
    %512 = vmatprep.subr.bf16.mxu0 0
    %513 = vmatpush1.bf16.msra.mxu0 0
    %514 = vmatprep.subr.bf16.mxu0 0
    %515 = vmatpush1.bf16.msra.mxu0 0
    %516 = vmatprep.subr.bf16.mxu0 0
    %517 = vmatpush1.bf16.msra.mxu0 0
    %518 = vmatprep.subr.bf16.mxu0 0
    %519 = vmatpush1.bf16.msra.mxu0 0
    %520 = vmatprep.subr.bf16.mxu0 0
    %521 = vmatpush1.bf16.msra.mxu0 0
    %522 = vmatprep.subr.bf16.mxu0 0
    %523 = vmatpush1.bf16.msra.mxu0 0
    %524 = vmatprep.subr.bf16.mxu0 0
    %525 = vmatpush1.bf16.msra.mxu0 0
    %526 = vmatprep.subr.bf16.mxu0 0
    %527 = vmatpush1.bf16.msra.mxu0 0
    %528 = vmatprep.subr.bf16.mxu0 0
    %529 = vmatpush1.bf16.msra.mxu0 0
    %530 = vmatprep.subr.bf16.mxu0 0
    %531 = vmatpush1.bf16.msra.mxu0 0
    %532 = vmatprep.subr.bf16.mxu0 0
    %533 = vmatpush1.bf16.msra.mxu0 0
    %534 = vmatprep.subr.bf16.mxu0 0
    %535 = vmatpush1.bf16.msra.mxu0 0
    %536 = vmatprep.subr.bf16.mxu0 0
    %537 = vmatpush1.bf16.msra.mxu0 0
    %538 = vmatprep.mubr.bf16.mxu0 0
    %539 = vmatmul.mubr.bf16.gmra.mrb[0].mxu0 %v483
    %v540 = vpop.f32.mrb[0].mxu0
    %v541 = vadd.f32 0.0, %v540
    %v542 = vpop.f32.mrb[0].mxu0
    %v543 = vpop.f32.mrb[0].mxu0
    %v544 = vadd.f32 0.0, %v543
    %v545 = vpop.f32.mrb[0].mxu0
    %546 = vmatprep.mubr.bf16.mxu0 0
    %547 = vmatmul.mubr.bf16.gmra.mrb[0].mxu0 %v486
    %v548 = vpop.f32.mrb[0].mxu0
    %v549 = vadd.f32 0.0, %v548
    %v550 = vpop.f32.mrb[0].mxu0
    %v551 = vpop.f32.mrb[0].mxu0
    %v552 = vadd.f32 0.0, %v551
    %v553 = vpop.f32.mrb[0].mxu0
    %554 = vmatprep.mubr.bf16.mxu0 0
    %555 = vmatmul.mubr.bf16.gmra.mrb[0].mxu0 %v489
    %v556 = vpop.f32.mrb[0].mxu0
    %v557 = vadd.f32 0.0, %v556
    %v558 = vpop.f32.mrb[0].mxu0
    %v559 = vpop.f32.mrb[0].mxu0
    %v560 = vadd.f32 0.0, %v559
    %v561 = vpop.f32.mrb[0].mxu0
    %562 = vmatprep.mubr.bf16.mxu0 0
    %563 = vmatmul.mubr.bf16.gmra.mrb[0].mxu0 %v492
    %v564 = vpop.f32.mrb[0].mxu0
    %v565 = vadd.f32 0.0, %v564
    %v566 = vpop.f32.mrb[0].mxu0
    %v567 = vpop.f32.mrb[0].mxu0
    %v568 = vadd.f32 0.0, %v567
    %v569 = vpop.f32.mrb[0].mxu0
    %570 = vmatprep.mubr.bf16.mxu0 0
    %571 = vmatmul.mubr.bf16.gmra.mrb[0].mxu0 %v495
    %v572 = vpop.f32.mrb[0].mxu0
    %v573 = vadd.f32 0.0, %v572
    %v574 = vpop.f32.mrb[0].mxu0
    %v575 = vpop.f32.mrb[0].mxu0
    %v576 = vadd.f32 0.0, %v575
    %v577 = vpop.f32.mrb[0].mxu0
    %578 = vmatprep.mubr.bf16.mxu0 0
    %579 = vmatmul.mubr.bf16.gmra.mrb[0].mxu0 %v498
    %v580 = vpop.f32.mrb[0].mxu0
    %v581 = vadd.f32 0.0, %v580
    %v582 = vpop.f32.mrb[0].mxu0
    %v583 = vpop.f32.mrb[0].mxu0
    %v584 = vadd.f32 0.0, %v583
    %v585 = vpop.f32.mrb[0].mxu0
    %586 = vmatprep.mubr.bf16.mxu0 0
    %587 = vmatmul.mubr.bf16.gmra.mrb[0].mxu0 %v501
    %v588 = vpop.f32.mrb[0].mxu0
    %v589 = vadd.f32 0.0, %v588
    %v590 = vpop.f32.mrb[0].mxu0
    %v591 = vpop.f32.mrb[0].mxu0
    %v592 = vadd.f32 0.0, %v591
    %v593 = vpop.f32.mrb[0].mxu0
    %594 = vmatprep.mubr.bf16.mxu0 0
    %595 = vmatmul.mubr.bf16.gmra.mrb[0].mxu0 %v504
    %v596 = vpop.f32.mrb[0].mxu0
    %v597 = vadd.f32 0.0, %v596
    %v598 = vpop.f32.mrb[0].mxu0
    %v599 = vpop.f32.mrb[0].mxu0
    %v600 = vadd.f32 0.0, %v599
    %v601 = vpop.f32.mrb[0].mxu0
    %602 = vdwg.mxu0
    %v603 = vadd.f32 %v380, %v541
    %v604 = vadd.f32 %v383, %v544
    %v605 = vadd.f32 %v388, %v549
    %v606 = vadd.f32 %v391, %v552
    %v607 = vadd.f32 %v396, %v557
    %v608 = vadd.f32 %v399, %v560
    %v609 = vadd.f32 %v404, %v565
    %v610 = vadd.f32 %v407, %v568
    %v611 = vadd.f32 %v412, %v573
    %v612 = vadd.f32 %v415, %v576
    %v613 = vadd.f32 %v420, %v581
    %v614 = vadd.f32 %v423, %v584
    %v615 = vadd.f32 %v428, %v589
    %v616 = vadd.f32 %v431, %v592
    %v617 = vadd.f32 %v436, %v597
    %v618 = vadd.f32 %v439, %v600
    %620 = vset.pattern.permute.xlu0 0
    %621 = vperm.xlu0 %620, %v70
    %v622 = vpop.permute.xlu0 %621
    %625 = vset.pattern.permute.xlu0 0
    %626 = vperm.xlu0 %625, %v71
    %v627 = vpop.permute.xlu0 %626
    %630 = vset.pattern.permute.xlu0 0
    %631 = vperm.xlu0 %630, %v72
    %v632 = vpop.permute.xlu0 %631
    %635 = vset.pattern.permute.xlu0 0
    %636 = vperm.xlu0 %635, %v73
    %v637 = vpop.permute.xlu0 %636
    %640 = vset.pattern.permute.xlu0 0
    %641 = vperm.xlu0 %640, %v74
    %v642 = vpop.permute.xlu0 %641
    %645 = vset.pattern.permute.xlu0 0
    %646 = vperm.xlu0 %645, %v75
    %v647 = vpop.permute.xlu0 %646
    %650 = vset.pattern.permute.xlu0 0
    %651 = vperm.xlu0 %650, %v76
    %v652 = vpop.permute.xlu0 %651
    %655 = vset.pattern.permute.xlu0 0
    %656 = vperm.xlu0 %655, %v77
    %v657 = vpop.permute.xlu0 %656
    %660 = vset.pattern.permute.xlu0 0
    %661 = vperm.xlu0 %660, %v78
    %v662 = vpop.permute.xlu0 %661
    %665 = vset.pattern.permute.xlu0 0
    %666 = vperm.xlu0 %665, %v79
    %v667 = vpop.permute.xlu0 %666
    %670 = vset.pattern.permute.xlu0 0
    %671 = vperm.xlu0 %670, %v80
    %v672 = vpop.permute.xlu0 %671
    %675 = vset.pattern.permute.xlu0 0
    %676 = vperm.xlu0 %675, %v81
    %v677 = vpop.permute.xlu0 %676
    %680 = vset.pattern.permute.xlu0 0
    %681 = vperm.xlu0 %680, %v82
    %v682 = vpop.permute.xlu0 %681
    %685 = vset.pattern.permute.xlu0 0
    %686 = vperm.xlu0 %685, %v83
    %v687 = vpop.permute.xlu0 %686
    %690 = vset.pattern.permute.xlu0 0
    %691 = vperm.xlu0 %690, %v84
    %v692 = vpop.permute.xlu0 %691
    %695 = vset.pattern.permute.xlu0 0
    %696 = vperm.xlu0 %695, %v85
    %v697 = vpop.permute.xlu0 %696
    %v699 = vadd.f32 %v603, %v622
    %v700 = vadd.f32 %v604, %v627
    %v701 = vadd.f32 %v605, %v632
    %v702 = vadd.f32 %v606, %v637
    %v703 = vadd.f32 %v607, %v642
    %v704 = vadd.f32 %v608, %v647
    %v705 = vadd.f32 %v609, %v652
    %v706 = vadd.f32 %v610, %v657
    %v707 = vadd.f32 %v611, %v662
    %v708 = vadd.f32 %v612, %v667
    %v709 = vadd.f32 %v613, %v672
    %v710 = vadd.f32 %v614, %v677
    %v711 = vadd.f32 %v615, %v682
    %v712 = vadd.f32 %v616, %v687
    %v713 = vadd.f32 %v617, %v692
    %v714 = vadd.f32 %v618, %v697
    %v715 = vxor.u32 %v699, 2147483648
    %v716 = vxor.u32 %v700, 2147483648
    %v717 = vxor.u32 %v701, 2147483648
    %v718 = vxor.u32 %v702, 2147483648
    %v719 = vmul.f32 %v715, 1.442695
    %v720 = vpow.pop %v719
    %v721 = vmul.f32 %v716, 1.442695
    %v722 = vpow.pop %v721
    %v723 = vmul.f32 %v717, 1.442695
    %v724 = vpow.pop %v723
    %v725 = vmul.f32 %v718, 1.442695
    %v726 = vpow.pop %v725
    %v727 = vadd.f32 %v720, 1.0
    %v728 = vadd.f32 %v722, 1.0
    %v729 = vadd.f32 %v724, 1.0
    %v730 = vadd.f32 %v726, 1.0
    %v731 = vrcp.pop %v727
    %v732 = vmul.f32 1.0, %v731
    %v733 = vrcp.pop %v728
    %v734 = vmul.f32 1.0, %v733
    %v735 = vrcp.pop %v729
    %v736 = vmul.f32 1.0, %v735
    %v737 = vrcp.pop %v730
    %v738 = vmul.f32 1.0, %v737
    %v739 = vxor.u32 %v703, 2147483648
    %v740 = vxor.u32 %v704, 2147483648
    %v741 = vxor.u32 %v705, 2147483648
    %v742 = vxor.u32 %v706, 2147483648
    %v743 = vmul.f32 %v739, 1.442695
    %v744 = vpow.pop %v743
    %v745 = vmul.f32 %v740, 1.442695
    %v746 = vpow.pop %v745
    %v747 = vmul.f32 %v741, 1.442695
    %v748 = vpow.pop %v747
    %v749 = vmul.f32 %v742, 1.442695
    %v750 = vpow.pop %v749
    %v751 = vadd.f32 %v744, 1.0
    %v752 = vadd.f32 %v746, 1.0
    %v753 = vadd.f32 %v748, 1.0
    %v754 = vadd.f32 %v750, 1.0
    %v755 = vrcp.pop %v751
    %v756 = vmul.f32 1.0, %v755
    %v757 = vrcp.pop %v752
    %v758 = vmul.f32 1.0, %v757
    %v759 = vrcp.pop %v753
    %v760 = vmul.f32 1.0, %v759
    %v761 = vrcp.pop %v754
    %v762 = vmul.f32 1.0, %v761
    %v763 = vtanh.pop %v707
    %v764 = vtanh.pop %v708
    %v765 = vtanh.pop %v709
    %v766 = vtanh.pop %v710
    %v767 = vxor.u32 %v711, 2147483648
    %v768 = vxor.u32 %v712, 2147483648
    %v769 = vxor.u32 %v713, 2147483648
    %v770 = vxor.u32 %v714, 2147483648
    %v771 = vmul.f32 %v767, 1.442695
    %v772 = vpow.pop %v771
    %v773 = vmul.f32 %v768, 1.442695
    %v774 = vpow.pop %v773
    %v775 = vmul.f32 %v769, 1.442695
    %v776 = vpow.pop %v775
    %v777 = vmul.f32 %v770, 1.442695
    %v778 = vpow.pop %v777
    %v779 = vadd.f32 %v772, 1.0
    %v780 = vadd.f32 %v774, 1.0
    %v781 = vadd.f32 %v776, 1.0
    %v782 = vadd.f32 %v778, 1.0
    %v783 = vrcp.pop %v779
    %v784 = vmul.f32 1.0, %v783
    %v785 = vrcp.pop %v780
    %v786 = vmul.f32 1.0, %v785
    %v787 = vrcp.pop %v781
    %v788 = vmul.f32 1.0, %v787
    %v789 = vrcp.pop %v782
    %v790 = vmul.f32 1.0, %v789
    %v791 = vmul.f32 %v756, 0.0
    %v792 = vmul.f32 %v758, 0.0
    %v793 = vmul.f32 %v760, 0.0
    %v794 = vmul.f32 %v762, 0.0
    %v795 = vmul.f32 %v732, %v763
    %v796 = vmul.f32 %v734, %v764
    %v797 = vmul.f32 %v736, %v765
    %v798 = vmul.f32 %v738, %v766
    %v799 = vadd.f32 %v791, %v795
    %v800 = vadd.f32 %v792, %v796
    %v801 = vadd.f32 %v793, %v797
    %v802 = vadd.f32 %v794, %v798
    %v803 = vtanh.pop %v799
    %v804 = vtanh.pop %v800
    %v805 = vtanh.pop %v801
    %v806 = vtanh.pop %v802
    %v807 = vmul.f32 %v784, %v803
    %v808 = vmul.f32 %v786, %v804
    %v809 = vmul.f32 %v788, %v805
    %v810 = vmul.f32 %v790, %v806
    %v811 = vadd.f32 %v807, 0.0
    %v812 = vadd.f32 %v808, 0.0
    %v813 = vadd.f32 %v809, 0.0
    %v814 = vadd.f32 %v810, 0.0
    %s815 = scalar_lea.vmem %s0, 16
    %v816 = vld [vmem:[%s815] sm:$0xf]
    %v817 = vld [vmem:[%s815 + $0x4] sm:$0xf]
    %v818 = vld [vmem:[%s815 + $0x8] sm:$0xf]
    %v819 = vld [vmem:[%s815 + $0xc] sm:$0xf]
    %s820 = scalar_lea.vmem %s0, 96
    %v821 = vld [vmem:[%s820] sm:$0xf]
    %v822 = vld [vmem:[%s820 + $0x4] sm:$0xf]
    %v823 = vld [vmem:[%s820 + $0x8] sm:$0xf]
    %v824 = vld [vmem:[%s820 + $0xc] sm:$0xf]
    %v829 = vunpack.c.l.b16 %v821
    %v830 = vunpack.c.l.b16 %v822
    %v831 = vunpack.c.l.b16 %v823
    %v832 = vunpack.c.l.b16 %v824
    %v833 = vpack.c.b16 %v830, %v829
    %v834 = vpack.c.b16 %v832, %v831
    %837 = vmatprep.subr.bf16.mxu0 0
    %838 = vmatpush1.bf16.msra.mxu0 %v833
    %839 = vmatprep.subr.bf16.mxu0 0
    %840 = vmatpush1.bf16.msra.mxu0 %v834
    %841 = vmatprep.subr.bf16.mxu0 0
    %842 = vmatpush1.bf16.msra.mxu0 0
    %843 = vmatprep.subr.bf16.mxu0 0
    %844 = vmatpush1.bf16.msra.mxu0 0
    %845 = vmatprep.subr.bf16.mxu0 0
    %846 = vmatpush1.bf16.msra.mxu0 0
    %847 = vmatprep.subr.bf16.mxu0 0
    %848 = vmatpush1.bf16.msra.mxu0 0
    %849 = vmatprep.subr.bf16.mxu0 0
    %850 = vmatpush1.bf16.msra.mxu0 0
    %851 = vmatprep.subr.bf16.mxu0 0
    %852 = vmatpush1.bf16.msra.mxu0 0
    %853 = vmatprep.subr.bf16.mxu0 0
    %854 = vmatpush1.bf16.msra.mxu0 0
    %855 = vmatprep.subr.bf16.mxu0 0
    %856 = vmatpush1.bf16.msra.mxu0 0
    %857 = vmatprep.subr.bf16.mxu0 0
    %858 = vmatpush1.bf16.msra.mxu0 0
    %859 = vmatprep.subr.bf16.mxu0 0
    %860 = vmatpush1.bf16.msra.mxu0 0
    %861 = vmatprep.subr.bf16.mxu0 0
    %862 = vmatpush1.bf16.msra.mxu0 0
    %863 = vmatprep.subr.bf16.mxu0 0
    %864 = vmatpush1.bf16.msra.mxu0 0
    %865 = vmatprep.subr.bf16.mxu0 0
    %866 = vmatpush1.bf16.msra.mxu0 0
    %867 = vmatprep.subr.bf16.mxu0 0
    %868 = vmatpush1.bf16.msra.mxu0 0
    %869 = vmatprep.mubr.bf16.mxu0 0
    %870 = vmatmul.mubr.bf16.gmra.mrb[0].mxu0 %v149
    %v871 = vpop.f32.mrb[0].mxu0
    %v872 = vadd.f32 0.0, %v871
    %v873 = vpop.f32.mrb[0].mxu0
    %v874 = vpop.f32.mrb[0].mxu0
    %v875 = vadd.f32 0.0, %v874
    %v876 = vpop.f32.mrb[0].mxu0
    %877 = vmatprep.mubr.bf16.mxu0 0
    %878 = vmatmul.mubr.bf16.gmra.mrb[0].mxu0 %v152
    %v879 = vpop.f32.mrb[0].mxu0
    %v880 = vadd.f32 0.0, %v879
    %v881 = vpop.f32.mrb[0].mxu0
    %v882 = vpop.f32.mrb[0].mxu0
    %v883 = vadd.f32 0.0, %v882
    %v884 = vpop.f32.mrb[0].mxu0
    %885 = vmatprep.mubr.bf16.mxu0 0
    %886 = vmatmul.mubr.bf16.gmra.mrb[0].mxu0 %v155
    %v887 = vpop.f32.mrb[0].mxu0
    %v888 = vadd.f32 0.0, %v887
    %v889 = vpop.f32.mrb[0].mxu0
    %v890 = vpop.f32.mrb[0].mxu0
    %v891 = vadd.f32 0.0, %v890
    %v892 = vpop.f32.mrb[0].mxu0
    %893 = vmatprep.mubr.bf16.mxu0 0
    %894 = vmatmul.mubr.bf16.gmra.mrb[0].mxu0 %v158
    %v895 = vpop.f32.mrb[0].mxu0
    %v896 = vadd.f32 0.0, %v895
    %v897 = vpop.f32.mrb[0].mxu0
    %v898 = vpop.f32.mrb[0].mxu0
    %v899 = vadd.f32 0.0, %v898
    %v900 = vpop.f32.mrb[0].mxu0
    %901 = vmatprep.mubr.bf16.mxu0 0
    %902 = vmatmul.mubr.bf16.gmra.mrb[0].mxu0 %v161
    %v903 = vpop.f32.mrb[0].mxu0
    %v904 = vadd.f32 0.0, %v903
    %v905 = vpop.f32.mrb[0].mxu0
    %v906 = vpop.f32.mrb[0].mxu0
    %v907 = vadd.f32 0.0, %v906
    %v908 = vpop.f32.mrb[0].mxu0
    %909 = vmatprep.mubr.bf16.mxu0 0
    %910 = vmatmul.mubr.bf16.gmra.mrb[0].mxu0 %v164
    %v911 = vpop.f32.mrb[0].mxu0
    %v912 = vadd.f32 0.0, %v911
    %v913 = vpop.f32.mrb[0].mxu0
    %v914 = vpop.f32.mrb[0].mxu0
    %v915 = vadd.f32 0.0, %v914
    %v916 = vpop.f32.mrb[0].mxu0
    %917 = vmatprep.mubr.bf16.mxu0 0
    %918 = vmatmul.mubr.bf16.gmra.mrb[0].mxu0 %v167
    %v919 = vpop.f32.mrb[0].mxu0
    %v920 = vadd.f32 0.0, %v919
    %v921 = vpop.f32.mrb[0].mxu0
    %v922 = vpop.f32.mrb[0].mxu0
    %v923 = vadd.f32 0.0, %v922
    %v924 = vpop.f32.mrb[0].mxu0
    %925 = vmatprep.mubr.bf16.mxu0 0
    %926 = vmatmul.mubr.bf16.gmra.mrb[0].mxu0 %v170
    %v927 = vpop.f32.mrb[0].mxu0
    %v928 = vadd.f32 0.0, %v927
    %v929 = vpop.f32.mrb[0].mxu0
    %v930 = vpop.f32.mrb[0].mxu0
    %v931 = vadd.f32 0.0, %v930
    %v932 = vpop.f32.mrb[0].mxu0
    %933 = vdwg.mxu0
    %v938 = vunpack.c.l.b16 %v816
    %v939 = vunpack.c.l.b16 %v817
    %v940 = vunpack.c.l.b16 %v818
    %v941 = vunpack.c.l.b16 %v819
    %v942 = vpack.c.b16 %v939, %v938
    %v943 = vpack.c.b16 %v941, %v940
    %946 = vmatprep.subr.bf16.mxu0 0
    %947 = vmatpush1.bf16.msra.mxu0 %v942
    %948 = vmatprep.subr.bf16.mxu0 0
    %949 = vmatpush1.bf16.msra.mxu0 %v943
    %950 = vmatprep.subr.bf16.mxu0 0
    %951 = vmatpush1.bf16.msra.mxu0 0
    %952 = vmatprep.subr.bf16.mxu0 0
    %953 = vmatpush1.bf16.msra.mxu0 0
    %954 = vmatprep.subr.bf16.mxu0 0
    %955 = vmatpush1.bf16.msra.mxu0 0
    %956 = vmatprep.subr.bf16.mxu0 0
    %957 = vmatpush1.bf16.msra.mxu0 0
    %958 = vmatprep.subr.bf16.mxu0 0
    %959 = vmatpush1.bf16.msra.mxu0 0
    %960 = vmatprep.subr.bf16.mxu0 0
    %961 = vmatpush1.bf16.msra.mxu0 0
    %962 = vmatprep.subr.bf16.mxu0 0
    %963 = vmatpush1.bf16.msra.mxu0 0
    %964 = vmatprep.subr.bf16.mxu0 0
    %965 = vmatpush1.bf16.msra.mxu0 0
    %966 = vmatprep.subr.bf16.mxu0 0
    %967 = vmatpush1.bf16.msra.mxu0 0
    %968 = vmatprep.subr.bf16.mxu0 0
    %969 = vmatpush1.bf16.msra.mxu0 0
    %970 = vmatprep.subr.bf16.mxu0 0
    %971 = vmatpush1.bf16.msra.mxu0 0
    %972 = vmatprep.subr.bf16.mxu0 0
    %973 = vmatpush1.bf16.msra.mxu0 0
    %974 = vmatprep.subr.bf16.mxu0 0
    %975 = vmatpush1.bf16.msra.mxu0 0
    %976 = vmatprep.subr.bf16.mxu0 0
    %977 = vmatpush1.bf16.msra.mxu0 0
    %978 = vmatprep.mubr.bf16.mxu0 0
    %979 = vmatmul.mubr.bf16.gmra.mrb[0].mxu0 %v322
    %v980 = vpop.f32.mrb[0].mxu0
    %v981 = vadd.f32 %v872, %v980
    %v982 = vpop.f32.mrb[0].mxu0
    %v983 = vpop.f32.mrb[0].mxu0
    %v984 = vadd.f32 %v875, %v983
    %v985 = vpop.f32.mrb[0].mxu0
    %986 = vmatprep.mubr.bf16.mxu0 0
    %987 = vmatmul.mubr.bf16.gmra.mrb[0].mxu0 %v325
    %v988 = vpop.f32.mrb[0].mxu0
    %v989 = vadd.f32 %v880, %v988
    %v990 = vpop.f32.mrb[0].mxu0
    %v991 = vpop.f32.mrb[0].mxu0
    %v992 = vadd.f32 %v883, %v991
    %v993 = vpop.f32.mrb[0].mxu0
    %994 = vmatprep.mubr.bf16.mxu0 0
    %995 = vmatmul.mubr.bf16.gmra.mrb[0].mxu0 %v328
    %v996 = vpop.f32.mrb[0].mxu0
    %v997 = vadd.f32 %v888, %v996
    %v998 = vpop.f32.mrb[0].mxu0
    %v999 = vpop.f32.mrb[0].mxu0
    %v1000 = vadd.f32 %v891, %v999
    %v1001 = vpop.f32.mrb[0].mxu0
    %1002 = vmatprep.mubr.bf16.mxu0 0
    %1003 = vmatmul.mubr.bf16.gmra.mrb[0].mxu0 %v331
    %v1004 = vpop.f32.mrb[0].mxu0
    %v1005 = vadd.f32 %v896, %v1004
    %v1006 = vpop.f32.mrb[0].mxu0
    %v1007 = vpop.f32.mrb[0].mxu0
    %v1008 = vadd.f32 %v899, %v1007
    %v1009 = vpop.f32.mrb[0].mxu0
    %1010 = vmatprep.mubr.bf16.mxu0 0
    %1011 = vmatmul.mubr.bf16.gmra.mrb[0].mxu0 %v334
    %v1012 = vpop.f32.mrb[0].mxu0
    %v1013 = vadd.f32 %v904, %v1012
    %v1014 = vpop.f32.mrb[0].mxu0
    %v1015 = vpop.f32.mrb[0].mxu0
    %v1016 = vadd.f32 %v907, %v1015
    %v1017 = vpop.f32.mrb[0].mxu0
    %1018 = vmatprep.mubr.bf16.mxu0 0
    %1019 = vmatmul.mubr.bf16.gmra.mrb[0].mxu0 %v337
    %v1020 = vpop.f32.mrb[0].mxu0
    %v1021 = vadd.f32 %v912, %v1020
    %v1022 = vpop.f32.mrb[0].mxu0
    %v1023 = vpop.f32.mrb[0].mxu0
    %v1024 = vadd.f32 %v915, %v1023
    %v1025 = vpop.f32.mrb[0].mxu0
    %1026 = vmatprep.mubr.bf16.mxu0 0
    %1027 = vmatmul.mubr.bf16.gmra.mrb[0].mxu0 %v340
    %v1028 = vpop.f32.mrb[0].mxu0
    %v1029 = vadd.f32 %v920, %v1028
    %v1030 = vpop.f32.mrb[0].mxu0
    %v1031 = vpop.f32.mrb[0].mxu0
    %v1032 = vadd.f32 %v923, %v1031
    %v1033 = vpop.f32.mrb[0].mxu0
    %1034 = vmatprep.mubr.bf16.mxu0 0
    %1035 = vmatmul.mubr.bf16.gmra.mrb[0].mxu0 %v343
    %v1036 = vpop.f32.mrb[0].mxu0
    %v1037 = vadd.f32 %v928, %v1036
    %v1038 = vpop.f32.mrb[0].mxu0
    %v1039 = vpop.f32.mrb[0].mxu0
    %v1040 = vadd.f32 %v931, %v1039
    %v1041 = vpop.f32.mrb[0].mxu0
    %1042 = vdwg.mxu0
    %v1043 = vpack.c.bf16 %v808, %v807
    %v1044 = vpack.c.bf16 %v810, %v809
    %1045 = vmatprep.subr.bf16.mxu0 0
    %1046 = vmatpush1.bf16.msra.mxu0 %v1043
    %1047 = vmatprep.subr.bf16.mxu0 0
    %1048 = vmatpush1.bf16.msra.mxu0 %v1044
    %1049 = vmatprep.subr.bf16.mxu0 0
    %1050 = vmatpush1.bf16.msra.mxu0 0
    %1051 = vmatprep.subr.bf16.mxu0 0
    %1052 = vmatpush1.bf16.msra.mxu0 0
    %1053 = vmatprep.subr.bf16.mxu0 0
    %1054 = vmatpush1.bf16.msra.mxu0 0
    %1055 = vmatprep.subr.bf16.mxu0 0
    %1056 = vmatpush1.bf16.msra.mxu0 0
    %1057 = vmatprep.subr.bf16.mxu0 0
    %1058 = vmatpush1.bf16.msra.mxu0 0
    %1059 = vmatprep.subr.bf16.mxu0 0
    %1060 = vmatpush1.bf16.msra.mxu0 0
    %1061 = vmatprep.subr.bf16.mxu0 0
    %1062 = vmatpush1.bf16.msra.mxu0 0
    %1063 = vmatprep.subr.bf16.mxu0 0
    %1064 = vmatpush1.bf16.msra.mxu0 0
    %1065 = vmatprep.subr.bf16.mxu0 0
    %1066 = vmatpush1.bf16.msra.mxu0 0
    %1067 = vmatprep.subr.bf16.mxu0 0
    %1068 = vmatpush1.bf16.msra.mxu0 0
    %1069 = vmatprep.subr.bf16.mxu0 0
    %1070 = vmatpush1.bf16.msra.mxu0 0
    %1071 = vmatprep.subr.bf16.mxu0 0
    %1072 = vmatpush1.bf16.msra.mxu0 0
    %1073 = vmatprep.subr.bf16.mxu0 0
    %1074 = vmatpush1.bf16.msra.mxu0 0
    %1075 = vmatprep.subr.bf16.mxu0 0
    %1076 = vmatpush1.bf16.msra.mxu0 0
    %1077 = vmatprep.mubr.bf16.mxu0 0
    %1078 = vmatmul.mubr.bf16.gmra.mrb[0].mxu0 %v483
    %v1079 = vpop.f32.mrb[0].mxu0
    %v1080 = vadd.f32 0.0, %v1079
    %v1081 = vpop.f32.mrb[0].mxu0
    %v1082 = vpop.f32.mrb[0].mxu0
    %v1083 = vadd.f32 0.0, %v1082
    %v1084 = vpop.f32.mrb[0].mxu0
    %1085 = vmatprep.mubr.bf16.mxu0 0
    %1086 = vmatmul.mubr.bf16.gmra.mrb[0].mxu0 %v486
    %v1087 = vpop.f32.mrb[0].mxu0
    %v1088 = vadd.f32 0.0, %v1087
    %v1089 = vpop.f32.mrb[0].mxu0
    %v1090 = vpop.f32.mrb[0].mxu0
    %v1091 = vadd.f32 0.0, %v1090
    %v1092 = vpop.f32.mrb[0].mxu0
    %1093 = vmatprep.mubr.bf16.mxu0 0
    %1094 = vmatmul.mubr.bf16.gmra.mrb[0].mxu0 %v489
    %v1095 = vpop.f32.mrb[0].mxu0
    %v1096 = vadd.f32 0.0, %v1095
    %v1097 = vpop.f32.mrb[0].mxu0
    %v1098 = vpop.f32.mrb[0].mxu0
    %v1099 = vadd.f32 0.0, %v1098
    %v1100 = vpop.f32.mrb[0].mxu0
    %1101 = vmatprep.mubr.bf16.mxu0 0
    %1102 = vmatmul.mubr.bf16.gmra.mrb[0].mxu0 %v492
    %v1103 = vpop.f32.mrb[0].mxu0
    %v1104 = vadd.f32 0.0, %v1103
    %v1105 = vpop.f32.mrb[0].mxu0
    %v1106 = vpop.f32.mrb[0].mxu0
    %v1107 = vadd.f32 0.0, %v1106
    %v1108 = vpop.f32.mrb[0].mxu0
    %1109 = vmatprep.mubr.bf16.mxu0 0
    %1110 = vmatmul.mubr.bf16.gmra.mrb[0].mxu0 %v495
    %v1111 = vpop.f32.mrb[0].mxu0
    %v1112 = vadd.f32 0.0, %v1111
    %v1113 = vpop.f32.mrb[0].mxu0
    %v1114 = vpop.f32.mrb[0].mxu0
    %v1115 = vadd.f32 0.0, %v1114
    %v1116 = vpop.f32.mrb[0].mxu0
    %1117 = vmatprep.mubr.bf16.mxu0 0
    %1118 = vmatmul.mubr.bf16.gmra.mrb[0].mxu0 %v498
    %v1119 = vpop.f32.mrb[0].mxu0
    %v1120 = vadd.f32 0.0, %v1119
    %v1121 = vpop.f32.mrb[0].mxu0
    %v1122 = vpop.f32.mrb[0].mxu0
    %v1123 = vadd.f32 0.0, %v1122
    %v1124 = vpop.f32.mrb[0].mxu0
    %1125 = vmatprep.mubr.bf16.mxu0 0
    %1126 = vmatmul.mubr.bf16.gmra.mrb[0].mxu0 %v501
    %v1127 = vpop.f32.mrb[0].mxu0
    %v1128 = vadd.f32 0.0, %v1127
    %v1129 = vpop.f32.mrb[0].mxu0
    %v1130 = vpop.f32.mrb[0].mxu0
    %v1131 = vadd.f32 0.0, %v1130
    %v1132 = vpop.f32.mrb[0].mxu0
    %1133 = vmatprep.mubr.bf16.mxu0 0
    %1134 = vmatmul.mubr.bf16.gmra.mrb[0].mxu0 %v504
    %v1135 = vpop.f32.mrb[0].mxu0
    %v1136 = vadd.f32 0.0, %v1135
    %v1137 = vpop.f32.mrb[0].mxu0
    %v1138 = vpop.f32.mrb[0].mxu0
    %v1139 = vadd.f32 0.0, %v1138
    %v1140 = vpop.f32.mrb[0].mxu0
    %1141 = vdwg.mxu0
    %v1142 = vadd.f32 %v981, %v1080
    %v1143 = vadd.f32 %v984, %v1083
    %v1144 = vadd.f32 %v989, %v1088
    %v1145 = vadd.f32 %v992, %v1091
    %v1146 = vadd.f32 %v997, %v1096
    %v1147 = vadd.f32 %v1000, %v1099
    %v1148 = vadd.f32 %v1005, %v1104
    %v1149 = vadd.f32 %v1008, %v1107
    %v1150 = vadd.f32 %v1013, %v1112
    %v1151 = vadd.f32 %v1016, %v1115
    %v1152 = vadd.f32 %v1021, %v1120
    %v1153 = vadd.f32 %v1024, %v1123
    %v1154 = vadd.f32 %v1029, %v1128
    %v1155 = vadd.f32 %v1032, %v1131
    %v1156 = vadd.f32 %v1037, %v1136
    %v1157 = vadd.f32 %v1040, %v1139
    %v1158 = vadd.f32 %v1142, %v622
    %v1159 = vadd.f32 %v1143, %v627
    %v1160 = vadd.f32 %v1144, %v632
    %v1161 = vadd.f32 %v1145, %v637
    %v1162 = vadd.f32 %v1146, %v642
    %v1163 = vadd.f32 %v1147, %v647
    %v1164 = vadd.f32 %v1148, %v652
    %v1165 = vadd.f32 %v1149, %v657
    %v1166 = vadd.f32 %v1150, %v662
    %v1167 = vadd.f32 %v1151, %v667
    %v1168 = vadd.f32 %v1152, %v672
    %v1169 = vadd.f32 %v1153, %v677
    %v1170 = vadd.f32 %v1154, %v682
    %v1171 = vadd.f32 %v1155, %v687
    %v1172 = vadd.f32 %v1156, %v692
    %v1173 = vadd.f32 %v1157, %v697
    %v1174 = vxor.u32 %v1158, 2147483648
    %v1175 = vxor.u32 %v1159, 2147483648
    %v1176 = vxor.u32 %v1160, 2147483648
    %v1177 = vxor.u32 %v1161, 2147483648
    %v1178 = vmul.f32 %v1174, 1.442695
    %v1179 = vpow.pop %v1178
    %v1180 = vmul.f32 %v1175, 1.442695
    %v1181 = vpow.pop %v1180
    %v1182 = vmul.f32 %v1176, 1.442695
    %v1183 = vpow.pop %v1182
    %v1184 = vmul.f32 %v1177, 1.442695
    %v1185 = vpow.pop %v1184
    %v1186 = vadd.f32 %v1179, 1.0
    %v1187 = vadd.f32 %v1181, 1.0
    %v1188 = vadd.f32 %v1183, 1.0
    %v1189 = vadd.f32 %v1185, 1.0
    %v1190 = vrcp.pop %v1186
    %v1191 = vmul.f32 1.0, %v1190
    %v1192 = vrcp.pop %v1187
    %v1193 = vmul.f32 1.0, %v1192
    %v1194 = vrcp.pop %v1188
    %v1195 = vmul.f32 1.0, %v1194
    %v1196 = vrcp.pop %v1189
    %v1197 = vmul.f32 1.0, %v1196
    %v1198 = vxor.u32 %v1162, 2147483648
    %v1199 = vxor.u32 %v1163, 2147483648
    %v1200 = vxor.u32 %v1164, 2147483648
    %v1201 = vxor.u32 %v1165, 2147483648
    %v1202 = vmul.f32 %v1198, 1.442695
    %v1203 = vpow.pop %v1202
    %v1204 = vmul.f32 %v1199, 1.442695
    %v1205 = vpow.pop %v1204
    %v1206 = vmul.f32 %v1200, 1.442695
    %v1207 = vpow.pop %v1206
    %v1208 = vmul.f32 %v1201, 1.442695
    %v1209 = vpow.pop %v1208
    %v1210 = vadd.f32 %v1203, 1.0
    %v1211 = vadd.f32 %v1205, 1.0
    %v1212 = vadd.f32 %v1207, 1.0
    %v1213 = vadd.f32 %v1209, 1.0
    %v1214 = vrcp.pop %v1210
    %v1215 = vmul.f32 1.0, %v1214
    %v1216 = vrcp.pop %v1211
    %v1217 = vmul.f32 1.0, %v1216
    %v1218 = vrcp.pop %v1212
    %v1219 = vmul.f32 1.0, %v1218
    %v1220 = vrcp.pop %v1213
    %v1221 = vmul.f32 1.0, %v1220
    %v1222 = vtanh.pop %v1166
    %v1223 = vtanh.pop %v1167
    %v1224 = vtanh.pop %v1168
    %v1225 = vtanh.pop %v1169
    %v1226 = vxor.u32 %v1170, 2147483648
    %v1227 = vxor.u32 %v1171, 2147483648
    %v1228 = vxor.u32 %v1172, 2147483648
    %v1229 = vxor.u32 %v1173, 2147483648
    %v1230 = vmul.f32 %v1226, 1.442695
    %v1231 = vpow.pop %v1230
    %v1232 = vmul.f32 %v1227, 1.442695
    %v1233 = vpow.pop %v1232
    %v1234 = vmul.f32 %v1228, 1.442695
    %v1235 = vpow.pop %v1234
    %v1236 = vmul.f32 %v1229, 1.442695
    %v1237 = vpow.pop %v1236
    %v1238 = vadd.f32 %v1231, 1.0
    %v1239 = vadd.f32 %v1233, 1.0
    %v1240 = vadd.f32 %v1235, 1.0
    %v1241 = vadd.f32 %v1237, 1.0
    %v1242 = vrcp.pop %v1238
    %v1243 = vmul.f32 1.0, %v1242
    %v1244 = vrcp.pop %v1239
    %v1245 = vmul.f32 1.0, %v1244
    %v1246 = vrcp.pop %v1240
    %v1247 = vmul.f32 1.0, %v1246
    %v1248 = vrcp.pop %v1241
    %v1249 = vmul.f32 1.0, %v1248
    %v1250 = vmul.f32 %v1215, %v799
    %v1251 = vmul.f32 %v1217, %v800
    %v1252 = vmul.f32 %v1219, %v801
    %v1253 = vmul.f32 %v1221, %v802
    %v1254 = vmul.f32 %v1191, %v1222
    %v1255 = vmul.f32 %v1193, %v1223
    %v1256 = vmul.f32 %v1195, %v1224
    %v1257 = vmul.f32 %v1197, %v1225
    %v1258 = vadd.f32 %v1250, %v1254
    %v1259 = vadd.f32 %v1251, %v1255
    %v1260 = vadd.f32 %v1252, %v1256
    %v1261 = vadd.f32 %v1253, %v1257
    %v1262 = vtanh.pop %v1258
    %v1263 = vtanh.pop %v1259
    %v1264 = vtanh.pop %v1260
    %v1265 = vtanh.pop %v1261
    %v1266 = vmul.f32 %v1243, %v1262
    %v1267 = vmul.f32 %v1245, %v1263
    %v1268 = vmul.f32 %v1247, %v1264
    %v1269 = vmul.f32 %v1249, %v1265
    %v1270 = vadd.f32 %v811, %v1266
    %v1271 = vadd.f32 %v812, %v1267
    %v1272 = vadd.f32 %v813, %v1268
    %v1273 = vadd.f32 %v814, %v1269
    %s1274 = scalar_lea.vmem %s0, 32
    %v1275 = vld [vmem:[%s1274] sm:$0xf]
    %v1276 = vld [vmem:[%s1274 + $0x4] sm:$0xf]
    %v1277 = vld [vmem:[%s1274 + $0x8] sm:$0xf]
    %v1278 = vld [vmem:[%s1274 + $0xc] sm:$0xf]
    %s1279 = scalar_lea.vmem %s0, 80
    %v1280 = vld [vmem:[%s1279] sm:$0xf]
    %v1281 = vld [vmem:[%s1279 + $0x4] sm:$0xf]
    %v1282 = vld [vmem:[%s1279 + $0x8] sm:$0xf]
    %v1283 = vld [vmem:[%s1279 + $0xc] sm:$0xf]
    %v1288 = vunpack.c.l.b16 %v1280
    %v1289 = vunpack.c.l.b16 %v1281
    %v1290 = vunpack.c.l.b16 %v1282
    %v1291 = vunpack.c.l.b16 %v1283
    %v1292 = vpack.c.b16 %v1289, %v1288
    %v1293 = vpack.c.b16 %v1291, %v1290
    %1296 = vmatprep.subr.bf16.mxu0 0
    %1297 = vmatpush1.bf16.msra.mxu0 %v1292
    %1298 = vmatprep.subr.bf16.mxu0 0
    %1299 = vmatpush1.bf16.msra.mxu0 %v1293
    %1300 = vmatprep.subr.bf16.mxu0 0
    %1301 = vmatpush1.bf16.msra.mxu0 0
    %1302 = vmatprep.subr.bf16.mxu0 0
    %1303 = vmatpush1.bf16.msra.mxu0 0
    %1304 = vmatprep.subr.bf16.mxu0 0
    %1305 = vmatpush1.bf16.msra.mxu0 0
    %1306 = vmatprep.subr.bf16.mxu0 0
    %1307 = vmatpush1.bf16.msra.mxu0 0
    %1308 = vmatprep.subr.bf16.mxu0 0
    %1309 = vmatpush1.bf16.msra.mxu0 0
    %1310 = vmatprep.subr.bf16.mxu0 0
    %1311 = vmatpush1.bf16.msra.mxu0 0
    %1312 = vmatprep.subr.bf16.mxu0 0
    %1313 = vmatpush1.bf16.msra.mxu0 0
    %1314 = vmatprep.subr.bf16.mxu0 0
    %1315 = vmatpush1.bf16.msra.mxu0 0
    %1316 = vmatprep.subr.bf16.mxu0 0
    %1317 = vmatpush1.bf16.msra.mxu0 0
    %1318 = vmatprep.subr.bf16.mxu0 0
    %1319 = vmatpush1.bf16.msra.mxu0 0
    %1320 = vmatprep.subr.bf16.mxu0 0
    %1321 = vmatpush1.bf16.msra.mxu0 0
    %1322 = vmatprep.subr.bf16.mxu0 0
    %1323 = vmatpush1.bf16.msra.mxu0 0
    %1324 = vmatprep.subr.bf16.mxu0 0
    %1325 = vmatpush1.bf16.msra.mxu0 0
    %1326 = vmatprep.subr.bf16.mxu0 0
    %1327 = vmatpush1.bf16.msra.mxu0 0
    %1328 = vmatprep.mubr.bf16.mxu0 0
    %1329 = vmatmul.mubr.bf16.gmra.mrb[0].mxu0 %v149
    %v1330 = vpop.f32.mrb[0].mxu0
    %v1331 = vadd.f32 0.0, %v1330
    %v1332 = vpop.f32.mrb[0].mxu0
    %v1333 = vpop.f32.mrb[0].mxu0
    %v1334 = vadd.f32 0.0, %v1333
    %v1335 = vpop.f32.mrb[0].mxu0
    %1336 = vmatprep.mubr.bf16.mxu0 0
    %1337 = vmatmul.mubr.bf16.gmra.mrb[0].mxu0 %v152
    %v1338 = vpop.f32.mrb[0].mxu0
    %v1339 = vadd.f32 0.0, %v1338
    %v1340 = vpop.f32.mrb[0].mxu0
    %v1341 = vpop.f32.mrb[0].mxu0
    %v1342 = vadd.f32 0.0, %v1341
    %v1343 = vpop.f32.mrb[0].mxu0
    %1344 = vmatprep.mubr.bf16.mxu0 0
    %1345 = vmatmul.mubr.bf16.gmra.mrb[0].mxu0 %v155
    %v1346 = vpop.f32.mrb[0].mxu0
    %v1347 = vadd.f32 0.0, %v1346
    %v1348 = vpop.f32.mrb[0].mxu0
    %v1349 = vpop.f32.mrb[0].mxu0
    %v1350 = vadd.f32 0.0, %v1349
    %v1351 = vpop.f32.mrb[0].mxu0
    %1352 = vmatprep.mubr.bf16.mxu0 0
    %1353 = vmatmul.mubr.bf16.gmra.mrb[0].mxu0 %v158
    %v1354 = vpop.f32.mrb[0].mxu0
    %v1355 = vadd.f32 0.0, %v1354
    %v1356 = vpop.f32.mrb[0].mxu0
    %v1357 = vpop.f32.mrb[0].mxu0
    %v1358 = vadd.f32 0.0, %v1357
    %v1359 = vpop.f32.mrb[0].mxu0
    %1360 = vmatprep.mubr.bf16.mxu0 0
    %1361 = vmatmul.mubr.bf16.gmra.mrb[0].mxu0 %v161
    %v1362 = vpop.f32.mrb[0].mxu0
    %v1363 = vadd.f32 0.0, %v1362
    %v1364 = vpop.f32.mrb[0].mxu0
    %v1365 = vpop.f32.mrb[0].mxu0
    %v1366 = vadd.f32 0.0, %v1365
    %v1367 = vpop.f32.mrb[0].mxu0
    %1368 = vmatprep.mubr.bf16.mxu0 0
    %1369 = vmatmul.mubr.bf16.gmra.mrb[0].mxu0 %v164
    %v1370 = vpop.f32.mrb[0].mxu0
    %v1371 = vadd.f32 0.0, %v1370
    %v1372 = vpop.f32.mrb[0].mxu0
    %v1373 = vpop.f32.mrb[0].mxu0
    %v1374 = vadd.f32 0.0, %v1373
    %v1375 = vpop.f32.mrb[0].mxu0
    %1376 = vmatprep.mubr.bf16.mxu0 0
    %1377 = vmatmul.mubr.bf16.gmra.mrb[0].mxu0 %v167
    %v1378 = vpop.f32.mrb[0].mxu0
    %v1379 = vadd.f32 0.0, %v1378
    %v1380 = vpop.f32.mrb[0].mxu0
    %v1381 = vpop.f32.mrb[0].mxu0
    %v1382 = vadd.f32 0.0, %v1381
    %v1383 = vpop.f32.mrb[0].mxu0
    %1384 = vmatprep.mubr.bf16.mxu0 0
    %1385 = vmatmul.mubr.bf16.gmra.mrb[0].mxu0 %v170
    %v1386 = vpop.f32.mrb[0].mxu0
    %v1387 = vadd.f32 0.0, %v1386
    %v1388 = vpop.f32.mrb[0].mxu0
    %v1389 = vpop.f32.mrb[0].mxu0
    %v1390 = vadd.f32 0.0, %v1389
    %v1391 = vpop.f32.mrb[0].mxu0
    %1392 = vdwg.mxu0
    %v1397 = vunpack.c.l.b16 %v1275
    %v1398 = vunpack.c.l.b16 %v1276
    %v1399 = vunpack.c.l.b16 %v1277
    %v1400 = vunpack.c.l.b16 %v1278
    %v1401 = vpack.c.b16 %v1398, %v1397
    %v1402 = vpack.c.b16 %v1400, %v1399
    %1405 = vmatprep.subr.bf16.mxu0 0
    %1406 = vmatpush1.bf16.msra.mxu0 %v1401
    %1407 = vmatprep.subr.bf16.mxu0 0
    %1408 = vmatpush1.bf16.msra.mxu0 %v1402
    %1409 = vmatprep.subr.bf16.mxu0 0
    %1410 = vmatpush1.bf16.msra.mxu0 0
    %1411 = vmatprep.subr.bf16.mxu0 0
    %1412 = vmatpush1.bf16.msra.mxu0 0
    %1413 = vmatprep.subr.bf16.mxu0 0
    %1414 = vmatpush1.bf16.msra.mxu0 0
    %1415 = vmatprep.subr.bf16.mxu0 0
    %1416 = vmatpush1.bf16.msra.mxu0 0
    %1417 = vmatprep.subr.bf16.mxu0 0
    %1418 = vmatpush1.bf16.msra.mxu0 0
    %1419 = vmatprep.subr.bf16.mxu0 0
    %1420 = vmatpush1.bf16.msra.mxu0 0
    %1421 = vmatprep.subr.bf16.mxu0 0
    %1422 = vmatpush1.bf16.msra.mxu0 0
    %1423 = vmatprep.subr.bf16.mxu0 0
    %1424 = vmatpush1.bf16.msra.mxu0 0
    %1425 = vmatprep.subr.bf16.mxu0 0
    %1426 = vmatpush1.bf16.msra.mxu0 0
    %1427 = vmatprep.subr.bf16.mxu0 0
    %1428 = vmatpush1.bf16.msra.mxu0 0
    %1429 = vmatprep.subr.bf16.mxu0 0
    %1430 = vmatpush1.bf16.msra.mxu0 0
    %1431 = vmatprep.subr.bf16.mxu0 0
    %1432 = vmatpush1.bf16.msra.mxu0 0
    %1433 = vmatprep.subr.bf16.mxu0 0
    %1434 = vmatpush1.bf16.msra.mxu0 0
    %1435 = vmatprep.subr.bf16.mxu0 0
    %1436 = vmatpush1.bf16.msra.mxu0 0
    %1437 = vmatprep.mubr.bf16.mxu0 0
    %1438 = vmatmul.mubr.bf16.gmra.mrb[0].mxu0 %v322
    %v1439 = vpop.f32.mrb[0].mxu0
    %v1440 = vadd.f32 %v1331, %v1439
    %v1441 = vpop.f32.mrb[0].mxu0
    %v1442 = vpop.f32.mrb[0].mxu0
    %v1443 = vadd.f32 %v1334, %v1442
    %v1444 = vpop.f32.mrb[0].mxu0
    %1445 = vmatprep.mubr.bf16.mxu0 0
    %1446 = vmatmul.mubr.bf16.gmra.mrb[0].mxu0 %v325
    %v1447 = vpop.f32.mrb[0].mxu0
    %v1448 = vadd.f32 %v1339, %v1447
    %v1449 = vpop.f32.mrb[0].mxu0
    %v1450 = vpop.f32.mrb[0].mxu0
    %v1451 = vadd.f32 %v1342, %v1450
    %v1452 = vpop.f32.mrb[0].mxu0
    %1453 = vmatprep.mubr.bf16.mxu0 0
    %1454 = vmatmul.mubr.bf16.gmra.mrb[0].mxu0 %v328
    %v1455 = vpop.f32.mrb[0].mxu0
    %v1456 = vadd.f32 %v1347, %v1455
    %v1457 = vpop.f32.mrb[0].mxu0
    %v1458 = vpop.f32.mrb[0].mxu0
    %v1459 = vadd.f32 %v1350, %v1458
    %v1460 = vpop.f32.mrb[0].mxu0
    %1461 = vmatprep.mubr.bf16.mxu0 0
    %1462 = vmatmul.mubr.bf16.gmra.mrb[0].mxu0 %v331
    %v1463 = vpop.f32.mrb[0].mxu0
    %v1464 = vadd.f32 %v1355, %v1463
    %v1465 = vpop.f32.mrb[0].mxu0
    %v1466 = vpop.f32.mrb[0].mxu0
    %v1467 = vadd.f32 %v1358, %v1466
    %v1468 = vpop.f32.mrb[0].mxu0
    %1469 = vmatprep.mubr.bf16.mxu0 0
    %1470 = vmatmul.mubr.bf16.gmra.mrb[0].mxu0 %v334
    %v1471 = vpop.f32.mrb[0].mxu0
    %v1472 = vadd.f32 %v1363, %v1471
    %v1473 = vpop.f32.mrb[0].mxu0
    %v1474 = vpop.f32.mrb[0].mxu0
    %v1475 = vadd.f32 %v1366, %v1474
    %v1476 = vpop.f32.mrb[0].mxu0
    %1477 = vmatprep.mubr.bf16.mxu0 0
    %1478 = vmatmul.mubr.bf16.gmra.mrb[0].mxu0 %v337
    %v1479 = vpop.f32.mrb[0].mxu0
    %v1480 = vadd.f32 %v1371, %v1479
    %v1481 = vpop.f32.mrb[0].mxu0
    %v1482 = vpop.f32.mrb[0].mxu0
    %v1483 = vadd.f32 %v1374, %v1482
    %v1484 = vpop.f32.mrb[0].mxu0
    %1485 = vmatprep.mubr.bf16.mxu0 0
    %1486 = vmatmul.mubr.bf16.gmra.mrb[0].mxu0 %v340
    %v1487 = vpop.f32.mrb[0].mxu0
    %v1488 = vadd.f32 %v1379, %v1487
    %v1489 = vpop.f32.mrb[0].mxu0
    %v1490 = vpop.f32.mrb[0].mxu0
    %v1491 = vadd.f32 %v1382, %v1490
    %v1492 = vpop.f32.mrb[0].mxu0
    %1493 = vmatprep.mubr.bf16.mxu0 0
    %1494 = vmatmul.mubr.bf16.gmra.mrb[0].mxu0 %v343
    %v1495 = vpop.f32.mrb[0].mxu0
    %v1496 = vadd.f32 %v1387, %v1495
    %v1497 = vpop.f32.mrb[0].mxu0
    %v1498 = vpop.f32.mrb[0].mxu0
    %v1499 = vadd.f32 %v1390, %v1498
    %v1500 = vpop.f32.mrb[0].mxu0
    %1501 = vdwg.mxu0
    %v1502 = vpack.c.bf16 %v1267, %v1266
    %v1503 = vpack.c.bf16 %v1269, %v1268
    %1504 = vmatprep.subr.bf16.mxu0 0
    %1505 = vmatpush1.bf16.msra.mxu0 %v1502
    %1506 = vmatprep.subr.bf16.mxu0 0
    %1507 = vmatpush1.bf16.msra.mxu0 %v1503
    %1508 = vmatprep.subr.bf16.mxu0 0
    %1509 = vmatpush1.bf16.msra.mxu0 0
    %1510 = vmatprep.subr.bf16.mxu0 0
    %1511 = vmatpush1.bf16.msra.mxu0 0
    %1512 = vmatprep.subr.bf16.mxu0 0
    %1513 = vmatpush1.bf16.msra.mxu0 0
    %1514 = vmatprep.subr.bf16.mxu0 0
    %1515 = vmatpush1.bf16.msra.mxu0 0
    %1516 = vmatprep.subr.bf16.mxu0 0
    %1517 = vmatpush1.bf16.msra.mxu0 0
    %1518 = vmatprep.subr.bf16.mxu0 0
    %1519 = vmatpush1.bf16.msra.mxu0 0
    %1520 = vmatprep.subr.bf16.mxu0 0
    %1521 = vmatpush1.bf16.msra.mxu0 0
    %1522 = vmatprep.subr.bf16.mxu0 0
    %1523 = vmatpush1.bf16.msra.mxu0 0
    %1524 = vmatprep.subr.bf16.mxu0 0
    %1525 = vmatpush1.bf16.msra.mxu0 0
    %1526 = vmatprep.subr.bf16.mxu0 0
    %1527 = vmatpush1.bf16.msra.mxu0 0
    %1528 = vmatprep.subr.bf16.mxu0 0
    %1529 = vmatpush1.bf16.msra.mxu0 0
    %1530 = vmatprep.subr.bf16.mxu0 0
    %1531 = vmatpush1.bf16.msra.mxu0 0
    %1532 = vmatprep.subr.bf16.mxu0 0
    %1533 = vmatpush1.bf16.msra.mxu0 0
    %1534 = vmatprep.subr.bf16.mxu0 0
    %1535 = vmatpush1.bf16.msra.mxu0 0
    %1536 = vmatprep.mubr.bf16.mxu0 0
    %1537 = vmatmul.mubr.bf16.gmra.mrb[0].mxu0 %v483
    %v1538 = vpop.f32.mrb[0].mxu0
    %v1539 = vadd.f32 0.0, %v1538
    %v1540 = vpop.f32.mrb[0].mxu0
    %v1541 = vpop.f32.mrb[0].mxu0
    %v1542 = vadd.f32 0.0, %v1541
    %v1543 = vpop.f32.mrb[0].mxu0
    %1544 = vmatprep.mubr.bf16.mxu0 0
    %1545 = vmatmul.mubr.bf16.gmra.mrb[0].mxu0 %v486
    %v1546 = vpop.f32.mrb[0].mxu0
    %v1547 = vadd.f32 0.0, %v1546
    %v1548 = vpop.f32.mrb[0].mxu0
    %v1549 = vpop.f32.mrb[0].mxu0
    %v1550 = vadd.f32 0.0, %v1549
    %v1551 = vpop.f32.mrb[0].mxu0
    %1552 = vmatprep.mubr.bf16.mxu0 0
    %1553 = vmatmul.mubr.bf16.gmra.mrb[0].mxu0 %v489
    %v1554 = vpop.f32.mrb[0].mxu0
    %v1555 = vadd.f32 0.0, %v1554
    %v1556 = vpop.f32.mrb[0].mxu0
    %v1557 = vpop.f32.mrb[0].mxu0
    %v1558 = vadd.f32 0.0, %v1557
    %v1559 = vpop.f32.mrb[0].mxu0
    %1560 = vmatprep.mubr.bf16.mxu0 0
    %1561 = vmatmul.mubr.bf16.gmra.mrb[0].mxu0 %v492
    %v1562 = vpop.f32.mrb[0].mxu0
    %v1563 = vadd.f32 0.0, %v1562
    %v1564 = vpop.f32.mrb[0].mxu0
    %v1565 = vpop.f32.mrb[0].mxu0
    %v1566 = vadd.f32 0.0, %v1565
    %v1567 = vpop.f32.mrb[0].mxu0
    %1568 = vmatprep.mubr.bf16.mxu0 0
    %1569 = vmatmul.mubr.bf16.gmra.mrb[0].mxu0 %v495
    %v1570 = vpop.f32.mrb[0].mxu0
    %v1571 = vadd.f32 0.0, %v1570
    %v1572 = vpop.f32.mrb[0].mxu0
    %v1573 = vpop.f32.mrb[0].mxu0
    %v1574 = vadd.f32 0.0, %v1573
    %v1575 = vpop.f32.mrb[0].mxu0
    %1576 = vmatprep.mubr.bf16.mxu0 0
    %1577 = vmatmul.mubr.bf16.gmra.mrb[0].mxu0 %v498
    %v1578 = vpop.f32.mrb[0].mxu0
    %v1579 = vadd.f32 0.0, %v1578
    %v1580 = vpop.f32.mrb[0].mxu0
    %v1581 = vpop.f32.mrb[0].mxu0
    %v1582 = vadd.f32 0.0, %v1581
    %v1583 = vpop.f32.mrb[0].mxu0
    %1584 = vmatprep.mubr.bf16.mxu0 0
    %1585 = vmatmul.mubr.bf16.gmra.mrb[0].mxu0 %v501
    %v1586 = vpop.f32.mrb[0].mxu0
    %v1587 = vadd.f32 0.0, %v1586
    %v1588 = vpop.f32.mrb[0].mxu0
    %v1589 = vpop.f32.mrb[0].mxu0
    %v1590 = vadd.f32 0.0, %v1589
    %v1591 = vpop.f32.mrb[0].mxu0
    %1592 = vmatprep.mubr.bf16.mxu0 0
    %1593 = vmatmul.mubr.bf16.gmra.mrb[0].mxu0 %v504
    %v1594 = vpop.f32.mrb[0].mxu0
    %v1595 = vadd.f32 0.0, %v1594
    %v1596 = vpop.f32.mrb[0].mxu0
    %v1597 = vpop.f32.mrb[0].mxu0
    %v1598 = vadd.f32 0.0, %v1597
    %v1599 = vpop.f32.mrb[0].mxu0
    %1600 = vdwg.mxu0
    %v1601 = vadd.f32 %v1440, %v1539
    %v1602 = vadd.f32 %v1443, %v1542
    %v1603 = vadd.f32 %v1448, %v1547
    %v1604 = vadd.f32 %v1451, %v1550
    %v1605 = vadd.f32 %v1456, %v1555
    %v1606 = vadd.f32 %v1459, %v1558
    %v1607 = vadd.f32 %v1464, %v1563
    %v1608 = vadd.f32 %v1467, %v1566
    %v1609 = vadd.f32 %v1472, %v1571
    %v1610 = vadd.f32 %v1475, %v1574
    %v1611 = vadd.f32 %v1480, %v1579
    %v1612 = vadd.f32 %v1483, %v1582
    %v1613 = vadd.f32 %v1488, %v1587
    %v1614 = vadd.f32 %v1491, %v1590
    %v1615 = vadd.f32 %v1496, %v1595
    %v1616 = vadd.f32 %v1499, %v1598
    %v1617 = vadd.f32 %v1601, %v622
    %v1618 = vadd.f32 %v1602, %v627
    %v1619 = vadd.f32 %v1603, %v632
    %v1620 = vadd.f32 %v1604, %v637
    %v1621 = vadd.f32 %v1605, %v642
    %v1622 = vadd.f32 %v1606, %v647
    %v1623 = vadd.f32 %v1607, %v652
    %v1624 = vadd.f32 %v1608, %v657
    %v1625 = vadd.f32 %v1609, %v662
    %v1626 = vadd.f32 %v1610, %v667
    %v1627 = vadd.f32 %v1611, %v672
    %v1628 = vadd.f32 %v1612, %v677
    %v1629 = vadd.f32 %v1613, %v682
    %v1630 = vadd.f32 %v1614, %v687
    %v1631 = vadd.f32 %v1615, %v692
    %v1632 = vadd.f32 %v1616, %v697
    %v1633 = vxor.u32 %v1617, 2147483648
    %v1634 = vxor.u32 %v1618, 2147483648
    %v1635 = vxor.u32 %v1619, 2147483648
    %v1636 = vxor.u32 %v1620, 2147483648
    %v1637 = vmul.f32 %v1633, 1.442695
    %v1638 = vpow.pop %v1637
    %v1639 = vmul.f32 %v1634, 1.442695
    %v1640 = vpow.pop %v1639
    %v1641 = vmul.f32 %v1635, 1.442695
    %v1642 = vpow.pop %v1641
    %v1643 = vmul.f32 %v1636, 1.442695
    %v1644 = vpow.pop %v1643
    %v1645 = vadd.f32 %v1638, 1.0
    %v1646 = vadd.f32 %v1640, 1.0
    %v1647 = vadd.f32 %v1642, 1.0
    %v1648 = vadd.f32 %v1644, 1.0
    %v1649 = vrcp.pop %v1645
    %v1650 = vmul.f32 1.0, %v1649
    %v1651 = vrcp.pop %v1646
    %v1652 = vmul.f32 1.0, %v1651
    %v1653 = vrcp.pop %v1647
    %v1654 = vmul.f32 1.0, %v1653
    %v1655 = vrcp.pop %v1648
    %v1656 = vmul.f32 1.0, %v1655
    %v1657 = vxor.u32 %v1621, 2147483648
    %v1658 = vxor.u32 %v1622, 2147483648
    %v1659 = vxor.u32 %v1623, 2147483648
    %v1660 = vxor.u32 %v1624, 2147483648
    %v1661 = vmul.f32 %v1657, 1.442695
    %v1662 = vpow.pop %v1661
    %v1663 = vmul.f32 %v1658, 1.442695
    %v1664 = vpow.pop %v1663
    %v1665 = vmul.f32 %v1659, 1.442695
    %v1666 = vpow.pop %v1665
    %v1667 = vmul.f32 %v1660, 1.442695
    %v1668 = vpow.pop %v1667
    %v1669 = vadd.f32 %v1662, 1.0
    %v1670 = vadd.f32 %v1664, 1.0
    %v1671 = vadd.f32 %v1666, 1.0
    %v1672 = vadd.f32 %v1668, 1.0
    %v1673 = vrcp.pop %v1669
    %v1674 = vmul.f32 1.0, %v1673
    %v1675 = vrcp.pop %v1670
    %v1676 = vmul.f32 1.0, %v1675
    %v1677 = vrcp.pop %v1671
    %v1678 = vmul.f32 1.0, %v1677
    %v1679 = vrcp.pop %v1672
    %v1680 = vmul.f32 1.0, %v1679
    %v1681 = vtanh.pop %v1625
    %v1682 = vtanh.pop %v1626
    %v1683 = vtanh.pop %v1627
    %v1684 = vtanh.pop %v1628
    %v1685 = vxor.u32 %v1629, 2147483648
    %v1686 = vxor.u32 %v1630, 2147483648
    %v1687 = vxor.u32 %v1631, 2147483648
    %v1688 = vxor.u32 %v1632, 2147483648
    %v1689 = vmul.f32 %v1685, 1.442695
    %v1690 = vpow.pop %v1689
    %v1691 = vmul.f32 %v1686, 1.442695
    %v1692 = vpow.pop %v1691
    %v1693 = vmul.f32 %v1687, 1.442695
    %v1694 = vpow.pop %v1693
    %v1695 = vmul.f32 %v1688, 1.442695
    %v1696 = vpow.pop %v1695
    %v1697 = vadd.f32 %v1690, 1.0
    %v1698 = vadd.f32 %v1692, 1.0
    %v1699 = vadd.f32 %v1694, 1.0
    %v1700 = vadd.f32 %v1696, 1.0
    %v1701 = vrcp.pop %v1697
    %v1702 = vmul.f32 1.0, %v1701
    %v1703 = vrcp.pop %v1698
    %v1704 = vmul.f32 1.0, %v1703
    %v1705 = vrcp.pop %v1699
    %v1706 = vmul.f32 1.0, %v1705
    %v1707 = vrcp.pop %v1700
    %v1708 = vmul.f32 1.0, %v1707
    %v1709 = vmul.f32 %v1674, %v1258
    %v1710 = vmul.f32 %v1676, %v1259
    %v1711 = vmul.f32 %v1678, %v1260
    %v1712 = vmul.f32 %v1680, %v1261
    %v1713 = vmul.f32 %v1650, %v1681
    %v1714 = vmul.f32 %v1652, %v1682
    %v1715 = vmul.f32 %v1654, %v1683
    %v1716 = vmul.f32 %v1656, %v1684
    %v1717 = vadd.f32 %v1709, %v1713
    %v1718 = vadd.f32 %v1710, %v1714
    %v1719 = vadd.f32 %v1711, %v1715
    %v1720 = vadd.f32 %v1712, %v1716
    %v1721 = vtanh.pop %v1717
    %v1722 = vtanh.pop %v1718
    %v1723 = vtanh.pop %v1719
    %v1724 = vtanh.pop %v1720
    %v1725 = vmul.f32 %v1702, %v1721
    %v1726 = vmul.f32 %v1704, %v1722
    %v1727 = vmul.f32 %v1706, %v1723
    %v1728 = vmul.f32 %v1708, %v1724
    %v1729 = vadd.f32 %v1270, %v1725
    %v1730 = vadd.f32 %v1271, %v1726
    %v1731 = vadd.f32 %v1272, %v1727
    %v1732 = vadd.f32 %v1273, %v1728
    %s1733 = scalar_lea.vmem %s0, 48
    %v1734 = vld [vmem:[%s1733] sm:$0xf]
    %v1735 = vld [vmem:[%s1733 + $0x4] sm:$0xf]
    %v1736 = vld [vmem:[%s1733 + $0x8] sm:$0xf]
    %v1737 = vld [vmem:[%s1733 + $0xc] sm:$0xf]
    %s1738 = scalar_lea.vmem %s0, 64
    %v1739 = vld [vmem:[%s1738] sm:$0xf]
    %v1740 = vld [vmem:[%s1738 + $0x4] sm:$0xf]
    %v1741 = vld [vmem:[%s1738 + $0x8] sm:$0xf]
    %v1742 = vld [vmem:[%s1738 + $0xc] sm:$0xf]
    %v1747 = vunpack.c.l.b16 %v1739
    %v1748 = vunpack.c.l.b16 %v1740
    %v1749 = vunpack.c.l.b16 %v1741
    %v1750 = vunpack.c.l.b16 %v1742
    %v1751 = vpack.c.b16 %v1748, %v1747
    %v1752 = vpack.c.b16 %v1750, %v1749
    %1755 = vmatprep.subr.bf16.mxu0 0
    %1756 = vmatpush1.bf16.msra.mxu0 %v1751
    %1757 = vmatprep.subr.bf16.mxu0 0
    %1758 = vmatpush1.bf16.msra.mxu0 %v1752
    %1759 = vmatprep.subr.bf16.mxu0 0
    %1760 = vmatpush1.bf16.msra.mxu0 0
    %1761 = vmatprep.subr.bf16.mxu0 0
    %1762 = vmatpush1.bf16.msra.mxu0 0
    %1763 = vmatprep.subr.bf16.mxu0 0
    %1764 = vmatpush1.bf16.msra.mxu0 0
    %1765 = vmatprep.subr.bf16.mxu0 0
    %1766 = vmatpush1.bf16.msra.mxu0 0
    %1767 = vmatprep.subr.bf16.mxu0 0
    %1768 = vmatpush1.bf16.msra.mxu0 0
    %1769 = vmatprep.subr.bf16.mxu0 0
    %1770 = vmatpush1.bf16.msra.mxu0 0
    %1771 = vmatprep.subr.bf16.mxu0 0
    %1772 = vmatpush1.bf16.msra.mxu0 0
    %1773 = vmatprep.subr.bf16.mxu0 0
    %1774 = vmatpush1.bf16.msra.mxu0 0
    %1775 = vmatprep.subr.bf16.mxu0 0
    %1776 = vmatpush1.bf16.msra.mxu0 0
    %1777 = vmatprep.subr.bf16.mxu0 0
    %1778 = vmatpush1.bf16.msra.mxu0 0
    %1779 = vmatprep.subr.bf16.mxu0 0
    %1780 = vmatpush1.bf16.msra.mxu0 0
    %1781 = vmatprep.subr.bf16.mxu0 0
    %1782 = vmatpush1.bf16.msra.mxu0 0
    %1783 = vmatprep.subr.bf16.mxu0 0
    %1784 = vmatpush1.bf16.msra.mxu0 0
    %1785 = vmatprep.subr.bf16.mxu0 0
    %1786 = vmatpush1.bf16.msra.mxu0 0
    %1787 = vmatprep.mubr.bf16.mxu0 0
    %1788 = vmatmul.mubr.bf16.gmra.mrb[0].mxu0 %v149
    %v1789 = vpop.f32.mrb[0].mxu0
    %v1790 = vadd.f32 0.0, %v1789
    %v1791 = vpop.f32.mrb[0].mxu0
    %v1792 = vpop.f32.mrb[0].mxu0
    %v1793 = vadd.f32 0.0, %v1792
    %v1794 = vpop.f32.mrb[0].mxu0
    %1795 = vmatprep.mubr.bf16.mxu0 0
    %1796 = vmatmul.mubr.bf16.gmra.mrb[0].mxu0 %v152
    %v1797 = vpop.f32.mrb[0].mxu0
    %v1798 = vadd.f32 0.0, %v1797
    %v1799 = vpop.f32.mrb[0].mxu0
    %v1800 = vpop.f32.mrb[0].mxu0
    %v1801 = vadd.f32 0.0, %v1800
    %v1802 = vpop.f32.mrb[0].mxu0
    %1803 = vmatprep.mubr.bf16.mxu0 0
    %1804 = vmatmul.mubr.bf16.gmra.mrb[0].mxu0 %v155
    %v1805 = vpop.f32.mrb[0].mxu0
    %v1806 = vadd.f32 0.0, %v1805
    %v1807 = vpop.f32.mrb[0].mxu0
    %v1808 = vpop.f32.mrb[0].mxu0
    %v1809 = vadd.f32 0.0, %v1808
    %v1810 = vpop.f32.mrb[0].mxu0
    %1811 = vmatprep.mubr.bf16.mxu0 0
    %1812 = vmatmul.mubr.bf16.gmra.mrb[0].mxu0 %v158
    %v1813 = vpop.f32.mrb[0].mxu0
    %v1814 = vadd.f32 0.0, %v1813
    %v1815 = vpop.f32.mrb[0].mxu0
    %v1816 = vpop.f32.mrb[0].mxu0
    %v1817 = vadd.f32 0.0, %v1816
    %v1818 = vpop.f32.mrb[0].mxu0
    %1819 = vmatprep.mubr.bf16.mxu0 0
    %1820 = vmatmul.mubr.bf16.gmra.mrb[0].mxu0 %v161
    %v1821 = vpop.f32.mrb[0].mxu0
    %v1822 = vadd.f32 0.0, %v1821
    %v1823 = vpop.f32.mrb[0].mxu0
    %v1824 = vpop.f32.mrb[0].mxu0
    %v1825 = vadd.f32 0.0, %v1824
    %v1826 = vpop.f32.mrb[0].mxu0
    %1827 = vmatprep.mubr.bf16.mxu0 0
    %1828 = vmatmul.mubr.bf16.gmra.mrb[0].mxu0 %v164
    %v1829 = vpop.f32.mrb[0].mxu0
    %v1830 = vadd.f32 0.0, %v1829
    %v1831 = vpop.f32.mrb[0].mxu0
    %v1832 = vpop.f32.mrb[0].mxu0
    %v1833 = vadd.f32 0.0, %v1832
    %v1834 = vpop.f32.mrb[0].mxu0
    %1835 = vmatprep.mubr.bf16.mxu0 0
    %1836 = vmatmul.mubr.bf16.gmra.mrb[0].mxu0 %v167
    %v1837 = vpop.f32.mrb[0].mxu0
    %v1838 = vadd.f32 0.0, %v1837
    %v1839 = vpop.f32.mrb[0].mxu0
    %v1840 = vpop.f32.mrb[0].mxu0
    %v1841 = vadd.f32 0.0, %v1840
    %v1842 = vpop.f32.mrb[0].mxu0
    %1843 = vmatprep.mubr.bf16.mxu0 0
    %1844 = vmatmul.mubr.bf16.gmra.mrb[0].mxu0 %v170
    %v1845 = vpop.f32.mrb[0].mxu0
    %v1846 = vadd.f32 0.0, %v1845
    %v1847 = vpop.f32.mrb[0].mxu0
    %v1848 = vpop.f32.mrb[0].mxu0
    %v1849 = vadd.f32 0.0, %v1848
    %v1850 = vpop.f32.mrb[0].mxu0
    %1851 = vdwg.mxu0
    %v1856 = vunpack.c.l.b16 %v1734
    %v1857 = vunpack.c.l.b16 %v1735
    %v1858 = vunpack.c.l.b16 %v1736
    %v1859 = vunpack.c.l.b16 %v1737
    %v1860 = vpack.c.b16 %v1857, %v1856
    %v1861 = vpack.c.b16 %v1859, %v1858
    %1864 = vmatprep.subr.bf16.mxu0 0
    %1865 = vmatpush1.bf16.msra.mxu0 %v1860
    %1866 = vmatprep.subr.bf16.mxu0 0
    %1867 = vmatpush1.bf16.msra.mxu0 %v1861
    %1868 = vmatprep.subr.bf16.mxu0 0
    %1869 = vmatpush1.bf16.msra.mxu0 0
    %1870 = vmatprep.subr.bf16.mxu0 0
    %1871 = vmatpush1.bf16.msra.mxu0 0
    %1872 = vmatprep.subr.bf16.mxu0 0
    %1873 = vmatpush1.bf16.msra.mxu0 0
    %1874 = vmatprep.subr.bf16.mxu0 0
    %1875 = vmatpush1.bf16.msra.mxu0 0
    %1876 = vmatprep.subr.bf16.mxu0 0
    %1877 = vmatpush1.bf16.msra.mxu0 0
    %1878 = vmatprep.subr.bf16.mxu0 0
    %1879 = vmatpush1.bf16.msra.mxu0 0
    %1880 = vmatprep.subr.bf16.mxu0 0
    %1881 = vmatpush1.bf16.msra.mxu0 0
    %1882 = vmatprep.subr.bf16.mxu0 0
    %1883 = vmatpush1.bf16.msra.mxu0 0
    %1884 = vmatprep.subr.bf16.mxu0 0
    %1885 = vmatpush1.bf16.msra.mxu0 0
    %1886 = vmatprep.subr.bf16.mxu0 0
    %1887 = vmatpush1.bf16.msra.mxu0 0
    %1888 = vmatprep.subr.bf16.mxu0 0
    %1889 = vmatpush1.bf16.msra.mxu0 0
    %1890 = vmatprep.subr.bf16.mxu0 0
    %1891 = vmatpush1.bf16.msra.mxu0 0
    %1892 = vmatprep.subr.bf16.mxu0 0
    %1893 = vmatpush1.bf16.msra.mxu0 0
    %1894 = vmatprep.subr.bf16.mxu0 0
    %1895 = vmatpush1.bf16.msra.mxu0 0
    %1896 = vmatprep.mubr.bf16.mxu0 0
    %1897 = vmatmul.mubr.bf16.gmra.mrb[0].mxu0 %v322
    %v1898 = vpop.f32.mrb[0].mxu0
    %v1899 = vadd.f32 %v1790, %v1898
    %v1900 = vpop.f32.mrb[0].mxu0
    %v1901 = vpop.f32.mrb[0].mxu0
    %v1902 = vadd.f32 %v1793, %v1901
    %v1903 = vpop.f32.mrb[0].mxu0
    %1904 = vmatprep.mubr.bf16.mxu0 0
    %1905 = vmatmul.mubr.bf16.gmra.mrb[0].mxu0 %v325
    %v1906 = vpop.f32.mrb[0].mxu0
    %v1907 = vadd.f32 %v1798, %v1906
    %v1908 = vpop.f32.mrb[0].mxu0
    %v1909 = vpop.f32.mrb[0].mxu0
    %v1910 = vadd.f32 %v1801, %v1909
    %v1911 = vpop.f32.mrb[0].mxu0
    %1912 = vmatprep.mubr.bf16.mxu0 0
    %1913 = vmatmul.mubr.bf16.gmra.mrb[0].mxu0 %v328
    %v1914 = vpop.f32.mrb[0].mxu0
    %v1915 = vadd.f32 %v1806, %v1914
    %v1916 = vpop.f32.mrb[0].mxu0
    %v1917 = vpop.f32.mrb[0].mxu0
    %v1918 = vadd.f32 %v1809, %v1917
    %v1919 = vpop.f32.mrb[0].mxu0
    %1920 = vmatprep.mubr.bf16.mxu0 0
    %1921 = vmatmul.mubr.bf16.gmra.mrb[0].mxu0 %v331
    %v1922 = vpop.f32.mrb[0].mxu0
    %v1923 = vadd.f32 %v1814, %v1922
    %v1924 = vpop.f32.mrb[0].mxu0
    %v1925 = vpop.f32.mrb[0].mxu0
    %v1926 = vadd.f32 %v1817, %v1925
    %v1927 = vpop.f32.mrb[0].mxu0
    %1928 = vmatprep.mubr.bf16.mxu0 0
    %1929 = vmatmul.mubr.bf16.gmra.mrb[0].mxu0 %v334
    %v1930 = vpop.f32.mrb[0].mxu0
    %v1931 = vadd.f32 %v1822, %v1930
    %v1932 = vpop.f32.mrb[0].mxu0
    %v1933 = vpop.f32.mrb[0].mxu0
    %v1934 = vadd.f32 %v1825, %v1933
    %v1935 = vpop.f32.mrb[0].mxu0
    %1936 = vmatprep.mubr.bf16.mxu0 0
    %1937 = vmatmul.mubr.bf16.gmra.mrb[0].mxu0 %v337
    %v1938 = vpop.f32.mrb[0].mxu0
    %v1939 = vadd.f32 %v1830, %v1938
    %v1940 = vpop.f32.mrb[0].mxu0
    %v1941 = vpop.f32.mrb[0].mxu0
    %v1942 = vadd.f32 %v1833, %v1941
    %v1943 = vpop.f32.mrb[0].mxu0
    %1944 = vmatprep.mubr.bf16.mxu0 0
    %1945 = vmatmul.mubr.bf16.gmra.mrb[0].mxu0 %v340
    %v1946 = vpop.f32.mrb[0].mxu0
    %v1947 = vadd.f32 %v1838, %v1946
    %v1948 = vpop.f32.mrb[0].mxu0
    %v1949 = vpop.f32.mrb[0].mxu0
    %v1950 = vadd.f32 %v1841, %v1949
    %v1951 = vpop.f32.mrb[0].mxu0
    %1952 = vmatprep.mubr.bf16.mxu0 0
    %1953 = vmatmul.mubr.bf16.gmra.mrb[0].mxu0 %v343
    %v1954 = vpop.f32.mrb[0].mxu0
    %v1955 = vadd.f32 %v1846, %v1954
    %v1956 = vpop.f32.mrb[0].mxu0
    %v1957 = vpop.f32.mrb[0].mxu0
    %v1958 = vadd.f32 %v1849, %v1957
    %v1959 = vpop.f32.mrb[0].mxu0
    %1960 = vdwg.mxu0
    %v1961 = vpack.c.bf16 %v1726, %v1725
    %v1962 = vpack.c.bf16 %v1728, %v1727
    %1963 = vmatprep.subr.bf16.mxu0 0
    %1964 = vmatpush1.bf16.msra.mxu0 %v1961
    %1965 = vmatprep.subr.bf16.mxu0 0
    %1966 = vmatpush1.bf16.msra.mxu0 %v1962
    %1967 = vmatprep.subr.bf16.mxu0 0
    %1968 = vmatpush1.bf16.msra.mxu0 0
    %1969 = vmatprep.subr.bf16.mxu0 0
    %1970 = vmatpush1.bf16.msra.mxu0 0
    %1971 = vmatprep.subr.bf16.mxu0 0
    %1972 = vmatpush1.bf16.msra.mxu0 0
    %1973 = vmatprep.subr.bf16.mxu0 0
    %1974 = vmatpush1.bf16.msra.mxu0 0
    %1975 = vmatprep.subr.bf16.mxu0 0
    %1976 = vmatpush1.bf16.msra.mxu0 0
    %1977 = vmatprep.subr.bf16.mxu0 0
    %1978 = vmatpush1.bf16.msra.mxu0 0
    %1979 = vmatprep.subr.bf16.mxu0 0
    %1980 = vmatpush1.bf16.msra.mxu0 0
    %1981 = vmatprep.subr.bf16.mxu0 0
    %1982 = vmatpush1.bf16.msra.mxu0 0
    %1983 = vmatprep.subr.bf16.mxu0 0
    %1984 = vmatpush1.bf16.msra.mxu0 0
    %1985 = vmatprep.subr.bf16.mxu0 0
    %1986 = vmatpush1.bf16.msra.mxu0 0
    %1987 = vmatprep.subr.bf16.mxu0 0
    %1988 = vmatpush1.bf16.msra.mxu0 0
    %1989 = vmatprep.subr.bf16.mxu0 0
    %1990 = vmatpush1.bf16.msra.mxu0 0
    %1991 = vmatprep.subr.bf16.mxu0 0
    %1992 = vmatpush1.bf16.msra.mxu0 0
    %1993 = vmatprep.subr.bf16.mxu0 0
    %1994 = vmatpush1.bf16.msra.mxu0 0
    %1995 = vmatprep.mubr.bf16.mxu0 0
    %1996 = vmatmul.mubr.bf16.gmra.mrb[0].mxu0 %v483
    %v1997 = vpop.f32.mrb[0].mxu0
    %v1998 = vadd.f32 0.0, %v1997
    %v1999 = vpop.f32.mrb[0].mxu0
    %v2000 = vpop.f32.mrb[0].mxu0
    %v2001 = vadd.f32 0.0, %v2000
    %v2002 = vpop.f32.mrb[0].mxu0
    %2003 = vmatprep.mubr.bf16.mxu0 0
    %2004 = vmatmul.mubr.bf16.gmra.mrb[0].mxu0 %v486
    %v2005 = vpop.f32.mrb[0].mxu0
    %v2006 = vadd.f32 0.0, %v2005
    %v2007 = vpop.f32.mrb[0].mxu0
    %v2008 = vpop.f32.mrb[0].mxu0
    %v2009 = vadd.f32 0.0, %v2008
    %v2010 = vpop.f32.mrb[0].mxu0
    %2011 = vmatprep.mubr.bf16.mxu0 0
    %2012 = vmatmul.mubr.bf16.gmra.mrb[0].mxu0 %v489
    %v2013 = vpop.f32.mrb[0].mxu0
    %v2014 = vadd.f32 0.0, %v2013
    %v2015 = vpop.f32.mrb[0].mxu0
    %v2016 = vpop.f32.mrb[0].mxu0
    %v2017 = vadd.f32 0.0, %v2016
    %v2018 = vpop.f32.mrb[0].mxu0
    %2019 = vmatprep.mubr.bf16.mxu0 0
    %2020 = vmatmul.mubr.bf16.gmra.mrb[0].mxu0 %v492
    %v2021 = vpop.f32.mrb[0].mxu0
    %v2022 = vadd.f32 0.0, %v2021
    %v2023 = vpop.f32.mrb[0].mxu0
    %v2024 = vpop.f32.mrb[0].mxu0
    %v2025 = vadd.f32 0.0, %v2024
    %v2026 = vpop.f32.mrb[0].mxu0
    %2027 = vmatprep.mubr.bf16.mxu0 0
    %2028 = vmatmul.mubr.bf16.gmra.mrb[0].mxu0 %v495
    %v2029 = vpop.f32.mrb[0].mxu0
    %v2030 = vadd.f32 0.0, %v2029
    %v2031 = vpop.f32.mrb[0].mxu0
    %v2032 = vpop.f32.mrb[0].mxu0
    %v2033 = vadd.f32 0.0, %v2032
    %v2034 = vpop.f32.mrb[0].mxu0
    %2035 = vmatprep.mubr.bf16.mxu0 0
    %2036 = vmatmul.mubr.bf16.gmra.mrb[0].mxu0 %v498
    %v2037 = vpop.f32.mrb[0].mxu0
    %v2038 = vadd.f32 0.0, %v2037
    %v2039 = vpop.f32.mrb[0].mxu0
    %v2040 = vpop.f32.mrb[0].mxu0
    %v2041 = vadd.f32 0.0, %v2040
    %v2042 = vpop.f32.mrb[0].mxu0
    %2043 = vmatprep.mubr.bf16.mxu0 0
    %2044 = vmatmul.mubr.bf16.gmra.mrb[0].mxu0 %v501
    %v2045 = vpop.f32.mrb[0].mxu0
    %v2046 = vadd.f32 0.0, %v2045
    %v2047 = vpop.f32.mrb[0].mxu0
    %v2048 = vpop.f32.mrb[0].mxu0
    %v2049 = vadd.f32 0.0, %v2048
    %v2050 = vpop.f32.mrb[0].mxu0
    %2051 = vmatprep.mubr.bf16.mxu0 0
    %2052 = vmatmul.mubr.bf16.gmra.mrb[0].mxu0 %v504
    %v2053 = vpop.f32.mrb[0].mxu0
    %v2054 = vadd.f32 0.0, %v2053
    %v2055 = vpop.f32.mrb[0].mxu0
    %v2056 = vpop.f32.mrb[0].mxu0
    %v2057 = vadd.f32 0.0, %v2056
    %v2058 = vpop.f32.mrb[0].mxu0
    %2059 = vdwg.mxu0
    %v2060 = vadd.f32 %v1899, %v1998
    %v2061 = vadd.f32 %v1902, %v2001
    %v2062 = vadd.f32 %v1907, %v2006
    %v2063 = vadd.f32 %v1910, %v2009
    %v2064 = vadd.f32 %v1915, %v2014
    %v2065 = vadd.f32 %v1918, %v2017
    %v2066 = vadd.f32 %v1923, %v2022
    %v2067 = vadd.f32 %v1926, %v2025
    %v2068 = vadd.f32 %v1931, %v2030
    %v2069 = vadd.f32 %v1934, %v2033
    %v2070 = vadd.f32 %v1939, %v2038
    %v2071 = vadd.f32 %v1942, %v2041
    %v2072 = vadd.f32 %v1947, %v2046
    %v2073 = vadd.f32 %v1950, %v2049
    %v2074 = vadd.f32 %v1955, %v2054
    %v2075 = vadd.f32 %v1958, %v2057
    %v2076 = vadd.f32 %v2060, %v622
    %v2077 = vadd.f32 %v2061, %v627
    %v2078 = vadd.f32 %v2062, %v632
    %v2079 = vadd.f32 %v2063, %v637
    %v2080 = vadd.f32 %v2064, %v642
    %v2081 = vadd.f32 %v2065, %v647
    %v2082 = vadd.f32 %v2066, %v652
    %v2083 = vadd.f32 %v2067, %v657
    %v2084 = vadd.f32 %v2068, %v662
    %v2085 = vadd.f32 %v2069, %v667
    %v2086 = vadd.f32 %v2070, %v672
    %v2087 = vadd.f32 %v2071, %v677
    %v2088 = vadd.f32 %v2072, %v682
    %v2089 = vadd.f32 %v2073, %v687
    %v2090 = vadd.f32 %v2074, %v692
    %v2091 = vadd.f32 %v2075, %v697
    %v2092 = vxor.u32 %v2076, 2147483648
    %v2093 = vxor.u32 %v2077, 2147483648
    %v2094 = vxor.u32 %v2078, 2147483648
    %v2095 = vxor.u32 %v2079, 2147483648
    %v2096 = vmul.f32 %v2092, 1.442695
    %v2097 = vpow.pop %v2096
    %v2098 = vmul.f32 %v2093, 1.442695
    %v2099 = vpow.pop %v2098
    %v2100 = vmul.f32 %v2094, 1.442695
    %v2101 = vpow.pop %v2100
    %v2102 = vmul.f32 %v2095, 1.442695
    %v2103 = vpow.pop %v2102
    %v2104 = vadd.f32 %v2097, 1.0
    %v2105 = vadd.f32 %v2099, 1.0
    %v2106 = vadd.f32 %v2101, 1.0
    %v2107 = vadd.f32 %v2103, 1.0
    %v2108 = vrcp.pop %v2104
    %v2109 = vmul.f32 1.0, %v2108
    %v2110 = vrcp.pop %v2105
    %v2111 = vmul.f32 1.0, %v2110
    %v2112 = vrcp.pop %v2106
    %v2113 = vmul.f32 1.0, %v2112
    %v2114 = vrcp.pop %v2107
    %v2115 = vmul.f32 1.0, %v2114
    %v2116 = vxor.u32 %v2080, 2147483648
    %v2117 = vxor.u32 %v2081, 2147483648
    %v2118 = vxor.u32 %v2082, 2147483648
    %v2119 = vxor.u32 %v2083, 2147483648
    %v2120 = vmul.f32 %v2116, 1.442695
    %v2121 = vpow.pop %v2120
    %v2122 = vmul.f32 %v2117, 1.442695
    %v2123 = vpow.pop %v2122
    %v2124 = vmul.f32 %v2118, 1.442695
    %v2125 = vpow.pop %v2124
    %v2126 = vmul.f32 %v2119, 1.442695
    %v2127 = vpow.pop %v2126
    %v2128 = vadd.f32 %v2121, 1.0
    %v2129 = vadd.f32 %v2123, 1.0
    %v2130 = vadd.f32 %v2125, 1.0
    %v2131 = vadd.f32 %v2127, 1.0
    %v2132 = vrcp.pop %v2128
    %v2133 = vmul.f32 1.0, %v2132
    %v2134 = vrcp.pop %v2129
    %v2135 = vmul.f32 1.0, %v2134
    %v2136 = vrcp.pop %v2130
    %v2137 = vmul.f32 1.0, %v2136
    %v2138 = vrcp.pop %v2131
    %v2139 = vmul.f32 1.0, %v2138
    %v2140 = vtanh.pop %v2084
    %v2141 = vtanh.pop %v2085
    %v2142 = vtanh.pop %v2086
    %v2143 = vtanh.pop %v2087
    %v2144 = vxor.u32 %v2088, 2147483648
    %v2145 = vxor.u32 %v2089, 2147483648
    %v2146 = vxor.u32 %v2090, 2147483648
    %v2147 = vxor.u32 %v2091, 2147483648
    %v2148 = vmul.f32 %v2144, 1.442695
    %v2149 = vpow.pop %v2148
    %v2150 = vmul.f32 %v2145, 1.442695
    %v2151 = vpow.pop %v2150
    %v2152 = vmul.f32 %v2146, 1.442695
    %v2153 = vpow.pop %v2152
    %v2154 = vmul.f32 %v2147, 1.442695
    %v2155 = vpow.pop %v2154
    %v2156 = vadd.f32 %v2149, 1.0
    %v2157 = vadd.f32 %v2151, 1.0
    %v2158 = vadd.f32 %v2153, 1.0
    %v2159 = vadd.f32 %v2155, 1.0
    %v2160 = vrcp.pop %v2156
    %v2161 = vmul.f32 1.0, %v2160
    %v2162 = vrcp.pop %v2157
    %v2163 = vmul.f32 1.0, %v2162
    %v2164 = vrcp.pop %v2158
    %v2165 = vmul.f32 1.0, %v2164
    %v2166 = vrcp.pop %v2159
    %v2167 = vmul.f32 1.0, %v2166
    %v2168 = vmul.f32 %v2133, %v1717
    %v2169 = vmul.f32 %v2135, %v1718
    %v2170 = vmul.f32 %v2137, %v1719
    %v2171 = vmul.f32 %v2139, %v1720
    %v2172 = vmul.f32 %v2109, %v2140
    %v2173 = vmul.f32 %v2111, %v2141
    %v2174 = vmul.f32 %v2113, %v2142
    %v2175 = vmul.f32 %v2115, %v2143
    %v2176 = vadd.f32 %v2168, %v2172
    %v2177 = vadd.f32 %v2169, %v2173
    %v2178 = vadd.f32 %v2170, %v2174
    %v2179 = vadd.f32 %v2171, %v2175
    %v2180 = vtanh.pop %v2176
    %v2181 = vtanh.pop %v2177
    %v2182 = vtanh.pop %v2178
    %v2183 = vtanh.pop %v2179
    %v2184 = vmul.f32 %v2161, %v2180
    %v2185 = vmul.f32 %v2163, %v2181
    %v2186 = vmul.f32 %v2165, %v2182
    %v2187 = vmul.f32 %v2167, %v2183
    %v2188 = vadd.f32 %v1729, %v2184
    %v2189 = vadd.f32 %v1730, %v2185
    %v2190 = vadd.f32 %v1731, %v2186
    %v2191 = vadd.f32 %v1732, %v2187
    %2192 = vmatprep.subr.bf16.mxu0 0
    %2193 = vmatpush1.bf16.msra.mxu0 %v1860
    %2194 = vmatprep.subr.bf16.mxu0 0
    %2195 = vmatpush1.bf16.msra.mxu0 %v1861
    %2196 = vmatprep.subr.bf16.mxu0 0
    %2197 = vmatpush1.bf16.msra.mxu0 0
    %2198 = vmatprep.subr.bf16.mxu0 0
    %2199 = vmatpush1.bf16.msra.mxu0 0
    %2200 = vmatprep.subr.bf16.mxu0 0
    %2201 = vmatpush1.bf16.msra.mxu0 0
    %2202 = vmatprep.subr.bf16.mxu0 0
    %2203 = vmatpush1.bf16.msra.mxu0 0
    %2204 = vmatprep.subr.bf16.mxu0 0
    %2205 = vmatpush1.bf16.msra.mxu0 0
    %2206 = vmatprep.subr.bf16.mxu0 0
    %2207 = vmatpush1.bf16.msra.mxu0 0
    %2208 = vmatprep.subr.bf16.mxu0 0
    %2209 = vmatpush1.bf16.msra.mxu0 0
    %2210 = vmatprep.subr.bf16.mxu0 0
    %2211 = vmatpush1.bf16.msra.mxu0 0
    %2212 = vmatprep.subr.bf16.mxu0 0
    %2213 = vmatpush1.bf16.msra.mxu0 0
    %2214 = vmatprep.subr.bf16.mxu0 0
    %2215 = vmatpush1.bf16.msra.mxu0 0
    %2216 = vmatprep.subr.bf16.mxu0 0
    %2217 = vmatpush1.bf16.msra.mxu0 0
    %2218 = vmatprep.subr.bf16.mxu0 0
    %2219 = vmatpush1.bf16.msra.mxu0 0
    %2220 = vmatprep.subr.bf16.mxu0 0
    %2221 = vmatpush1.bf16.msra.mxu0 0
    %2222 = vmatprep.subr.bf16.mxu0 0
    %2223 = vmatpush1.bf16.msra.mxu0 0
    %2224 = vmatprep.mubr.bf16.mxu0 0
    %2225 = vmatmul.mubr.bf16.gmra.mrb[0].mxu0 %v149
    %v2226 = vpop.f32.mrb[0].mxu0
    %v2227 = vadd.f32 0.0, %v2226
    %v2228 = vpop.f32.mrb[0].mxu0
    %v2229 = vpop.f32.mrb[0].mxu0
    %v2230 = vadd.f32 0.0, %v2229
    %v2231 = vpop.f32.mrb[0].mxu0
    %2232 = vmatprep.mubr.bf16.mxu0 0
    %2233 = vmatmul.mubr.bf16.gmra.mrb[0].mxu0 %v152
    %v2234 = vpop.f32.mrb[0].mxu0
    %v2235 = vadd.f32 0.0, %v2234
    %v2236 = vpop.f32.mrb[0].mxu0
    %v2237 = vpop.f32.mrb[0].mxu0
    %v2238 = vadd.f32 0.0, %v2237
    %v2239 = vpop.f32.mrb[0].mxu0
    %2240 = vmatprep.mubr.bf16.mxu0 0
    %2241 = vmatmul.mubr.bf16.gmra.mrb[0].mxu0 %v155
    %v2242 = vpop.f32.mrb[0].mxu0
    %v2243 = vadd.f32 0.0, %v2242
    %v2244 = vpop.f32.mrb[0].mxu0
    %v2245 = vpop.f32.mrb[0].mxu0
    %v2246 = vadd.f32 0.0, %v2245
    %v2247 = vpop.f32.mrb[0].mxu0
    %2248 = vmatprep.mubr.bf16.mxu0 0
    %2249 = vmatmul.mubr.bf16.gmra.mrb[0].mxu0 %v158
    %v2250 = vpop.f32.mrb[0].mxu0
    %v2251 = vadd.f32 0.0, %v2250
    %v2252 = vpop.f32.mrb[0].mxu0
    %v2253 = vpop.f32.mrb[0].mxu0
    %v2254 = vadd.f32 0.0, %v2253
    %v2255 = vpop.f32.mrb[0].mxu0
    %2256 = vmatprep.mubr.bf16.mxu0 0
    %2257 = vmatmul.mubr.bf16.gmra.mrb[0].mxu0 %v161
    %v2258 = vpop.f32.mrb[0].mxu0
    %v2259 = vadd.f32 0.0, %v2258
    %v2260 = vpop.f32.mrb[0].mxu0
    %v2261 = vpop.f32.mrb[0].mxu0
    %v2262 = vadd.f32 0.0, %v2261
    %v2263 = vpop.f32.mrb[0].mxu0
    %2264 = vmatprep.mubr.bf16.mxu0 0
    %2265 = vmatmul.mubr.bf16.gmra.mrb[0].mxu0 %v164
    %v2266 = vpop.f32.mrb[0].mxu0
    %v2267 = vadd.f32 0.0, %v2266
    %v2268 = vpop.f32.mrb[0].mxu0
    %v2269 = vpop.f32.mrb[0].mxu0
    %v2270 = vadd.f32 0.0, %v2269
    %v2271 = vpop.f32.mrb[0].mxu0
    %2272 = vmatprep.mubr.bf16.mxu0 0
    %2273 = vmatmul.mubr.bf16.gmra.mrb[0].mxu0 %v167
    %v2274 = vpop.f32.mrb[0].mxu0
    %v2275 = vadd.f32 0.0, %v2274
    %v2276 = vpop.f32.mrb[0].mxu0
    %v2277 = vpop.f32.mrb[0].mxu0
    %v2278 = vadd.f32 0.0, %v2277
    %v2279 = vpop.f32.mrb[0].mxu0
    %2280 = vmatprep.mubr.bf16.mxu0 0
    %2281 = vmatmul.mubr.bf16.gmra.mrb[0].mxu0 %v170
    %v2282 = vpop.f32.mrb[0].mxu0
    %v2283 = vadd.f32 0.0, %v2282
    %v2284 = vpop.f32.mrb[0].mxu0
    %v2285 = vpop.f32.mrb[0].mxu0
    %v2286 = vadd.f32 0.0, %v2285
    %v2287 = vpop.f32.mrb[0].mxu0
    %2288 = vdwg.mxu0
    %2289 = vmatprep.subr.bf16.mxu0 0
    %2290 = vmatpush1.bf16.msra.mxu0 %v1751
    %2291 = vmatprep.subr.bf16.mxu0 0
    %2292 = vmatpush1.bf16.msra.mxu0 %v1752
    %2293 = vmatprep.subr.bf16.mxu0 0
    %2294 = vmatpush1.bf16.msra.mxu0 0
    %2295 = vmatprep.subr.bf16.mxu0 0
    %2296 = vmatpush1.bf16.msra.mxu0 0
    %2297 = vmatprep.subr.bf16.mxu0 0
    %2298 = vmatpush1.bf16.msra.mxu0 0
    %2299 = vmatprep.subr.bf16.mxu0 0
    %2300 = vmatpush1.bf16.msra.mxu0 0
    %2301 = vmatprep.subr.bf16.mxu0 0
    %2302 = vmatpush1.bf16.msra.mxu0 0
    %2303 = vmatprep.subr.bf16.mxu0 0
    %2304 = vmatpush1.bf16.msra.mxu0 0
    %2305 = vmatprep.subr.bf16.mxu0 0
    %2306 = vmatpush1.bf16.msra.mxu0 0
    %2307 = vmatprep.subr.bf16.mxu0 0
    %2308 = vmatpush1.bf16.msra.mxu0 0
    %2309 = vmatprep.subr.bf16.mxu0 0
    %2310 = vmatpush1.bf16.msra.mxu0 0
    %2311 = vmatprep.subr.bf16.mxu0 0
    %2312 = vmatpush1.bf16.msra.mxu0 0
    %2313 = vmatprep.subr.bf16.mxu0 0
    %2314 = vmatpush1.bf16.msra.mxu0 0
    %2315 = vmatprep.subr.bf16.mxu0 0
    %2316 = vmatpush1.bf16.msra.mxu0 0
    %2317 = vmatprep.subr.bf16.mxu0 0
    %2318 = vmatpush1.bf16.msra.mxu0 0
    %2319 = vmatprep.subr.bf16.mxu0 0
    %2320 = vmatpush1.bf16.msra.mxu0 0
    %2321 = vmatprep.mubr.bf16.mxu0 0
    %2322 = vmatmul.mubr.bf16.gmra.mrb[0].mxu0 %v322
    %v2323 = vpop.f32.mrb[0].mxu0
    %v2324 = vadd.f32 %v2227, %v2323
    %v2325 = vpop.f32.mrb[0].mxu0
    %v2326 = vpop.f32.mrb[0].mxu0
    %v2327 = vadd.f32 %v2230, %v2326
    %v2328 = vpop.f32.mrb[0].mxu0
    %2329 = vmatprep.mubr.bf16.mxu0 0
    %2330 = vmatmul.mubr.bf16.gmra.mrb[0].mxu0 %v325
    %v2331 = vpop.f32.mrb[0].mxu0
    %v2332 = vadd.f32 %v2235, %v2331
    %v2333 = vpop.f32.mrb[0].mxu0
    %v2334 = vpop.f32.mrb[0].mxu0
    %v2335 = vadd.f32 %v2238, %v2334
    %v2336 = vpop.f32.mrb[0].mxu0
    %2337 = vmatprep.mubr.bf16.mxu0 0
    %2338 = vmatmul.mubr.bf16.gmra.mrb[0].mxu0 %v328
    %v2339 = vpop.f32.mrb[0].mxu0
    %v2340 = vadd.f32 %v2243, %v2339
    %v2341 = vpop.f32.mrb[0].mxu0
    %v2342 = vpop.f32.mrb[0].mxu0
    %v2343 = vadd.f32 %v2246, %v2342
    %v2344 = vpop.f32.mrb[0].mxu0
    %2345 = vmatprep.mubr.bf16.mxu0 0
    %2346 = vmatmul.mubr.bf16.gmra.mrb[0].mxu0 %v331
    %v2347 = vpop.f32.mrb[0].mxu0
    %v2348 = vadd.f32 %v2251, %v2347
    %v2349 = vpop.f32.mrb[0].mxu0
    %v2350 = vpop.f32.mrb[0].mxu0
    %v2351 = vadd.f32 %v2254, %v2350
    %v2352 = vpop.f32.mrb[0].mxu0
    %2353 = vmatprep.mubr.bf16.mxu0 0
    %2354 = vmatmul.mubr.bf16.gmra.mrb[0].mxu0 %v334
    %v2355 = vpop.f32.mrb[0].mxu0
    %v2356 = vadd.f32 %v2259, %v2355
    %v2357 = vpop.f32.mrb[0].mxu0
    %v2358 = vpop.f32.mrb[0].mxu0
    %v2359 = vadd.f32 %v2262, %v2358
    %v2360 = vpop.f32.mrb[0].mxu0
    %2361 = vmatprep.mubr.bf16.mxu0 0
    %2362 = vmatmul.mubr.bf16.gmra.mrb[0].mxu0 %v337
    %v2363 = vpop.f32.mrb[0].mxu0
    %v2364 = vadd.f32 %v2267, %v2363
    %v2365 = vpop.f32.mrb[0].mxu0
    %v2366 = vpop.f32.mrb[0].mxu0
    %v2367 = vadd.f32 %v2270, %v2366
    %v2368 = vpop.f32.mrb[0].mxu0
    %2369 = vmatprep.mubr.bf16.mxu0 0
    %2370 = vmatmul.mubr.bf16.gmra.mrb[0].mxu0 %v340
    %v2371 = vpop.f32.mrb[0].mxu0
    %v2372 = vadd.f32 %v2275, %v2371
    %v2373 = vpop.f32.mrb[0].mxu0
    %v2374 = vpop.f32.mrb[0].mxu0
    %v2375 = vadd.f32 %v2278, %v2374
    %v2376 = vpop.f32.mrb[0].mxu0
    %2377 = vmatprep.mubr.bf16.mxu0 0
    %2378 = vmatmul.mubr.bf16.gmra.mrb[0].mxu0 %v343
    %v2379 = vpop.f32.mrb[0].mxu0
    %v2380 = vadd.f32 %v2283, %v2379
    %v2381 = vpop.f32.mrb[0].mxu0
    %v2382 = vpop.f32.mrb[0].mxu0
    %v2383 = vadd.f32 %v2286, %v2382
    %v2384 = vpop.f32.mrb[0].mxu0
    %2385 = vdwg.mxu0
    %v2386 = vpack.c.bf16 %v2185, %v2184
    %v2387 = vpack.c.bf16 %v2187, %v2186
    %2388 = vmatprep.subr.bf16.mxu0 0
    %2389 = vmatpush1.bf16.msra.mxu0 %v2386
    %2390 = vmatprep.subr.bf16.mxu0 0
    %2391 = vmatpush1.bf16.msra.mxu0 %v2387
    %2392 = vmatprep.subr.bf16.mxu0 0
    %2393 = vmatpush1.bf16.msra.mxu0 0
    %2394 = vmatprep.subr.bf16.mxu0 0
    %2395 = vmatpush1.bf16.msra.mxu0 0
    %2396 = vmatprep.subr.bf16.mxu0 0
    %2397 = vmatpush1.bf16.msra.mxu0 0
    %2398 = vmatprep.subr.bf16.mxu0 0
    %2399 = vmatpush1.bf16.msra.mxu0 0
    %2400 = vmatprep.subr.bf16.mxu0 0
    %2401 = vmatpush1.bf16.msra.mxu0 0
    %2402 = vmatprep.subr.bf16.mxu0 0
    %2403 = vmatpush1.bf16.msra.mxu0 0
    %2404 = vmatprep.subr.bf16.mxu0 0
    %2405 = vmatpush1.bf16.msra.mxu0 0
    %2406 = vmatprep.subr.bf16.mxu0 0
    %2407 = vmatpush1.bf16.msra.mxu0 0
    %2408 = vmatprep.subr.bf16.mxu0 0
    %2409 = vmatpush1.bf16.msra.mxu0 0
    %2410 = vmatprep.subr.bf16.mxu0 0
    %2411 = vmatpush1.bf16.msra.mxu0 0
    %2412 = vmatprep.subr.bf16.mxu0 0
    %2413 = vmatpush1.bf16.msra.mxu0 0
    %2414 = vmatprep.subr.bf16.mxu0 0
    %2415 = vmatpush1.bf16.msra.mxu0 0
    %2416 = vmatprep.subr.bf16.mxu0 0
    %2417 = vmatpush1.bf16.msra.mxu0 0
    %2418 = vmatprep.subr.bf16.mxu0 0
    %2419 = vmatpush1.bf16.msra.mxu0 0
    %2420 = vmatprep.mubr.bf16.mxu0 0
    %2421 = vmatmul.mubr.bf16.gmra.mrb[0].mxu0 %v483
    %v2422 = vpop.f32.mrb[0].mxu0
    %v2423 = vadd.f32 0.0, %v2422
    %v2424 = vpop.f32.mrb[0].mxu0
    %v2425 = vpop.f32.mrb[0].mxu0
    %v2426 = vadd.f32 0.0, %v2425
    %v2427 = vpop.f32.mrb[0].mxu0
    %2428 = vmatprep.mubr.bf16.mxu0 0
    %2429 = vmatmul.mubr.bf16.gmra.mrb[0].mxu0 %v486
    %v2430 = vpop.f32.mrb[0].mxu0
    %v2431 = vadd.f32 0.0, %v2430
    %v2432 = vpop.f32.mrb[0].mxu0
    %v2433 = vpop.f32.mrb[0].mxu0
    %v2434 = vadd.f32 0.0, %v2433
    %v2435 = vpop.f32.mrb[0].mxu0
    %2436 = vmatprep.mubr.bf16.mxu0 0
    %2437 = vmatmul.mubr.bf16.gmra.mrb[0].mxu0 %v489
    %v2438 = vpop.f32.mrb[0].mxu0
    %v2439 = vadd.f32 0.0, %v2438
    %v2440 = vpop.f32.mrb[0].mxu0
    %v2441 = vpop.f32.mrb[0].mxu0
    %v2442 = vadd.f32 0.0, %v2441
    %v2443 = vpop.f32.mrb[0].mxu0
    %2444 = vmatprep.mubr.bf16.mxu0 0
    %2445 = vmatmul.mubr.bf16.gmra.mrb[0].mxu0 %v492
    %v2446 = vpop.f32.mrb[0].mxu0
    %v2447 = vadd.f32 0.0, %v2446
    %v2448 = vpop.f32.mrb[0].mxu0
    %v2449 = vpop.f32.mrb[0].mxu0
    %v2450 = vadd.f32 0.0, %v2449
    %v2451 = vpop.f32.mrb[0].mxu0
    %2452 = vmatprep.mubr.bf16.mxu0 0
    %2453 = vmatmul.mubr.bf16.gmra.mrb[0].mxu0 %v495
    %v2454 = vpop.f32.mrb[0].mxu0
    %v2455 = vadd.f32 0.0, %v2454
    %v2456 = vpop.f32.mrb[0].mxu0
    %v2457 = vpop.f32.mrb[0].mxu0
    %v2458 = vadd.f32 0.0, %v2457
    %v2459 = vpop.f32.mrb[0].mxu0
    %2460 = vmatprep.mubr.bf16.mxu0 0
    %2461 = vmatmul.mubr.bf16.gmra.mrb[0].mxu0 %v498
    %v2462 = vpop.f32.mrb[0].mxu0
    %v2463 = vadd.f32 0.0, %v2462
    %v2464 = vpop.f32.mrb[0].mxu0
    %v2465 = vpop.f32.mrb[0].mxu0
    %v2466 = vadd.f32 0.0, %v2465
    %v2467 = vpop.f32.mrb[0].mxu0
    %2468 = vmatprep.mubr.bf16.mxu0 0
    %2469 = vmatmul.mubr.bf16.gmra.mrb[0].mxu0 %v501
    %v2470 = vpop.f32.mrb[0].mxu0
    %v2471 = vadd.f32 0.0, %v2470
    %v2472 = vpop.f32.mrb[0].mxu0
    %v2473 = vpop.f32.mrb[0].mxu0
    %v2474 = vadd.f32 0.0, %v2473
    %v2475 = vpop.f32.mrb[0].mxu0
    %2476 = vmatprep.mubr.bf16.mxu0 0
    %2477 = vmatmul.mubr.bf16.gmra.mrb[0].mxu0 %v504
    %v2478 = vpop.f32.mrb[0].mxu0
    %v2479 = vadd.f32 0.0, %v2478
    %v2480 = vpop.f32.mrb[0].mxu0
    %v2481 = vpop.f32.mrb[0].mxu0
    %v2482 = vadd.f32 0.0, %v2481
    %v2483 = vpop.f32.mrb[0].mxu0
    %2484 = vdwg.mxu0
    %v2485 = vadd.f32 %v2324, %v2423
    %v2486 = vadd.f32 %v2327, %v2426
    %v2487 = vadd.f32 %v2332, %v2431
    %v2488 = vadd.f32 %v2335, %v2434
    %v2489 = vadd.f32 %v2340, %v2439
    %v2490 = vadd.f32 %v2343, %v2442
    %v2491 = vadd.f32 %v2348, %v2447
    %v2492 = vadd.f32 %v2351, %v2450
    %v2493 = vadd.f32 %v2356, %v2455
    %v2494 = vadd.f32 %v2359, %v2458
    %v2495 = vadd.f32 %v2364, %v2463
    %v2496 = vadd.f32 %v2367, %v2466
    %v2497 = vadd.f32 %v2372, %v2471
    %v2498 = vadd.f32 %v2375, %v2474
    %v2499 = vadd.f32 %v2380, %v2479
    %v2500 = vadd.f32 %v2383, %v2482
    %v2501 = vadd.f32 %v2485, %v622
    %v2502 = vadd.f32 %v2486, %v627
    %v2503 = vadd.f32 %v2487, %v632
    %v2504 = vadd.f32 %v2488, %v637
    %v2505 = vadd.f32 %v2489, %v642
    %v2506 = vadd.f32 %v2490, %v647
    %v2507 = vadd.f32 %v2491, %v652
    %v2508 = vadd.f32 %v2492, %v657
    %v2509 = vadd.f32 %v2493, %v662
    %v2510 = vadd.f32 %v2494, %v667
    %v2511 = vadd.f32 %v2495, %v672
    %v2512 = vadd.f32 %v2496, %v677
    %v2513 = vadd.f32 %v2497, %v682
    %v2514 = vadd.f32 %v2498, %v687
    %v2515 = vadd.f32 %v2499, %v692
    %v2516 = vadd.f32 %v2500, %v697
    %v2517 = vxor.u32 %v2501, 2147483648
    %v2518 = vxor.u32 %v2502, 2147483648
    %v2519 = vxor.u32 %v2503, 2147483648
    %v2520 = vxor.u32 %v2504, 2147483648
    %v2521 = vmul.f32 %v2517, 1.442695
    %v2522 = vpow.pop %v2521
    %v2523 = vmul.f32 %v2518, 1.442695
    %v2524 = vpow.pop %v2523
    %v2525 = vmul.f32 %v2519, 1.442695
    %v2526 = vpow.pop %v2525
    %v2527 = vmul.f32 %v2520, 1.442695
    %v2528 = vpow.pop %v2527
    %v2529 = vadd.f32 %v2522, 1.0
    %v2530 = vadd.f32 %v2524, 1.0
    %v2531 = vadd.f32 %v2526, 1.0
    %v2532 = vadd.f32 %v2528, 1.0
    %v2533 = vrcp.pop %v2529
    %v2534 = vmul.f32 1.0, %v2533
    %v2535 = vrcp.pop %v2530
    %v2536 = vmul.f32 1.0, %v2535
    %v2537 = vrcp.pop %v2531
    %v2538 = vmul.f32 1.0, %v2537
    %v2539 = vrcp.pop %v2532
    %v2540 = vmul.f32 1.0, %v2539
    %v2541 = vxor.u32 %v2505, 2147483648
    %v2542 = vxor.u32 %v2506, 2147483648
    %v2543 = vxor.u32 %v2507, 2147483648
    %v2544 = vxor.u32 %v2508, 2147483648
    %v2545 = vmul.f32 %v2541, 1.442695
    %v2546 = vpow.pop %v2545
    %v2547 = vmul.f32 %v2542, 1.442695
    %v2548 = vpow.pop %v2547
    %v2549 = vmul.f32 %v2543, 1.442695
    %v2550 = vpow.pop %v2549
    %v2551 = vmul.f32 %v2544, 1.442695
    %v2552 = vpow.pop %v2551
    %v2553 = vadd.f32 %v2546, 1.0
    %v2554 = vadd.f32 %v2548, 1.0
    %v2555 = vadd.f32 %v2550, 1.0
    %v2556 = vadd.f32 %v2552, 1.0
    %v2557 = vrcp.pop %v2553
    %v2558 = vmul.f32 1.0, %v2557
    %v2559 = vrcp.pop %v2554
    %v2560 = vmul.f32 1.0, %v2559
    %v2561 = vrcp.pop %v2555
    %v2562 = vmul.f32 1.0, %v2561
    %v2563 = vrcp.pop %v2556
    %v2564 = vmul.f32 1.0, %v2563
    %v2565 = vtanh.pop %v2509
    %v2566 = vtanh.pop %v2510
    %v2567 = vtanh.pop %v2511
    %v2568 = vtanh.pop %v2512
    %v2569 = vxor.u32 %v2513, 2147483648
    %v2570 = vxor.u32 %v2514, 2147483648
    %v2571 = vxor.u32 %v2515, 2147483648
    %v2572 = vxor.u32 %v2516, 2147483648
    %v2573 = vmul.f32 %v2569, 1.442695
    %v2574 = vpow.pop %v2573
    %v2575 = vmul.f32 %v2570, 1.442695
    %v2576 = vpow.pop %v2575
    %v2577 = vmul.f32 %v2571, 1.442695
    %v2578 = vpow.pop %v2577
    %v2579 = vmul.f32 %v2572, 1.442695
    %v2580 = vpow.pop %v2579
    %v2581 = vadd.f32 %v2574, 1.0
    %v2582 = vadd.f32 %v2576, 1.0
    %v2583 = vadd.f32 %v2578, 1.0
    %v2584 = vadd.f32 %v2580, 1.0
    %v2585 = vrcp.pop %v2581
    %v2586 = vmul.f32 1.0, %v2585
    %v2587 = vrcp.pop %v2582
    %v2588 = vmul.f32 1.0, %v2587
    %v2589 = vrcp.pop %v2583
    %v2590 = vmul.f32 1.0, %v2589
    %v2591 = vrcp.pop %v2584
    %v2592 = vmul.f32 1.0, %v2591
    %v2593 = vmul.f32 %v2558, %v2176
    %v2594 = vmul.f32 %v2560, %v2177
    %v2595 = vmul.f32 %v2562, %v2178
    %v2596 = vmul.f32 %v2564, %v2179
    %v2597 = vmul.f32 %v2534, %v2565
    %v2598 = vmul.f32 %v2536, %v2566
    %v2599 = vmul.f32 %v2538, %v2567
    %v2600 = vmul.f32 %v2540, %v2568
    %v2601 = vadd.f32 %v2593, %v2597
    %v2602 = vadd.f32 %v2594, %v2598
    %v2603 = vadd.f32 %v2595, %v2599
    %v2604 = vadd.f32 %v2596, %v2600
    %v2605 = vtanh.pop %v2601
    %v2606 = vtanh.pop %v2602
    %v2607 = vtanh.pop %v2603
    %v2608 = vtanh.pop %v2604
    %v2609 = vmul.f32 %v2586, %v2605
    %v2610 = vmul.f32 %v2588, %v2606
    %v2611 = vmul.f32 %v2590, %v2607
    %v2612 = vmul.f32 %v2592, %v2608
    %v2613 = vadd.f32 %v2188, %v2609
    %v2614 = vadd.f32 %v2189, %v2610
    %v2615 = vadd.f32 %v2190, %v2611
    %v2616 = vadd.f32 %v2191, %v2612
    %2617 = vmatprep.subr.bf16.mxu0 0
    %2618 = vmatpush1.bf16.msra.mxu0 %v1401
    %2619 = vmatprep.subr.bf16.mxu0 0
    %2620 = vmatpush1.bf16.msra.mxu0 %v1402
    %2621 = vmatprep.subr.bf16.mxu0 0
    %2622 = vmatpush1.bf16.msra.mxu0 0
    %2623 = vmatprep.subr.bf16.mxu0 0
    %2624 = vmatpush1.bf16.msra.mxu0 0
    %2625 = vmatprep.subr.bf16.mxu0 0
    %2626 = vmatpush1.bf16.msra.mxu0 0
    %2627 = vmatprep.subr.bf16.mxu0 0
    %2628 = vmatpush1.bf16.msra.mxu0 0
    %2629 = vmatprep.subr.bf16.mxu0 0
    %2630 = vmatpush1.bf16.msra.mxu0 0
    %2631 = vmatprep.subr.bf16.mxu0 0
    %2632 = vmatpush1.bf16.msra.mxu0 0
    %2633 = vmatprep.subr.bf16.mxu0 0
    %2634 = vmatpush1.bf16.msra.mxu0 0
    %2635 = vmatprep.subr.bf16.mxu0 0
    %2636 = vmatpush1.bf16.msra.mxu0 0
    %2637 = vmatprep.subr.bf16.mxu0 0
    %2638 = vmatpush1.bf16.msra.mxu0 0
    %2639 = vmatprep.subr.bf16.mxu0 0
    %2640 = vmatpush1.bf16.msra.mxu0 0
    %2641 = vmatprep.subr.bf16.mxu0 0
    %2642 = vmatpush1.bf16.msra.mxu0 0
    %2643 = vmatprep.subr.bf16.mxu0 0
    %2644 = vmatpush1.bf16.msra.mxu0 0
    %2645 = vmatprep.subr.bf16.mxu0 0
    %2646 = vmatpush1.bf16.msra.mxu0 0
    %2647 = vmatprep.subr.bf16.mxu0 0
    %2648 = vmatpush1.bf16.msra.mxu0 0
    %2649 = vmatprep.mubr.bf16.mxu0 0
    %2650 = vmatmul.mubr.bf16.gmra.mrb[0].mxu0 %v149
    %v2651 = vpop.f32.mrb[0].mxu0
    %v2652 = vadd.f32 0.0, %v2651
    %v2653 = vpop.f32.mrb[0].mxu0
    %v2654 = vpop.f32.mrb[0].mxu0
    %v2655 = vadd.f32 0.0, %v2654
    %v2656 = vpop.f32.mrb[0].mxu0
    %2657 = vmatprep.mubr.bf16.mxu0 0
    %2658 = vmatmul.mubr.bf16.gmra.mrb[0].mxu0 %v152
    %v2659 = vpop.f32.mrb[0].mxu0
    %v2660 = vadd.f32 0.0, %v2659
    %v2661 = vpop.f32.mrb[0].mxu0
    %v2662 = vpop.f32.mrb[0].mxu0
    %v2663 = vadd.f32 0.0, %v2662
    %v2664 = vpop.f32.mrb[0].mxu0
    %2665 = vmatprep.mubr.bf16.mxu0 0
    %2666 = vmatmul.mubr.bf16.gmra.mrb[0].mxu0 %v155
    %v2667 = vpop.f32.mrb[0].mxu0
    %v2668 = vadd.f32 0.0, %v2667
    %v2669 = vpop.f32.mrb[0].mxu0
    %v2670 = vpop.f32.mrb[0].mxu0
    %v2671 = vadd.f32 0.0, %v2670
    %v2672 = vpop.f32.mrb[0].mxu0
    %2673 = vmatprep.mubr.bf16.mxu0 0
    %2674 = vmatmul.mubr.bf16.gmra.mrb[0].mxu0 %v158
    %v2675 = vpop.f32.mrb[0].mxu0
    %v2676 = vadd.f32 0.0, %v2675
    %v2677 = vpop.f32.mrb[0].mxu0
    %v2678 = vpop.f32.mrb[0].mxu0
    %v2679 = vadd.f32 0.0, %v2678
    %v2680 = vpop.f32.mrb[0].mxu0
    %2681 = vmatprep.mubr.bf16.mxu0 0
    %2682 = vmatmul.mubr.bf16.gmra.mrb[0].mxu0 %v161
    %v2683 = vpop.f32.mrb[0].mxu0
    %v2684 = vadd.f32 0.0, %v2683
    %v2685 = vpop.f32.mrb[0].mxu0
    %v2686 = vpop.f32.mrb[0].mxu0
    %v2687 = vadd.f32 0.0, %v2686
    %v2688 = vpop.f32.mrb[0].mxu0
    %2689 = vmatprep.mubr.bf16.mxu0 0
    %2690 = vmatmul.mubr.bf16.gmra.mrb[0].mxu0 %v164
    %v2691 = vpop.f32.mrb[0].mxu0
    %v2692 = vadd.f32 0.0, %v2691
    %v2693 = vpop.f32.mrb[0].mxu0
    %v2694 = vpop.f32.mrb[0].mxu0
    %v2695 = vadd.f32 0.0, %v2694
    %v2696 = vpop.f32.mrb[0].mxu0
    %2697 = vmatprep.mubr.bf16.mxu0 0
    %2698 = vmatmul.mubr.bf16.gmra.mrb[0].mxu0 %v167
    %v2699 = vpop.f32.mrb[0].mxu0
    %v2700 = vadd.f32 0.0, %v2699
    %v2701 = vpop.f32.mrb[0].mxu0
    %v2702 = vpop.f32.mrb[0].mxu0
    %v2703 = vadd.f32 0.0, %v2702
    %v2704 = vpop.f32.mrb[0].mxu0
    %2705 = vmatprep.mubr.bf16.mxu0 0
    %2706 = vmatmul.mubr.bf16.gmra.mrb[0].mxu0 %v170
    %v2707 = vpop.f32.mrb[0].mxu0
    %v2708 = vadd.f32 0.0, %v2707
    %v2709 = vpop.f32.mrb[0].mxu0
    %v2710 = vpop.f32.mrb[0].mxu0
    %v2711 = vadd.f32 0.0, %v2710
    %v2712 = vpop.f32.mrb[0].mxu0
    %2713 = vdwg.mxu0
    %2714 = vmatprep.subr.bf16.mxu0 0
    %2715 = vmatpush1.bf16.msra.mxu0 %v1292
    %2716 = vmatprep.subr.bf16.mxu0 0
    %2717 = vmatpush1.bf16.msra.mxu0 %v1293
    %2718 = vmatprep.subr.bf16.mxu0 0
    %2719 = vmatpush1.bf16.msra.mxu0 0
    %2720 = vmatprep.subr.bf16.mxu0 0
    %2721 = vmatpush1.bf16.msra.mxu0 0
    %2722 = vmatprep.subr.bf16.mxu0 0
    %2723 = vmatpush1.bf16.msra.mxu0 0
    %2724 = vmatprep.subr.bf16.mxu0 0
    %2725 = vmatpush1.bf16.msra.mxu0 0
    %2726 = vmatprep.subr.bf16.mxu0 0
    %2727 = vmatpush1.bf16.msra.mxu0 0
    %2728 = vmatprep.subr.bf16.mxu0 0
    %2729 = vmatpush1.bf16.msra.mxu0 0
    %2730 = vmatprep.subr.bf16.mxu0 0
    %2731 = vmatpush1.bf16.msra.mxu0 0
    %2732 = vmatprep.subr.bf16.mxu0 0
    %2733 = vmatpush1.bf16.msra.mxu0 0
    %2734 = vmatprep.subr.bf16.mxu0 0
    %2735 = vmatpush1.bf16.msra.mxu0 0
    %2736 = vmatprep.subr.bf16.mxu0 0
    %2737 = vmatpush1.bf16.msra.mxu0 0
    %2738 = vmatprep.subr.bf16.mxu0 0
    %2739 = vmatpush1.bf16.msra.mxu0 0
    %2740 = vmatprep.subr.bf16.mxu0 0
    %2741 = vmatpush1.bf16.msra.mxu0 0
    %2742 = vmatprep.subr.bf16.mxu0 0
    %2743 = vmatpush1.bf16.msra.mxu0 0
    %2744 = vmatprep.subr.bf16.mxu0 0
    %2745 = vmatpush1.bf16.msra.mxu0 0
    %2746 = vmatprep.mubr.bf16.mxu0 0
    %2747 = vmatmul.mubr.bf16.gmra.mrb[0].mxu0 %v322
    %v2748 = vpop.f32.mrb[0].mxu0
    %v2749 = vadd.f32 %v2652, %v2748
    %v2750 = vpop.f32.mrb[0].mxu0
    %v2751 = vpop.f32.mrb[0].mxu0
    %v2752 = vadd.f32 %v2655, %v2751
    %v2753 = vpop.f32.mrb[0].mxu0
    %2754 = vmatprep.mubr.bf16.mxu0 0
    %2755 = vmatmul.mubr.bf16.gmra.mrb[0].mxu0 %v325
    %v2756 = vpop.f32.mrb[0].mxu0
    %v2757 = vadd.f32 %v2660, %v2756
    %v2758 = vpop.f32.mrb[0].mxu0
    %v2759 = vpop.f32.mrb[0].mxu0
    %v2760 = vadd.f32 %v2663, %v2759
    %v2761 = vpop.f32.mrb[0].mxu0
    %2762 = vmatprep.mubr.bf16.mxu0 0
    %2763 = vmatmul.mubr.bf16.gmra.mrb[0].mxu0 %v328
    %v2764 = vpop.f32.mrb[0].mxu0
    %v2765 = vadd.f32 %v2668, %v2764
    %v2766 = vpop.f32.mrb[0].mxu0
    %v2767 = vpop.f32.mrb[0].mxu0
    %v2768 = vadd.f32 %v2671, %v2767
    %v2769 = vpop.f32.mrb[0].mxu0
    %2770 = vmatprep.mubr.bf16.mxu0 0
    %2771 = vmatmul.mubr.bf16.gmra.mrb[0].mxu0 %v331
    %v2772 = vpop.f32.mrb[0].mxu0
    %v2773 = vadd.f32 %v2676, %v2772
    %v2774 = vpop.f32.mrb[0].mxu0
    %v2775 = vpop.f32.mrb[0].mxu0
    %v2776 = vadd.f32 %v2679, %v2775
    %v2777 = vpop.f32.mrb[0].mxu0
    %2778 = vmatprep.mubr.bf16.mxu0 0
    %2779 = vmatmul.mubr.bf16.gmra.mrb[0].mxu0 %v334
    %v2780 = vpop.f32.mrb[0].mxu0
    %v2781 = vadd.f32 %v2684, %v2780
    %v2782 = vpop.f32.mrb[0].mxu0
    %v2783 = vpop.f32.mrb[0].mxu0
    %v2784 = vadd.f32 %v2687, %v2783
    %v2785 = vpop.f32.mrb[0].mxu0
    %2786 = vmatprep.mubr.bf16.mxu0 0
    %2787 = vmatmul.mubr.bf16.gmra.mrb[0].mxu0 %v337
    %v2788 = vpop.f32.mrb[0].mxu0
    %v2789 = vadd.f32 %v2692, %v2788
    %v2790 = vpop.f32.mrb[0].mxu0
    %v2791 = vpop.f32.mrb[0].mxu0
    %v2792 = vadd.f32 %v2695, %v2791
    %v2793 = vpop.f32.mrb[0].mxu0
    %2794 = vmatprep.mubr.bf16.mxu0 0
    %2795 = vmatmul.mubr.bf16.gmra.mrb[0].mxu0 %v340
    %v2796 = vpop.f32.mrb[0].mxu0
    %v2797 = vadd.f32 %v2700, %v2796
    %v2798 = vpop.f32.mrb[0].mxu0
    %v2799 = vpop.f32.mrb[0].mxu0
    %v2800 = vadd.f32 %v2703, %v2799
    %v2801 = vpop.f32.mrb[0].mxu0
    %2802 = vmatprep.mubr.bf16.mxu0 0
    %2803 = vmatmul.mubr.bf16.gmra.mrb[0].mxu0 %v343
    %v2804 = vpop.f32.mrb[0].mxu0
    %v2805 = vadd.f32 %v2708, %v2804
    %v2806 = vpop.f32.mrb[0].mxu0
    %v2807 = vpop.f32.mrb[0].mxu0
    %v2808 = vadd.f32 %v2711, %v2807
    %v2809 = vpop.f32.mrb[0].mxu0
    %2810 = vdwg.mxu0
    %v2811 = vpack.c.bf16 %v2610, %v2609
    %v2812 = vpack.c.bf16 %v2612, %v2611
    %2813 = vmatprep.subr.bf16.mxu0 0
    %2814 = vmatpush1.bf16.msra.mxu0 %v2811
    %2815 = vmatprep.subr.bf16.mxu0 0
    %2816 = vmatpush1.bf16.msra.mxu0 %v2812
    %2817 = vmatprep.subr.bf16.mxu0 0
    %2818 = vmatpush1.bf16.msra.mxu0 0
    %2819 = vmatprep.subr.bf16.mxu0 0
    %2820 = vmatpush1.bf16.msra.mxu0 0
    %2821 = vmatprep.subr.bf16.mxu0 0
    %2822 = vmatpush1.bf16.msra.mxu0 0
    %2823 = vmatprep.subr.bf16.mxu0 0
    %2824 = vmatpush1.bf16.msra.mxu0 0
    %2825 = vmatprep.subr.bf16.mxu0 0
    %2826 = vmatpush1.bf16.msra.mxu0 0
    %2827 = vmatprep.subr.bf16.mxu0 0
    %2828 = vmatpush1.bf16.msra.mxu0 0
    %2829 = vmatprep.subr.bf16.mxu0 0
    %2830 = vmatpush1.bf16.msra.mxu0 0
    %2831 = vmatprep.subr.bf16.mxu0 0
    %2832 = vmatpush1.bf16.msra.mxu0 0
    %2833 = vmatprep.subr.bf16.mxu0 0
    %2834 = vmatpush1.bf16.msra.mxu0 0
    %2835 = vmatprep.subr.bf16.mxu0 0
    %2836 = vmatpush1.bf16.msra.mxu0 0
    %2837 = vmatprep.subr.bf16.mxu0 0
    %2838 = vmatpush1.bf16.msra.mxu0 0
    %2839 = vmatprep.subr.bf16.mxu0 0
    %2840 = vmatpush1.bf16.msra.mxu0 0
    %2841 = vmatprep.subr.bf16.mxu0 0
    %2842 = vmatpush1.bf16.msra.mxu0 0
    %2843 = vmatprep.subr.bf16.mxu0 0
    %2844 = vmatpush1.bf16.msra.mxu0 0
    %2845 = vmatprep.mubr.bf16.mxu0 0
    %2846 = vmatmul.mubr.bf16.gmra.mrb[0].mxu0 %v483
    %v2847 = vpop.f32.mrb[0].mxu0
    %v2848 = vadd.f32 0.0, %v2847
    %v2849 = vpop.f32.mrb[0].mxu0
    %v2850 = vpop.f32.mrb[0].mxu0
    %v2851 = vadd.f32 0.0, %v2850
    %v2852 = vpop.f32.mrb[0].mxu0
    %2853 = vmatprep.mubr.bf16.mxu0 0
    %2854 = vmatmul.mubr.bf16.gmra.mrb[0].mxu0 %v486
    %v2855 = vpop.f32.mrb[0].mxu0
    %v2856 = vadd.f32 0.0, %v2855
    %v2857 = vpop.f32.mrb[0].mxu0
    %v2858 = vpop.f32.mrb[0].mxu0
    %v2859 = vadd.f32 0.0, %v2858
    %v2860 = vpop.f32.mrb[0].mxu0
    %2861 = vmatprep.mubr.bf16.mxu0 0
    %2862 = vmatmul.mubr.bf16.gmra.mrb[0].mxu0 %v489
    %v2863 = vpop.f32.mrb[0].mxu0
    %v2864 = vadd.f32 0.0, %v2863
    %v2865 = vpop.f32.mrb[0].mxu0
    %v2866 = vpop.f32.mrb[0].mxu0
    %v2867 = vadd.f32 0.0, %v2866
    %v2868 = vpop.f32.mrb[0].mxu0
    %2869 = vmatprep.mubr.bf16.mxu0 0
    %2870 = vmatmul.mubr.bf16.gmra.mrb[0].mxu0 %v492
    %v2871 = vpop.f32.mrb[0].mxu0
    %v2872 = vadd.f32 0.0, %v2871
    %v2873 = vpop.f32.mrb[0].mxu0
    %v2874 = vpop.f32.mrb[0].mxu0
    %v2875 = vadd.f32 0.0, %v2874
    %v2876 = vpop.f32.mrb[0].mxu0
    %2877 = vmatprep.mubr.bf16.mxu0 0
    %2878 = vmatmul.mubr.bf16.gmra.mrb[0].mxu0 %v495
    %v2879 = vpop.f32.mrb[0].mxu0
    %v2880 = vadd.f32 0.0, %v2879
    %v2881 = vpop.f32.mrb[0].mxu0
    %v2882 = vpop.f32.mrb[0].mxu0
    %v2883 = vadd.f32 0.0, %v2882
    %v2884 = vpop.f32.mrb[0].mxu0
    %2885 = vmatprep.mubr.bf16.mxu0 0
    %2886 = vmatmul.mubr.bf16.gmra.mrb[0].mxu0 %v498
    %v2887 = vpop.f32.mrb[0].mxu0
    %v2888 = vadd.f32 0.0, %v2887
    %v2889 = vpop.f32.mrb[0].mxu0
    %v2890 = vpop.f32.mrb[0].mxu0
    %v2891 = vadd.f32 0.0, %v2890
    %v2892 = vpop.f32.mrb[0].mxu0
    %2893 = vmatprep.mubr.bf16.mxu0 0
    %2894 = vmatmul.mubr.bf16.gmra.mrb[0].mxu0 %v501
    %v2895 = vpop.f32.mrb[0].mxu0
    %v2896 = vadd.f32 0.0, %v2895
    %v2897 = vpop.f32.mrb[0].mxu0
    %v2898 = vpop.f32.mrb[0].mxu0
    %v2899 = vadd.f32 0.0, %v2898
    %v2900 = vpop.f32.mrb[0].mxu0
    %2901 = vmatprep.mubr.bf16.mxu0 0
    %2902 = vmatmul.mubr.bf16.gmra.mrb[0].mxu0 %v504
    %v2903 = vpop.f32.mrb[0].mxu0
    %v2904 = vadd.f32 0.0, %v2903
    %v2905 = vpop.f32.mrb[0].mxu0
    %v2906 = vpop.f32.mrb[0].mxu0
    %v2907 = vadd.f32 0.0, %v2906
    %v2908 = vpop.f32.mrb[0].mxu0
    %2909 = vdwg.mxu0
    %v2910 = vadd.f32 %v2749, %v2848
    %v2911 = vadd.f32 %v2752, %v2851
    %v2912 = vadd.f32 %v2757, %v2856
    %v2913 = vadd.f32 %v2760, %v2859
    %v2914 = vadd.f32 %v2765, %v2864
    %v2915 = vadd.f32 %v2768, %v2867
    %v2916 = vadd.f32 %v2773, %v2872
    %v2917 = vadd.f32 %v2776, %v2875
    %v2918 = vadd.f32 %v2781, %v2880
    %v2919 = vadd.f32 %v2784, %v2883
    %v2920 = vadd.f32 %v2789, %v2888
    %v2921 = vadd.f32 %v2792, %v2891
    %v2922 = vadd.f32 %v2797, %v2896
    %v2923 = vadd.f32 %v2800, %v2899
    %v2924 = vadd.f32 %v2805, %v2904
    %v2925 = vadd.f32 %v2808, %v2907
    %v2926 = vadd.f32 %v2910, %v622
    %v2927 = vadd.f32 %v2911, %v627
    %v2928 = vadd.f32 %v2912, %v632
    %v2929 = vadd.f32 %v2913, %v637
    %v2930 = vadd.f32 %v2914, %v642
    %v2931 = vadd.f32 %v2915, %v647
    %v2932 = vadd.f32 %v2916, %v652
    %v2933 = vadd.f32 %v2917, %v657
    %v2934 = vadd.f32 %v2918, %v662
    %v2935 = vadd.f32 %v2919, %v667
    %v2936 = vadd.f32 %v2920, %v672
    %v2937 = vadd.f32 %v2921, %v677
    %v2938 = vadd.f32 %v2922, %v682
    %v2939 = vadd.f32 %v2923, %v687
    %v2940 = vadd.f32 %v2924, %v692
    %v2941 = vadd.f32 %v2925, %v697
    %v2942 = vxor.u32 %v2926, 2147483648
    %v2943 = vxor.u32 %v2927, 2147483648
    %v2944 = vxor.u32 %v2928, 2147483648
    %v2945 = vxor.u32 %v2929, 2147483648
    %v2946 = vmul.f32 %v2942, 1.442695
    %v2947 = vpow.pop %v2946
    %v2948 = vmul.f32 %v2943, 1.442695
    %v2949 = vpow.pop %v2948
    %v2950 = vmul.f32 %v2944, 1.442695
    %v2951 = vpow.pop %v2950
    %v2952 = vmul.f32 %v2945, 1.442695
    %v2953 = vpow.pop %v2952
    %v2954 = vadd.f32 %v2947, 1.0
    %v2955 = vadd.f32 %v2949, 1.0
    %v2956 = vadd.f32 %v2951, 1.0
    %v2957 = vadd.f32 %v2953, 1.0
    %v2958 = vrcp.pop %v2954
    %v2959 = vmul.f32 1.0, %v2958
    %v2960 = vrcp.pop %v2955
    %v2961 = vmul.f32 1.0, %v2960
    %v2962 = vrcp.pop %v2956
    %v2963 = vmul.f32 1.0, %v2962
    %v2964 = vrcp.pop %v2957
    %v2965 = vmul.f32 1.0, %v2964
    %v2966 = vxor.u32 %v2930, 2147483648
    %v2967 = vxor.u32 %v2931, 2147483648
    %v2968 = vxor.u32 %v2932, 2147483648
    %v2969 = vxor.u32 %v2933, 2147483648
    %v2970 = vmul.f32 %v2966, 1.442695
    %v2971 = vpow.pop %v2970
    %v2972 = vmul.f32 %v2967, 1.442695
    %v2973 = vpow.pop %v2972
    %v2974 = vmul.f32 %v2968, 1.442695
    %v2975 = vpow.pop %v2974
    %v2976 = vmul.f32 %v2969, 1.442695
    %v2977 = vpow.pop %v2976
    %v2978 = vadd.f32 %v2971, 1.0
    %v2979 = vadd.f32 %v2973, 1.0
    %v2980 = vadd.f32 %v2975, 1.0
    %v2981 = vadd.f32 %v2977, 1.0
    %v2982 = vrcp.pop %v2978
    %v2983 = vmul.f32 1.0, %v2982
    %v2984 = vrcp.pop %v2979
    %v2985 = vmul.f32 1.0, %v2984
    %v2986 = vrcp.pop %v2980
    %v2987 = vmul.f32 1.0, %v2986
    %v2988 = vrcp.pop %v2981
    %v2989 = vmul.f32 1.0, %v2988
    %v2990 = vtanh.pop %v2934
    %v2991 = vtanh.pop %v2935
    %v2992 = vtanh.pop %v2936
    %v2993 = vtanh.pop %v2937
    %v2994 = vxor.u32 %v2938, 2147483648
    %v2995 = vxor.u32 %v2939, 2147483648
    %v2996 = vxor.u32 %v2940, 2147483648
    %v2997 = vxor.u32 %v2941, 2147483648
    %v2998 = vmul.f32 %v2994, 1.442695
    %v2999 = vpow.pop %v2998
    %v3000 = vmul.f32 %v2995, 1.442695
    %v3001 = vpow.pop %v3000
    %v3002 = vmul.f32 %v2996, 1.442695
    %v3003 = vpow.pop %v3002
    %v3004 = vmul.f32 %v2997, 1.442695
    %v3005 = vpow.pop %v3004
    %v3006 = vadd.f32 %v2999, 1.0
    %v3007 = vadd.f32 %v3001, 1.0
    %v3008 = vadd.f32 %v3003, 1.0
    %v3009 = vadd.f32 %v3005, 1.0
    %v3010 = vrcp.pop %v3006
    %v3011 = vmul.f32 1.0, %v3010
    %v3012 = vrcp.pop %v3007
    %v3013 = vmul.f32 1.0, %v3012
    %v3014 = vrcp.pop %v3008
    %v3015 = vmul.f32 1.0, %v3014
    %v3016 = vrcp.pop %v3009
    %v3017 = vmul.f32 1.0, %v3016
    %v3018 = vmul.f32 %v2983, %v2601
    %v3019 = vmul.f32 %v2985, %v2602
    %v3020 = vmul.f32 %v2987, %v2603
    %v3021 = vmul.f32 %v2989, %v2604
    %v3022 = vmul.f32 %v2959, %v2990
    %v3023 = vmul.f32 %v2961, %v2991
    %v3024 = vmul.f32 %v2963, %v2992
    %v3025 = vmul.f32 %v2965, %v2993
    %v3026 = vadd.f32 %v3018, %v3022
    %v3027 = vadd.f32 %v3019, %v3023
    %v3028 = vadd.f32 %v3020, %v3024
    %v3029 = vadd.f32 %v3021, %v3025
    %v3030 = vtanh.pop %v3026
    %v3031 = vtanh.pop %v3027
    %v3032 = vtanh.pop %v3028
    %v3033 = vtanh.pop %v3029
    %v3034 = vmul.f32 %v3011, %v3030
    %v3035 = vmul.f32 %v3013, %v3031
    %v3036 = vmul.f32 %v3015, %v3032
    %v3037 = vmul.f32 %v3017, %v3033
    %v3038 = vadd.f32 %v2613, %v3034
    %v3039 = vadd.f32 %v2614, %v3035
    %v3040 = vadd.f32 %v2615, %v3036
    %v3041 = vadd.f32 %v2616, %v3037
    %3042 = vmatprep.subr.bf16.mxu0 0
    %3043 = vmatpush1.bf16.msra.mxu0 %v942
    %3044 = vmatprep.subr.bf16.mxu0 0
    %3045 = vmatpush1.bf16.msra.mxu0 %v943
    %3046 = vmatprep.subr.bf16.mxu0 0
    %3047 = vmatpush1.bf16.msra.mxu0 0
    %3048 = vmatprep.subr.bf16.mxu0 0
    %3049 = vmatpush1.bf16.msra.mxu0 0
    %3050 = vmatprep.subr.bf16.mxu0 0
    %3051 = vmatpush1.bf16.msra.mxu0 0
    %3052 = vmatprep.subr.bf16.mxu0 0
    %3053 = vmatpush1.bf16.msra.mxu0 0
    %3054 = vmatprep.subr.bf16.mxu0 0
    %3055 = vmatpush1.bf16.msra.mxu0 0
    %3056 = vmatprep.subr.bf16.mxu0 0
    %3057 = vmatpush1.bf16.msra.mxu0 0
    %3058 = vmatprep.subr.bf16.mxu0 0
    %3059 = vmatpush1.bf16.msra.mxu0 0
    %3060 = vmatprep.subr.bf16.mxu0 0
    %3061 = vmatpush1.bf16.msra.mxu0 0
    %3062 = vmatprep.subr.bf16.mxu0 0
    %3063 = vmatpush1.bf16.msra.mxu0 0
    %3064 = vmatprep.subr.bf16.mxu0 0
    %3065 = vmatpush1.bf16.msra.mxu0 0
    %3066 = vmatprep.subr.bf16.mxu0 0
    %3067 = vmatpush1.bf16.msra.mxu0 0
    %3068 = vmatprep.subr.bf16.mxu0 0
    %3069 = vmatpush1.bf16.msra.mxu0 0
    %3070 = vmatprep.subr.bf16.mxu0 0
    %3071 = vmatpush1.bf16.msra.mxu0 0
    %3072 = vmatprep.subr.bf16.mxu0 0
    %3073 = vmatpush1.bf16.msra.mxu0 0
    %3074 = vmatprep.mubr.bf16.mxu0 0
    %3075 = vmatmul.mubr.bf16.gmra.mrb[0].mxu0 %v149
    %v3076 = vpop.f32.mrb[0].mxu0
    %v3077 = vadd.f32 0.0, %v3076
    %v3078 = vpop.f32.mrb[0].mxu0
    %v3079 = vpop.f32.mrb[0].mxu0
    %v3080 = vadd.f32 0.0, %v3079
    %v3081 = vpop.f32.mrb[0].mxu0
    %3082 = vmatprep.mubr.bf16.mxu0 0
    %3083 = vmatmul.mubr.bf16.gmra.mrb[0].mxu0 %v152
    %v3084 = vpop.f32.mrb[0].mxu0
    %v3085 = vadd.f32 0.0, %v3084
    %v3086 = vpop.f32.mrb[0].mxu0
    %v3087 = vpop.f32.mrb[0].mxu0
    %v3088 = vadd.f32 0.0, %v3087
    %v3089 = vpop.f32.mrb[0].mxu0
    %3090 = vmatprep.mubr.bf16.mxu0 0
    %3091 = vmatmul.mubr.bf16.gmra.mrb[0].mxu0 %v155
    %v3092 = vpop.f32.mrb[0].mxu0
    %v3093 = vadd.f32 0.0, %v3092
    %v3094 = vpop.f32.mrb[0].mxu0
    %v3095 = vpop.f32.mrb[0].mxu0
    %v3096 = vadd.f32 0.0, %v3095
    %v3097 = vpop.f32.mrb[0].mxu0
    %3098 = vmatprep.mubr.bf16.mxu0 0
    %3099 = vmatmul.mubr.bf16.gmra.mrb[0].mxu0 %v158
    %v3100 = vpop.f32.mrb[0].mxu0
    %v3101 = vadd.f32 0.0, %v3100
    %v3102 = vpop.f32.mrb[0].mxu0
    %v3103 = vpop.f32.mrb[0].mxu0
    %v3104 = vadd.f32 0.0, %v3103
    %v3105 = vpop.f32.mrb[0].mxu0
    %3106 = vmatprep.mubr.bf16.mxu0 0
    %3107 = vmatmul.mubr.bf16.gmra.mrb[0].mxu0 %v161
    %v3108 = vpop.f32.mrb[0].mxu0
    %v3109 = vadd.f32 0.0, %v3108
    %v3110 = vpop.f32.mrb[0].mxu0
    %v3111 = vpop.f32.mrb[0].mxu0
    %v3112 = vadd.f32 0.0, %v3111
    %v3113 = vpop.f32.mrb[0].mxu0
    %3114 = vmatprep.mubr.bf16.mxu0 0
    %3115 = vmatmul.mubr.bf16.gmra.mrb[0].mxu0 %v164
    %v3116 = vpop.f32.mrb[0].mxu0
    %v3117 = vadd.f32 0.0, %v3116
    %v3118 = vpop.f32.mrb[0].mxu0
    %v3119 = vpop.f32.mrb[0].mxu0
    %v3120 = vadd.f32 0.0, %v3119
    %v3121 = vpop.f32.mrb[0].mxu0
    %3122 = vmatprep.mubr.bf16.mxu0 0
    %3123 = vmatmul.mubr.bf16.gmra.mrb[0].mxu0 %v167
    %v3124 = vpop.f32.mrb[0].mxu0
    %v3125 = vadd.f32 0.0, %v3124
    %v3126 = vpop.f32.mrb[0].mxu0
    %v3127 = vpop.f32.mrb[0].mxu0
    %v3128 = vadd.f32 0.0, %v3127
    %v3129 = vpop.f32.mrb[0].mxu0
    %3130 = vmatprep.mubr.bf16.mxu0 0
    %3131 = vmatmul.mubr.bf16.gmra.mrb[0].mxu0 %v170
    %v3132 = vpop.f32.mrb[0].mxu0
    %v3133 = vadd.f32 0.0, %v3132
    %v3134 = vpop.f32.mrb[0].mxu0
    %v3135 = vpop.f32.mrb[0].mxu0
    %v3136 = vadd.f32 0.0, %v3135
    %v3137 = vpop.f32.mrb[0].mxu0
    %3138 = vdwg.mxu0
    %3139 = vmatprep.subr.bf16.mxu0 0
    %3140 = vmatpush1.bf16.msra.mxu0 %v833
    %3141 = vmatprep.subr.bf16.mxu0 0
    %3142 = vmatpush1.bf16.msra.mxu0 %v834
    %3143 = vmatprep.subr.bf16.mxu0 0
    %3144 = vmatpush1.bf16.msra.mxu0 0
    %3145 = vmatprep.subr.bf16.mxu0 0
    %3146 = vmatpush1.bf16.msra.mxu0 0
    %3147 = vmatprep.subr.bf16.mxu0 0
    %3148 = vmatpush1.bf16.msra.mxu0 0
    %3149 = vmatprep.subr.bf16.mxu0 0
    %3150 = vmatpush1.bf16.msra.mxu0 0
    %3151 = vmatprep.subr.bf16.mxu0 0
    %3152 = vmatpush1.bf16.msra.mxu0 0
    %3153 = vmatprep.subr.bf16.mxu0 0
    %3154 = vmatpush1.bf16.msra.mxu0 0
    %3155 = vmatprep.subr.bf16.mxu0 0
    %3156 = vmatpush1.bf16.msra.mxu0 0
    %3157 = vmatprep.subr.bf16.mxu0 0
    %3158 = vmatpush1.bf16.msra.mxu0 0
    %3159 = vmatprep.subr.bf16.mxu0 0
    %3160 = vmatpush1.bf16.msra.mxu0 0
    %3161 = vmatprep.subr.bf16.mxu0 0
    %3162 = vmatpush1.bf16.msra.mxu0 0
    %3163 = vmatprep.subr.bf16.mxu0 0
    %3164 = vmatpush1.bf16.msra.mxu0 0
    %3165 = vmatprep.subr.bf16.mxu0 0
    %3166 = vmatpush1.bf16.msra.mxu0 0
    %3167 = vmatprep.subr.bf16.mxu0 0
    %3168 = vmatpush1.bf16.msra.mxu0 0
    %3169 = vmatprep.subr.bf16.mxu0 0
    %3170 = vmatpush1.bf16.msra.mxu0 0
    %3171 = vmatprep.mubr.bf16.mxu0 0
    %3172 = vmatmul.mubr.bf16.gmra.mrb[0].mxu0 %v322
    %v3173 = vpop.f32.mrb[0].mxu0
    %v3174 = vadd.f32 %v3077, %v3173
    %v3175 = vpop.f32.mrb[0].mxu0
    %v3176 = vpop.f32.mrb[0].mxu0
    %v3177 = vadd.f32 %v3080, %v3176
    %v3178 = vpop.f32.mrb[0].mxu0
    %3179 = vmatprep.mubr.bf16.mxu0 0
    %3180 = vmatmul.mubr.bf16.gmra.mrb[0].mxu0 %v325
    %v3181 = vpop.f32.mrb[0].mxu0
    %v3182 = vadd.f32 %v3085, %v3181
    %v3183 = vpop.f32.mrb[0].mxu0
    %v3184 = vpop.f32.mrb[0].mxu0
    %v3185 = vadd.f32 %v3088, %v3184
    %v3186 = vpop.f32.mrb[0].mxu0
    %3187 = vmatprep.mubr.bf16.mxu0 0
    %3188 = vmatmul.mubr.bf16.gmra.mrb[0].mxu0 %v328
    %v3189 = vpop.f32.mrb[0].mxu0
    %v3190 = vadd.f32 %v3093, %v3189
    %v3191 = vpop.f32.mrb[0].mxu0
    %v3192 = vpop.f32.mrb[0].mxu0
    %v3193 = vadd.f32 %v3096, %v3192
    %v3194 = vpop.f32.mrb[0].mxu0
    %3195 = vmatprep.mubr.bf16.mxu0 0
    %3196 = vmatmul.mubr.bf16.gmra.mrb[0].mxu0 %v331
    %v3197 = vpop.f32.mrb[0].mxu0
    %v3198 = vadd.f32 %v3101, %v3197
    %v3199 = vpop.f32.mrb[0].mxu0
    %v3200 = vpop.f32.mrb[0].mxu0
    %v3201 = vadd.f32 %v3104, %v3200
    %v3202 = vpop.f32.mrb[0].mxu0
    %3203 = vmatprep.mubr.bf16.mxu0 0
    %3204 = vmatmul.mubr.bf16.gmra.mrb[0].mxu0 %v334
    %v3205 = vpop.f32.mrb[0].mxu0
    %v3206 = vadd.f32 %v3109, %v3205
    %v3207 = vpop.f32.mrb[0].mxu0
    %v3208 = vpop.f32.mrb[0].mxu0
    %v3209 = vadd.f32 %v3112, %v3208
    %v3210 = vpop.f32.mrb[0].mxu0
    %3211 = vmatprep.mubr.bf16.mxu0 0
    %3212 = vmatmul.mubr.bf16.gmra.mrb[0].mxu0 %v337
    %v3213 = vpop.f32.mrb[0].mxu0
    %v3214 = vadd.f32 %v3117, %v3213
    %v3215 = vpop.f32.mrb[0].mxu0
    %v3216 = vpop.f32.mrb[0].mxu0
    %v3217 = vadd.f32 %v3120, %v3216
    %v3218 = vpop.f32.mrb[0].mxu0
    %3219 = vmatprep.mubr.bf16.mxu0 0
    %3220 = vmatmul.mubr.bf16.gmra.mrb[0].mxu0 %v340
    %v3221 = vpop.f32.mrb[0].mxu0
    %v3222 = vadd.f32 %v3125, %v3221
    %v3223 = vpop.f32.mrb[0].mxu0
    %v3224 = vpop.f32.mrb[0].mxu0
    %v3225 = vadd.f32 %v3128, %v3224
    %v3226 = vpop.f32.mrb[0].mxu0
    %3227 = vmatprep.mubr.bf16.mxu0 0
    %3228 = vmatmul.mubr.bf16.gmra.mrb[0].mxu0 %v343
    %v3229 = vpop.f32.mrb[0].mxu0
    %v3230 = vadd.f32 %v3133, %v3229
    %v3231 = vpop.f32.mrb[0].mxu0
    %v3232 = vpop.f32.mrb[0].mxu0
    %v3233 = vadd.f32 %v3136, %v3232
    %v3234 = vpop.f32.mrb[0].mxu0
    %3235 = vdwg.mxu0
    %v3236 = vpack.c.bf16 %v3035, %v3034
    %v3237 = vpack.c.bf16 %v3037, %v3036
    %3238 = vmatprep.subr.bf16.mxu0 0
    %3239 = vmatpush1.bf16.msra.mxu0 %v3236
    %3240 = vmatprep.subr.bf16.mxu0 0
    %3241 = vmatpush1.bf16.msra.mxu0 %v3237
    %3242 = vmatprep.subr.bf16.mxu0 0
    %3243 = vmatpush1.bf16.msra.mxu0 0
    %3244 = vmatprep.subr.bf16.mxu0 0
    %3245 = vmatpush1.bf16.msra.mxu0 0
    %3246 = vmatprep.subr.bf16.mxu0 0
    %3247 = vmatpush1.bf16.msra.mxu0 0
    %3248 = vmatprep.subr.bf16.mxu0 0
    %3249 = vmatpush1.bf16.msra.mxu0 0
    %3250 = vmatprep.subr.bf16.mxu0 0
    %3251 = vmatpush1.bf16.msra.mxu0 0
    %3252 = vmatprep.subr.bf16.mxu0 0
    %3253 = vmatpush1.bf16.msra.mxu0 0
    %3254 = vmatprep.subr.bf16.mxu0 0
    %3255 = vmatpush1.bf16.msra.mxu0 0
    %3256 = vmatprep.subr.bf16.mxu0 0
    %3257 = vmatpush1.bf16.msra.mxu0 0
    %3258 = vmatprep.subr.bf16.mxu0 0
    %3259 = vmatpush1.bf16.msra.mxu0 0
    %3260 = vmatprep.subr.bf16.mxu0 0
    %3261 = vmatpush1.bf16.msra.mxu0 0
    %3262 = vmatprep.subr.bf16.mxu0 0
    %3263 = vmatpush1.bf16.msra.mxu0 0
    %3264 = vmatprep.subr.bf16.mxu0 0
    %3265 = vmatpush1.bf16.msra.mxu0 0
    %3266 = vmatprep.subr.bf16.mxu0 0
    %3267 = vmatpush1.bf16.msra.mxu0 0
    %3268 = vmatprep.subr.bf16.mxu0 0
    %3269 = vmatpush1.bf16.msra.mxu0 0
    %3270 = vmatprep.mubr.bf16.mxu0 0
    %3271 = vmatmul.mubr.bf16.gmra.mrb[0].mxu0 %v483
    %v3272 = vpop.f32.mrb[0].mxu0
    %v3273 = vadd.f32 0.0, %v3272
    %v3274 = vpop.f32.mrb[0].mxu0
    %v3275 = vpop.f32.mrb[0].mxu0
    %v3276 = vadd.f32 0.0, %v3275
    %v3277 = vpop.f32.mrb[0].mxu0
    %3278 = vmatprep.mubr.bf16.mxu0 0
    %3279 = vmatmul.mubr.bf16.gmra.mrb[0].mxu0 %v486
    %v3280 = vpop.f32.mrb[0].mxu0
    %v3281 = vadd.f32 0.0, %v3280
    %v3282 = vpop.f32.mrb[0].mxu0
    %v3283 = vpop.f32.mrb[0].mxu0
    %v3284 = vadd.f32 0.0, %v3283
    %v3285 = vpop.f32.mrb[0].mxu0
    %3286 = vmatprep.mubr.bf16.mxu0 0
    %3287 = vmatmul.mubr.bf16.gmra.mrb[0].mxu0 %v489
    %v3288 = vpop.f32.mrb[0].mxu0
    %v3289 = vadd.f32 0.0, %v3288
    %v3290 = vpop.f32.mrb[0].mxu0
    %v3291 = vpop.f32.mrb[0].mxu0
    %v3292 = vadd.f32 0.0, %v3291
    %v3293 = vpop.f32.mrb[0].mxu0
    %3294 = vmatprep.mubr.bf16.mxu0 0
    %3295 = vmatmul.mubr.bf16.gmra.mrb[0].mxu0 %v492
    %v3296 = vpop.f32.mrb[0].mxu0
    %v3297 = vadd.f32 0.0, %v3296
    %v3298 = vpop.f32.mrb[0].mxu0
    %v3299 = vpop.f32.mrb[0].mxu0
    %v3300 = vadd.f32 0.0, %v3299
    %v3301 = vpop.f32.mrb[0].mxu0
    %3302 = vmatprep.mubr.bf16.mxu0 0
    %3303 = vmatmul.mubr.bf16.gmra.mrb[0].mxu0 %v495
    %v3304 = vpop.f32.mrb[0].mxu0
    %v3305 = vadd.f32 0.0, %v3304
    %v3306 = vpop.f32.mrb[0].mxu0
    %v3307 = vpop.f32.mrb[0].mxu0
    %v3308 = vadd.f32 0.0, %v3307
    %v3309 = vpop.f32.mrb[0].mxu0
    %3310 = vmatprep.mubr.bf16.mxu0 0
    %3311 = vmatmul.mubr.bf16.gmra.mrb[0].mxu0 %v498
    %v3312 = vpop.f32.mrb[0].mxu0
    %v3313 = vadd.f32 0.0, %v3312
    %v3314 = vpop.f32.mrb[0].mxu0
    %v3315 = vpop.f32.mrb[0].mxu0
    %v3316 = vadd.f32 0.0, %v3315
    %v3317 = vpop.f32.mrb[0].mxu0
    %3318 = vmatprep.mubr.bf16.mxu0 0
    %3319 = vmatmul.mubr.bf16.gmra.mrb[0].mxu0 %v501
    %v3320 = vpop.f32.mrb[0].mxu0
    %v3321 = vadd.f32 0.0, %v3320
    %v3322 = vpop.f32.mrb[0].mxu0
    %v3323 = vpop.f32.mrb[0].mxu0
    %v3324 = vadd.f32 0.0, %v3323
    %v3325 = vpop.f32.mrb[0].mxu0
    %3326 = vmatprep.mubr.bf16.mxu0 0
    %3327 = vmatmul.mubr.bf16.gmra.mrb[0].mxu0 %v504
    %v3328 = vpop.f32.mrb[0].mxu0
    %v3329 = vadd.f32 0.0, %v3328
    %v3330 = vpop.f32.mrb[0].mxu0
    %v3331 = vpop.f32.mrb[0].mxu0
    %v3332 = vadd.f32 0.0, %v3331
    %v3333 = vpop.f32.mrb[0].mxu0
    %3334 = vdwg.mxu0
    %v3335 = vadd.f32 %v3174, %v3273
    %v3336 = vadd.f32 %v3177, %v3276
    %v3337 = vadd.f32 %v3182, %v3281
    %v3338 = vadd.f32 %v3185, %v3284
    %v3339 = vadd.f32 %v3190, %v3289
    %v3340 = vadd.f32 %v3193, %v3292
    %v3341 = vadd.f32 %v3198, %v3297
    %v3342 = vadd.f32 %v3201, %v3300
    %v3343 = vadd.f32 %v3206, %v3305
    %v3344 = vadd.f32 %v3209, %v3308
    %v3345 = vadd.f32 %v3214, %v3313
    %v3346 = vadd.f32 %v3217, %v3316
    %v3347 = vadd.f32 %v3222, %v3321
    %v3348 = vadd.f32 %v3225, %v3324
    %v3349 = vadd.f32 %v3230, %v3329
    %v3350 = vadd.f32 %v3233, %v3332
    %v3351 = vadd.f32 %v3335, %v622
    %v3352 = vadd.f32 %v3336, %v627
    %v3353 = vadd.f32 %v3337, %v632
    %v3354 = vadd.f32 %v3338, %v637
    %v3355 = vadd.f32 %v3339, %v642
    %v3356 = vadd.f32 %v3340, %v647
    %v3357 = vadd.f32 %v3341, %v652
    %v3358 = vadd.f32 %v3342, %v657
    %v3359 = vadd.f32 %v3343, %v662
    %v3360 = vadd.f32 %v3344, %v667
    %v3361 = vadd.f32 %v3345, %v672
    %v3362 = vadd.f32 %v3346, %v677
    %v3363 = vadd.f32 %v3347, %v682
    %v3364 = vadd.f32 %v3348, %v687
    %v3365 = vadd.f32 %v3349, %v692
    %v3366 = vadd.f32 %v3350, %v697
    %v3367 = vxor.u32 %v3351, 2147483648
    %v3368 = vxor.u32 %v3352, 2147483648
    %v3369 = vxor.u32 %v3353, 2147483648
    %v3370 = vxor.u32 %v3354, 2147483648
    %v3371 = vmul.f32 %v3367, 1.442695
    %v3372 = vpow.pop %v3371
    %v3373 = vmul.f32 %v3368, 1.442695
    %v3374 = vpow.pop %v3373
    %v3375 = vmul.f32 %v3369, 1.442695
    %v3376 = vpow.pop %v3375
    %v3377 = vmul.f32 %v3370, 1.442695
    %v3378 = vpow.pop %v3377
    %v3379 = vadd.f32 %v3372, 1.0
    %v3380 = vadd.f32 %v3374, 1.0
    %v3381 = vadd.f32 %v3376, 1.0
    %v3382 = vadd.f32 %v3378, 1.0
    %v3383 = vrcp.pop %v3379
    %v3384 = vmul.f32 1.0, %v3383
    %v3385 = vrcp.pop %v3380
    %v3386 = vmul.f32 1.0, %v3385
    %v3387 = vrcp.pop %v3381
    %v3388 = vmul.f32 1.0, %v3387
    %v3389 = vrcp.pop %v3382
    %v3390 = vmul.f32 1.0, %v3389
    %v3391 = vxor.u32 %v3355, 2147483648
    %v3392 = vxor.u32 %v3356, 2147483648
    %v3393 = vxor.u32 %v3357, 2147483648
    %v3394 = vxor.u32 %v3358, 2147483648
    %v3395 = vmul.f32 %v3391, 1.442695
    %v3396 = vpow.pop %v3395
    %v3397 = vmul.f32 %v3392, 1.442695
    %v3398 = vpow.pop %v3397
    %v3399 = vmul.f32 %v3393, 1.442695
    %v3400 = vpow.pop %v3399
    %v3401 = vmul.f32 %v3394, 1.442695
    %v3402 = vpow.pop %v3401
    %v3403 = vadd.f32 %v3396, 1.0
    %v3404 = vadd.f32 %v3398, 1.0
    %v3405 = vadd.f32 %v3400, 1.0
    %v3406 = vadd.f32 %v3402, 1.0
    %v3407 = vrcp.pop %v3403
    %v3408 = vmul.f32 1.0, %v3407
    %v3409 = vrcp.pop %v3404
    %v3410 = vmul.f32 1.0, %v3409
    %v3411 = vrcp.pop %v3405
    %v3412 = vmul.f32 1.0, %v3411
    %v3413 = vrcp.pop %v3406
    %v3414 = vmul.f32 1.0, %v3413
    %v3415 = vtanh.pop %v3359
    %v3416 = vtanh.pop %v3360
    %v3417 = vtanh.pop %v3361
    %v3418 = vtanh.pop %v3362
    %v3419 = vxor.u32 %v3363, 2147483648
    %v3420 = vxor.u32 %v3364, 2147483648
    %v3421 = vxor.u32 %v3365, 2147483648
    %v3422 = vxor.u32 %v3366, 2147483648
    %v3423 = vmul.f32 %v3419, 1.442695
    %v3424 = vpow.pop %v3423
    %v3425 = vmul.f32 %v3420, 1.442695
    %v3426 = vpow.pop %v3425
    %v3427 = vmul.f32 %v3421, 1.442695
    %v3428 = vpow.pop %v3427
    %v3429 = vmul.f32 %v3422, 1.442695
    %v3430 = vpow.pop %v3429
    %v3431 = vadd.f32 %v3424, 1.0
    %v3432 = vadd.f32 %v3426, 1.0
    %v3433 = vadd.f32 %v3428, 1.0
    %v3434 = vadd.f32 %v3430, 1.0
    %v3435 = vrcp.pop %v3431
    %v3436 = vmul.f32 1.0, %v3435
    %v3437 = vrcp.pop %v3432
    %v3438 = vmul.f32 1.0, %v3437
    %v3439 = vrcp.pop %v3433
    %v3440 = vmul.f32 1.0, %v3439
    %v3441 = vrcp.pop %v3434
    %v3442 = vmul.f32 1.0, %v3441
    %v3443 = vmul.f32 %v3408, %v3026
    %v3444 = vmul.f32 %v3410, %v3027
    %v3445 = vmul.f32 %v3412, %v3028
    %v3446 = vmul.f32 %v3414, %v3029
    %v3447 = vmul.f32 %v3384, %v3415
    %v3448 = vmul.f32 %v3386, %v3416
    %v3449 = vmul.f32 %v3388, %v3417
    %v3450 = vmul.f32 %v3390, %v3418
    %v3451 = vadd.f32 %v3443, %v3447
    %v3452 = vadd.f32 %v3444, %v3448
    %v3453 = vadd.f32 %v3445, %v3449
    %v3454 = vadd.f32 %v3446, %v3450
    %v3455 = vtanh.pop %v3451
    %v3456 = vtanh.pop %v3452
    %v3457 = vtanh.pop %v3453
    %v3458 = vtanh.pop %v3454
    %v3459 = vmul.f32 %v3436, %v3455
    %v3460 = vmul.f32 %v3438, %v3456
    %v3461 = vmul.f32 %v3440, %v3457
    %v3462 = vmul.f32 %v3442, %v3458
    %v3463 = vadd.f32 %v3038, %v3459
    %v3464 = vadd.f32 %v3039, %v3460
    %v3465 = vadd.f32 %v3040, %v3461
    %v3466 = vadd.f32 %v3041, %v3462
    %3467 = vmatprep.subr.bf16.mxu0 0
    %3468 = vmatpush1.bf16.msra.mxu0 %v317
    %3469 = vmatprep.subr.bf16.mxu0 0
    %3470 = vmatpush1.bf16.msra.mxu0 %v318
    %3471 = vmatprep.subr.bf16.mxu0 0
    %3472 = vmatpush1.bf16.msra.mxu0 0
    %3473 = vmatprep.subr.bf16.mxu0 0
    %3474 = vmatpush1.bf16.msra.mxu0 0
    %3475 = vmatprep.subr.bf16.mxu0 0
    %3476 = vmatpush1.bf16.msra.mxu0 0
    %3477 = vmatprep.subr.bf16.mxu0 0
    %3478 = vmatpush1.bf16.msra.mxu0 0
    %3479 = vmatprep.subr.bf16.mxu0 0
    %3480 = vmatpush1.bf16.msra.mxu0 0
    %3481 = vmatprep.subr.bf16.mxu0 0
    %3482 = vmatpush1.bf16.msra.mxu0 0
    %3483 = vmatprep.subr.bf16.mxu0 0
    %3484 = vmatpush1.bf16.msra.mxu0 0
    %3485 = vmatprep.subr.bf16.mxu0 0
    %3486 = vmatpush1.bf16.msra.mxu0 0
    %3487 = vmatprep.subr.bf16.mxu0 0
    %3488 = vmatpush1.bf16.msra.mxu0 0
    %3489 = vmatprep.subr.bf16.mxu0 0
    %3490 = vmatpush1.bf16.msra.mxu0 0
    %3491 = vmatprep.subr.bf16.mxu0 0
    %3492 = vmatpush1.bf16.msra.mxu0 0
    %3493 = vmatprep.subr.bf16.mxu0 0
    %3494 = vmatpush1.bf16.msra.mxu0 0
    %3495 = vmatprep.subr.bf16.mxu0 0
    %3496 = vmatpush1.bf16.msra.mxu0 0
    %3497 = vmatprep.subr.bf16.mxu0 0
    %3498 = vmatpush1.bf16.msra.mxu0 0
    %3499 = vmatprep.mubr.bf16.mxu0 0
    %3500 = vmatmul.mubr.bf16.gmra.mrb[0].mxu0 %v149
    %v3501 = vpop.f32.mrb[0].mxu0
    %v3502 = vadd.f32 0.0, %v3501
    %v3503 = vpop.f32.mrb[0].mxu0
    %v3504 = vpop.f32.mrb[0].mxu0
    %v3505 = vadd.f32 0.0, %v3504
    %v3506 = vpop.f32.mrb[0].mxu0
    %3507 = vmatprep.mubr.bf16.mxu0 0
    %3508 = vmatmul.mubr.bf16.gmra.mrb[0].mxu0 %v152
    %v3509 = vpop.f32.mrb[0].mxu0
    %v3510 = vadd.f32 0.0, %v3509
    %v3511 = vpop.f32.mrb[0].mxu0
    %v3512 = vpop.f32.mrb[0].mxu0
    %v3513 = vadd.f32 0.0, %v3512
    %v3514 = vpop.f32.mrb[0].mxu0
    %3515 = vmatprep.mubr.bf16.mxu0 0
    %3516 = vmatmul.mubr.bf16.gmra.mrb[0].mxu0 %v155
    %v3517 = vpop.f32.mrb[0].mxu0
    %v3518 = vadd.f32 0.0, %v3517
    %v3519 = vpop.f32.mrb[0].mxu0
    %v3520 = vpop.f32.mrb[0].mxu0
    %v3521 = vadd.f32 0.0, %v3520
    %v3522 = vpop.f32.mrb[0].mxu0
    %3523 = vmatprep.mubr.bf16.mxu0 0
    %3524 = vmatmul.mubr.bf16.gmra.mrb[0].mxu0 %v158
    %v3525 = vpop.f32.mrb[0].mxu0
    %v3526 = vadd.f32 0.0, %v3525
    %v3527 = vpop.f32.mrb[0].mxu0
    %v3528 = vpop.f32.mrb[0].mxu0
    %v3529 = vadd.f32 0.0, %v3528
    %v3530 = vpop.f32.mrb[0].mxu0
    %3531 = vmatprep.mubr.bf16.mxu0 0
    %3532 = vmatmul.mubr.bf16.gmra.mrb[0].mxu0 %v161
    %v3533 = vpop.f32.mrb[0].mxu0
    %v3534 = vadd.f32 0.0, %v3533
    %v3535 = vpop.f32.mrb[0].mxu0
    %v3536 = vpop.f32.mrb[0].mxu0
    %v3537 = vadd.f32 0.0, %v3536
    %v3538 = vpop.f32.mrb[0].mxu0
    %3539 = vmatprep.mubr.bf16.mxu0 0
    %3540 = vmatmul.mubr.bf16.gmra.mrb[0].mxu0 %v164
    %v3541 = vpop.f32.mrb[0].mxu0
    %v3542 = vadd.f32 0.0, %v3541
    %v3543 = vpop.f32.mrb[0].mxu0
    %v3544 = vpop.f32.mrb[0].mxu0
    %v3545 = vadd.f32 0.0, %v3544
    %v3546 = vpop.f32.mrb[0].mxu0
    %3547 = vmatprep.mubr.bf16.mxu0 0
    %3548 = vmatmul.mubr.bf16.gmra.mrb[0].mxu0 %v167
    %v3549 = vpop.f32.mrb[0].mxu0
    %v3550 = vadd.f32 0.0, %v3549
    %v3551 = vpop.f32.mrb[0].mxu0
    %v3552 = vpop.f32.mrb[0].mxu0
    %v3553 = vadd.f32 0.0, %v3552
    %v3554 = vpop.f32.mrb[0].mxu0
    %3555 = vmatprep.mubr.bf16.mxu0 0
    %3556 = vmatmul.mubr.bf16.gmra.mrb[0].mxu0 %v170
    %v3557 = vpop.f32.mrb[0].mxu0
    %v3558 = vadd.f32 0.0, %v3557
    %v3559 = vpop.f32.mrb[0].mxu0
    %v3560 = vpop.f32.mrb[0].mxu0
    %v3561 = vadd.f32 0.0, %v3560
    %v3562 = vpop.f32.mrb[0].mxu0
    %3563 = vdwg.mxu0
    %3564 = vmatprep.subr.bf16.mxu0 0
    %3565 = vmatpush1.bf16.msra.mxu0 %v143
    %3566 = vmatprep.subr.bf16.mxu0 0
    %3567 = vmatpush1.bf16.msra.mxu0 %v144
    %3568 = vmatprep.subr.bf16.mxu0 0
    %3569 = vmatpush1.bf16.msra.mxu0 0
    %3570 = vmatprep.subr.bf16.mxu0 0
    %3571 = vmatpush1.bf16.msra.mxu0 0
    %3572 = vmatprep.subr.bf16.mxu0 0
    %3573 = vmatpush1.bf16.msra.mxu0 0
    %3574 = vmatprep.subr.bf16.mxu0 0
    %3575 = vmatpush1.bf16.msra.mxu0 0
    %3576 = vmatprep.subr.bf16.mxu0 0
    %3577 = vmatpush1.bf16.msra.mxu0 0
    %3578 = vmatprep.subr.bf16.mxu0 0
    %3579 = vmatpush1.bf16.msra.mxu0 0
    %3580 = vmatprep.subr.bf16.mxu0 0
    %3581 = vmatpush1.bf16.msra.mxu0 0
    %3582 = vmatprep.subr.bf16.mxu0 0
    %3583 = vmatpush1.bf16.msra.mxu0 0
    %3584 = vmatprep.subr.bf16.mxu0 0
    %3585 = vmatpush1.bf16.msra.mxu0 0
    %3586 = vmatprep.subr.bf16.mxu0 0
    %3587 = vmatpush1.bf16.msra.mxu0 0
    %3588 = vmatprep.subr.bf16.mxu0 0
    %3589 = vmatpush1.bf16.msra.mxu0 0
    %3590 = vmatprep.subr.bf16.mxu0 0
    %3591 = vmatpush1.bf16.msra.mxu0 0
    %3592 = vmatprep.subr.bf16.mxu0 0
    %3593 = vmatpush1.bf16.msra.mxu0 0
    %3594 = vmatprep.subr.bf16.mxu0 0
    %3595 = vmatpush1.bf16.msra.mxu0 0
    %3596 = vmatprep.mubr.bf16.mxu0 0
    %3597 = vmatmul.mubr.bf16.gmra.mrb[0].mxu0 %v322
    %v3598 = vpop.f32.mrb[0].mxu0
    %v3599 = vadd.f32 %v3502, %v3598
    %v3600 = vpop.f32.mrb[0].mxu0
    %v3601 = vpop.f32.mrb[0].mxu0
    %v3602 = vadd.f32 %v3505, %v3601
    %v3603 = vpop.f32.mrb[0].mxu0
    %3604 = vmatprep.mubr.bf16.mxu0 0
    %3605 = vmatmul.mubr.bf16.gmra.mrb[0].mxu0 %v325
    %v3606 = vpop.f32.mrb[0].mxu0
    %v3607 = vadd.f32 %v3510, %v3606
    %v3608 = vpop.f32.mrb[0].mxu0
    %v3609 = vpop.f32.mrb[0].mxu0
    %v3610 = vadd.f32 %v3513, %v3609
    %v3611 = vpop.f32.mrb[0].mxu0
    %3612 = vmatprep.mubr.bf16.mxu0 0
    %3613 = vmatmul.mubr.bf16.gmra.mrb[0].mxu0 %v328
    %v3614 = vpop.f32.mrb[0].mxu0
    %v3615 = vadd.f32 %v3518, %v3614
    %v3616 = vpop.f32.mrb[0].mxu0
    %v3617 = vpop.f32.mrb[0].mxu0
    %v3618 = vadd.f32 %v3521, %v3617
    %v3619 = vpop.f32.mrb[0].mxu0
    %3620 = vmatprep.mubr.bf16.mxu0 0
    %3621 = vmatmul.mubr.bf16.gmra.mrb[0].mxu0 %v331
    %v3622 = vpop.f32.mrb[0].mxu0
    %v3623 = vadd.f32 %v3526, %v3622
    %v3624 = vpop.f32.mrb[0].mxu0
    %v3625 = vpop.f32.mrb[0].mxu0
    %v3626 = vadd.f32 %v3529, %v3625
    %v3627 = vpop.f32.mrb[0].mxu0
    %3628 = vmatprep.mubr.bf16.mxu0 0
    %3629 = vmatmul.mubr.bf16.gmra.mrb[0].mxu0 %v334
    %v3630 = vpop.f32.mrb[0].mxu0
    %v3631 = vadd.f32 %v3534, %v3630
    %v3632 = vpop.f32.mrb[0].mxu0
    %v3633 = vpop.f32.mrb[0].mxu0
    %v3634 = vadd.f32 %v3537, %v3633
    %v3635 = vpop.f32.mrb[0].mxu0
    %3636 = vmatprep.mubr.bf16.mxu0 0
    %3637 = vmatmul.mubr.bf16.gmra.mrb[0].mxu0 %v337
    %v3638 = vpop.f32.mrb[0].mxu0
    %v3639 = vadd.f32 %v3542, %v3638
    %v3640 = vpop.f32.mrb[0].mxu0
    %v3641 = vpop.f32.mrb[0].mxu0
    %v3642 = vadd.f32 %v3545, %v3641
    %v3643 = vpop.f32.mrb[0].mxu0
    %3644 = vmatprep.mubr.bf16.mxu0 0
    %3645 = vmatmul.mubr.bf16.gmra.mrb[0].mxu0 %v340
    %v3646 = vpop.f32.mrb[0].mxu0
    %v3647 = vadd.f32 %v3550, %v3646
    %v3648 = vpop.f32.mrb[0].mxu0
    %v3649 = vpop.f32.mrb[0].mxu0
    %v3650 = vadd.f32 %v3553, %v3649
    %v3651 = vpop.f32.mrb[0].mxu0
    %3652 = vmatprep.mubr.bf16.mxu0 0
    %3653 = vmatmul.mubr.bf16.gmra.mrb[0].mxu0 %v343
    %v3654 = vpop.f32.mrb[0].mxu0
    %v3655 = vadd.f32 %v3558, %v3654
    %v3656 = vpop.f32.mrb[0].mxu0
    %v3657 = vpop.f32.mrb[0].mxu0
    %v3658 = vadd.f32 %v3561, %v3657
    %v3659 = vpop.f32.mrb[0].mxu0
    %3660 = vdwg.mxu0
    %v3661 = vpack.c.bf16 %v3460, %v3459
    %v3662 = vpack.c.bf16 %v3462, %v3461
    %3663 = vmatprep.subr.bf16.mxu0 0
    %3664 = vmatpush1.bf16.msra.mxu0 %v3661
    %3665 = vmatprep.subr.bf16.mxu0 0
    %3666 = vmatpush1.bf16.msra.mxu0 %v3662
    %3667 = vmatprep.subr.bf16.mxu0 0
    %3668 = vmatpush1.bf16.msra.mxu0 0
    %3669 = vmatprep.subr.bf16.mxu0 0
    %3670 = vmatpush1.bf16.msra.mxu0 0
    %3671 = vmatprep.subr.bf16.mxu0 0
    %3672 = vmatpush1.bf16.msra.mxu0 0
    %3673 = vmatprep.subr.bf16.mxu0 0
    %3674 = vmatpush1.bf16.msra.mxu0 0
    %3675 = vmatprep.subr.bf16.mxu0 0
    %3676 = vmatpush1.bf16.msra.mxu0 0
    %3677 = vmatprep.subr.bf16.mxu0 0
    %3678 = vmatpush1.bf16.msra.mxu0 0
    %3679 = vmatprep.subr.bf16.mxu0 0
    %3680 = vmatpush1.bf16.msra.mxu0 0
    %3681 = vmatprep.subr.bf16.mxu0 0
    %3682 = vmatpush1.bf16.msra.mxu0 0
    %3683 = vmatprep.subr.bf16.mxu0 0
    %3684 = vmatpush1.bf16.msra.mxu0 0
    %3685 = vmatprep.subr.bf16.mxu0 0
    %3686 = vmatpush1.bf16.msra.mxu0 0
    %3687 = vmatprep.subr.bf16.mxu0 0
    %3688 = vmatpush1.bf16.msra.mxu0 0
    %3689 = vmatprep.subr.bf16.mxu0 0
    %3690 = vmatpush1.bf16.msra.mxu0 0
    %3691 = vmatprep.subr.bf16.mxu0 0
    %3692 = vmatpush1.bf16.msra.mxu0 0
    %3693 = vmatprep.subr.bf16.mxu0 0
    %3694 = vmatpush1.bf16.msra.mxu0 0
    %3695 = vmatprep.mubr.bf16.mxu0 0
    %3696 = vmatmul.mubr.bf16.gmra.mrb[0].mxu0 %v483
    %v3697 = vpop.f32.mrb[0].mxu0
    %v3698 = vadd.f32 0.0, %v3697
    %v3699 = vpop.f32.mrb[0].mxu0
    %v3700 = vpop.f32.mrb[0].mxu0
    %v3701 = vadd.f32 0.0, %v3700
    %v3702 = vpop.f32.mrb[0].mxu0
    %3703 = vmatprep.mubr.bf16.mxu0 0
    %3704 = vmatmul.mubr.bf16.gmra.mrb[0].mxu0 %v486
    %v3705 = vpop.f32.mrb[0].mxu0
    %v3706 = vadd.f32 0.0, %v3705
    %v3707 = vpop.f32.mrb[0].mxu0
    %v3708 = vpop.f32.mrb[0].mxu0
    %v3709 = vadd.f32 0.0, %v3708
    %v3710 = vpop.f32.mrb[0].mxu0
    %3711 = vmatprep.mubr.bf16.mxu0 0
    %3712 = vmatmul.mubr.bf16.gmra.mrb[0].mxu0 %v489
    %v3713 = vpop.f32.mrb[0].mxu0
    %v3714 = vadd.f32 0.0, %v3713
    %v3715 = vpop.f32.mrb[0].mxu0
    %v3716 = vpop.f32.mrb[0].mxu0
    %v3717 = vadd.f32 0.0, %v3716
    %v3718 = vpop.f32.mrb[0].mxu0
    %3719 = vmatprep.mubr.bf16.mxu0 0
    %3720 = vmatmul.mubr.bf16.gmra.mrb[0].mxu0 %v492
    %v3721 = vpop.f32.mrb[0].mxu0
    %v3722 = vadd.f32 0.0, %v3721
    %v3723 = vpop.f32.mrb[0].mxu0
    %v3724 = vpop.f32.mrb[0].mxu0
    %v3725 = vadd.f32 0.0, %v3724
    %v3726 = vpop.f32.mrb[0].mxu0
    %3727 = vmatprep.mubr.bf16.mxu0 0
    %3728 = vmatmul.mubr.bf16.gmra.mrb[0].mxu0 %v495
    %v3729 = vpop.f32.mrb[0].mxu0
    %v3730 = vadd.f32 0.0, %v3729
    %v3731 = vpop.f32.mrb[0].mxu0
    %v3732 = vpop.f32.mrb[0].mxu0
    %v3733 = vadd.f32 0.0, %v3732
    %v3734 = vpop.f32.mrb[0].mxu0
    %3735 = vmatprep.mubr.bf16.mxu0 0
    %3736 = vmatmul.mubr.bf16.gmra.mrb[0].mxu0 %v498
    %v3737 = vpop.f32.mrb[0].mxu0
    %v3738 = vadd.f32 0.0, %v3737
    %v3739 = vpop.f32.mrb[0].mxu0
    %v3740 = vpop.f32.mrb[0].mxu0
    %v3741 = vadd.f32 0.0, %v3740
    %v3742 = vpop.f32.mrb[0].mxu0
    %3743 = vmatprep.mubr.bf16.mxu0 0
    %3744 = vmatmul.mubr.bf16.gmra.mrb[0].mxu0 %v501
    %v3745 = vpop.f32.mrb[0].mxu0
    %v3746 = vadd.f32 0.0, %v3745
    %v3747 = vpop.f32.mrb[0].mxu0
    %v3748 = vpop.f32.mrb[0].mxu0
    %v3749 = vadd.f32 0.0, %v3748
    %v3750 = vpop.f32.mrb[0].mxu0
    %3751 = vmatprep.mubr.bf16.mxu0 0
    %3752 = vmatmul.mubr.bf16.gmra.mrb[0].mxu0 %v504
    %v3753 = vpop.f32.mrb[0].mxu0
    %v3754 = vadd.f32 0.0, %v3753
    %v3755 = vpop.f32.mrb[0].mxu0
    %v3756 = vpop.f32.mrb[0].mxu0
    %v3757 = vadd.f32 0.0, %v3756
    %v3758 = vpop.f32.mrb[0].mxu0
    %3759 = vdwg.mxu0
    %v3760 = vadd.f32 %v3599, %v3698
    %v3761 = vadd.f32 %v3602, %v3701
    %v3762 = vadd.f32 %v3607, %v3706
    %v3763 = vadd.f32 %v3610, %v3709
    %v3764 = vadd.f32 %v3615, %v3714
    %v3765 = vadd.f32 %v3618, %v3717
    %v3766 = vadd.f32 %v3623, %v3722
    %v3767 = vadd.f32 %v3626, %v3725
    %v3768 = vadd.f32 %v3631, %v3730
    %v3769 = vadd.f32 %v3634, %v3733
    %v3770 = vadd.f32 %v3639, %v3738
    %v3771 = vadd.f32 %v3642, %v3741
    %v3772 = vadd.f32 %v3647, %v3746
    %v3773 = vadd.f32 %v3650, %v3749
    %v3774 = vadd.f32 %v3655, %v3754
    %v3775 = vadd.f32 %v3658, %v3757
    %v3776 = vadd.f32 %v3760, %v622
    %v3777 = vadd.f32 %v3761, %v627
    %v3778 = vadd.f32 %v3762, %v632
    %v3779 = vadd.f32 %v3763, %v637
    %v3780 = vadd.f32 %v3764, %v642
    %v3781 = vadd.f32 %v3765, %v647
    %v3782 = vadd.f32 %v3766, %v652
    %v3783 = vadd.f32 %v3767, %v657
    %v3784 = vadd.f32 %v3768, %v662
    %v3785 = vadd.f32 %v3769, %v667
    %v3786 = vadd.f32 %v3770, %v672
    %v3787 = vadd.f32 %v3771, %v677
    %v3788 = vadd.f32 %v3772, %v682
    %v3789 = vadd.f32 %v3773, %v687
    %v3790 = vadd.f32 %v3774, %v692
    %v3791 = vadd.f32 %v3775, %v697
    %v3792 = vxor.u32 %v3776, 2147483648
    %v3793 = vxor.u32 %v3777, 2147483648
    %v3794 = vxor.u32 %v3778, 2147483648
    %v3795 = vxor.u32 %v3779, 2147483648
    %v3796 = vmul.f32 %v3792, 1.442695
    %v3797 = vpow.pop %v3796
    %v3798 = vmul.f32 %v3793, 1.442695
    %v3799 = vpow.pop %v3798
    %v3800 = vmul.f32 %v3794, 1.442695
    %v3801 = vpow.pop %v3800
    %v3802 = vmul.f32 %v3795, 1.442695
    %v3803 = vpow.pop %v3802
    %v3804 = vadd.f32 %v3797, 1.0
    %v3805 = vadd.f32 %v3799, 1.0
    %v3806 = vadd.f32 %v3801, 1.0
    %v3807 = vadd.f32 %v3803, 1.0
    %v3808 = vrcp.pop %v3804
    %v3809 = vmul.f32 1.0, %v3808
    %v3810 = vrcp.pop %v3805
    %v3811 = vmul.f32 1.0, %v3810
    %v3812 = vrcp.pop %v3806
    %v3813 = vmul.f32 1.0, %v3812
    %v3814 = vrcp.pop %v3807
    %v3815 = vmul.f32 1.0, %v3814
    %v3816 = vxor.u32 %v3780, 2147483648
    %v3817 = vxor.u32 %v3781, 2147483648
    %v3818 = vxor.u32 %v3782, 2147483648
    %v3819 = vxor.u32 %v3783, 2147483648
    %v3820 = vmul.f32 %v3816, 1.442695
    %v3821 = vpow.pop %v3820
    %v3822 = vmul.f32 %v3817, 1.442695
    %v3823 = vpow.pop %v3822
    %v3824 = vmul.f32 %v3818, 1.442695
    %v3825 = vpow.pop %v3824
    %v3826 = vmul.f32 %v3819, 1.442695
    %v3827 = vpow.pop %v3826
    %v3828 = vadd.f32 %v3821, 1.0
    %v3829 = vadd.f32 %v3823, 1.0
    %v3830 = vadd.f32 %v3825, 1.0
    %v3831 = vadd.f32 %v3827, 1.0
    %v3832 = vrcp.pop %v3828
    %v3833 = vmul.f32 1.0, %v3832
    %v3834 = vrcp.pop %v3829
    %v3835 = vmul.f32 1.0, %v3834
    %v3836 = vrcp.pop %v3830
    %v3837 = vmul.f32 1.0, %v3836
    %v3838 = vrcp.pop %v3831
    %v3839 = vmul.f32 1.0, %v3838
    %v3840 = vtanh.pop %v3784
    %v3841 = vtanh.pop %v3785
    %v3842 = vtanh.pop %v3786
    %v3843 = vtanh.pop %v3787
    %v3844 = vxor.u32 %v3788, 2147483648
    %v3845 = vxor.u32 %v3789, 2147483648
    %v3846 = vxor.u32 %v3790, 2147483648
    %v3847 = vxor.u32 %v3791, 2147483648
    %v3848 = vmul.f32 %v3844, 1.442695
    %v3849 = vpow.pop %v3848
    %v3850 = vmul.f32 %v3845, 1.442695
    %v3851 = vpow.pop %v3850
    %v3852 = vmul.f32 %v3846, 1.442695
    %v3853 = vpow.pop %v3852
    %v3854 = vmul.f32 %v3847, 1.442695
    %v3855 = vpow.pop %v3854
    %v3856 = vadd.f32 %v3849, 1.0
    %v3857 = vadd.f32 %v3851, 1.0
    %v3858 = vadd.f32 %v3853, 1.0
    %v3859 = vadd.f32 %v3855, 1.0
    %v3860 = vrcp.pop %v3856
    %v3861 = vmul.f32 1.0, %v3860
    %v3862 = vrcp.pop %v3857
    %v3863 = vmul.f32 1.0, %v3862
    %v3864 = vrcp.pop %v3858
    %v3865 = vmul.f32 1.0, %v3864
    %v3866 = vrcp.pop %v3859
    %v3867 = vmul.f32 1.0, %v3866
    %v3868 = vmul.f32 %v3833, %v3451
    %v3869 = vmul.f32 %v3835, %v3452
    %v3870 = vmul.f32 %v3837, %v3453
    %v3871 = vmul.f32 %v3839, %v3454
    %v3872 = vmul.f32 %v3809, %v3840
    %v3873 = vmul.f32 %v3811, %v3841
    %v3874 = vmul.f32 %v3813, %v3842
    %v3875 = vmul.f32 %v3815, %v3843
    %v3876 = vadd.f32 %v3868, %v3872
    %v3877 = vadd.f32 %v3869, %v3873
    %v3878 = vadd.f32 %v3870, %v3874
    %v3879 = vadd.f32 %v3871, %v3875
    %v3880 = vtanh.pop %v3876
    %v3881 = vtanh.pop %v3877
    %v3882 = vtanh.pop %v3878
    %v3883 = vtanh.pop %v3879
    %v3884 = vmul.f32 %v3861, %v3880
    %v3885 = vmul.f32 %v3863, %v3881
    %v3886 = vmul.f32 %v3865, %v3882
    %v3887 = vmul.f32 %v3867, %v3883
    %v3888 = vadd.f32 %v3463, %v3884
    %v3889 = vadd.f32 %v3464, %v3885
    %v3890 = vadd.f32 %v3465, %v3886
    %v3891 = vadd.f32 %v3466, %v3887
    %v3892 = vmul.f32 %v3888, 0.125
    %v3893 = vmul.f32 %v3889, 0.125
    %v3894 = vmul.f32 %v3890, 0.125
    %v3895 = vmul.f32 %v3891, 0.125
    %3896 = vst [vmem:[#allocation2] sm:$0xff] %v3892
    %3897 = vst [vmem:[#allocation2 + $0x8] sm:$0xff] %v3893
    %3898 = vst [vmem:[#allocation2 + $0x10] sm:$0xff] %v3894
    %3899 = vst [vmem:[#allocation2 + $0x18] sm:$0xff] %v3895
    // Predicated region
    $region22: #{tpu_custom_call.1} parent=1 // pred_check
      _
    $region23: #{tpu_custom_call.1} parent=1 // pred_check_branch
      %3901 = sbr.rel (0) target = $region25
    $region24: #{tpu_custom_call.1} parent=1 // pred_region
      %s3903 = ssub.s32 512, 512
      %3904 = vsyncadd [#allocation3], %s3903
      %s3905 = sshll.u32 [#allocation2], 4
      %s3906 = int_to_ptr.vmem [resolvable:$true] %s3905
      %3911 = dma.vmem_to_hbm [thread:$0]  %s3906, 512, %s5, [#allocation3], 128, 128, 8
    $region25: #{tpu_custom_call.1} parent=1 // pred_fallthru
      _
    // Predicated region
    $region26: #{tpu_custom_call.1} parent=1 // pred_check
      _
    $region27: #{tpu_custom_call.1} parent=1 // pred_check_branch
      %3913 = sbr.rel (0) target = $region29
    $region28: #{tpu_custom_call.1} parent=1 // pred_region
      %3914 = dma.done [#allocation3], 512
    $region29: #{tpu_custom_call.1} parent=1 // pred_fallthru
      _
    %3915 = vsyncpa [#allocation3], 1

</llo_original>
